<compile_context>
chip_gen: v6e
topology: v6e:2x2x1
jax: 0.10.0
libtpu: 0.0.40
codegen_flags: <defaults>
</compile_context>

<pallas_src>
import functools
import numpy as np

import jax
import jax.numpy as jnp
from jax.experimental import pallas as pl
from jax.experimental.pallas import tpu as pltpu


def _round_up(v, m):
    return ((v + m - 1) // m) * m


# ----------------------------------------------------------------------------
# Mask construction (identical logic to GraphFlowModel.initialize_masks) — glue.
# ----------------------------------------------------------------------------
def initialize_masks(max_node_unroll, max_edge_unroll):
    num_masks = int(max_node_unroll + (max_edge_unroll - 1) * max_edge_unroll / 2
                    + (max_node_unroll - max_edge_unroll) * max_edge_unroll)
    num_mask_edge = int(num_masks - max_node_unroll)

    node_masks1 = np.zeros([max_node_unroll, max_node_unroll], dtype=np.float32)
    adj_masks1 = np.zeros([max_node_unroll, max_node_unroll, max_node_unroll], dtype=np.float32)
    node_masks2 = np.zeros([num_mask_edge, max_node_unroll], dtype=np.float32)
    adj_masks2 = np.zeros([num_mask_edge, max_node_unroll, max_node_unroll], dtype=np.float32)
    link_prediction_index = np.zeros([num_mask_edge, 2], dtype=np.int32)
    flow_core_edge_masks = np.zeros([max_node_unroll, max_node_unroll], dtype=bool)

    cnt = cnt_node = cnt_edge = 0
    for i in range(max_node_unroll):
        node_masks1[cnt_node][:i] = 1
        adj_masks1[cnt_node][:i, :i] = 1
        cnt += 1
        cnt_node += 1
        if i < max_edge_unroll:
            start, edge_total = 0, i
        else:
            start, edge_total = i - max_edge_unroll, max_edge_unroll
        for j in range(edge_total):
            if j == 0:
                node_masks2[cnt_edge][:i + 1] = 1
                adj_masks2[cnt_edge] = adj_masks1[cnt_node - 1].copy()
                adj_masks2[cnt_edge][i, i] = 1
            else:
                node_masks2[cnt_edge][:i + 1] = 1
                adj_masks2[cnt_edge] = adj_masks2[cnt_edge - 1].copy()
                adj_masks2[cnt_edge][i, start + j - 1] = 1
                adj_masks2[cnt_edge][start + j - 1, i] = 1
            cnt += 1
            cnt_edge += 1
    assert cnt == num_masks and cnt_node == max_node_unroll and cnt_edge == num_mask_edge

    cnt = 0
    for i in range(max_node_unroll):
        if i < max_edge_unroll:
            start, edge_total = 0, i
        else:
            start, edge_total = i - max_edge_unroll, max_edge_unroll
        for j in range(edge_total):
            link_prediction_index[cnt][0] = start + j
            link_prediction_index[cnt][1] = i
            cnt += 1
    assert cnt == num_mask_edge

    for i in range(max_node_unroll):
        if i == 0:
            continue
        if i < max_edge_unroll:
            start, end = 0, i
        else:
            start, end = i - max_edge_unroll, i
        flow_core_edge_masks[i][start:end] = 1

    node_masks = np.concatenate((node_masks1, node_masks2), axis=0)
    adj_masks = np.concatenate((adj_masks1, adj_masks2), axis=0)
    return node_masks, adj_masks, link_prediction_index, flow_core_edge_masks


def build_selection_matrix(num_steps, n, num_edge_steps, link_prediction_index):
    """Static 0/1 matrix mapping the flat (S*N, O) node embeddings to
    [node-step graph pooling | edge-step graph pooling | emb_a | emb_b] rows.
    Segment starts are aligned to 8 sublanes so in-kernel slices are aligned."""
    off1 = _round_up(n, 8)                                 # edge-step graph pooling
    off2 = off1 + _round_up(num_edge_steps, 8)             # emb_a
    off3 = off2 + _round_up(num_edge_steps, 8)             # emb_b
    rows = off3 + _round_up(num_edge_steps, 8)
    sel = np.zeros((rows, num_steps * n), np.float32)
    for s in range(n):                                     # node steps are 0..n-1
        sel[s, s * n:(s + 1) * n] = 1.0
    for e in range(num_edge_steps):
        s = n + e                                          # edge steps are n..S-1
        sel[off1 + e, s * n:(s + 1) * n] = 1.0
        sel[off2 + e, s * n + int(link_prediction_index[e, 0])] = 1.0
        sel[off3 + e, s * n + int(link_prediction_index[e, 1])] = 1.0
    return sel, (off1, off2, off3)


# ----------------------------------------------------------------------------
# Fused Pallas kernel: masked-RGCN conditioning + graph/link conditioning +
# node & edge sigmoid affine-coupling stacks, one batch element per program.
# ----------------------------------------------------------------------------
def graphflow_kernel(x_ref, adj_ref, xn_ref, xe_ref, amask_ref, sel_ref,
                     wemb_ref, wrel_ref,
                     nw1_ref, nb1_ref, nwst_ref, nbst_ref,
                     ew1_ref, eb1_ref, ewst_ref, ebst_ref,
                     out_n_ref, out_e_ref,
                     rhs_ref,
                     *, num_rel, num_layers, sel_offsets):
    n = x_ref.shape[1]
    s_steps = amask_ref.shape[0]
    o = wrel_ref.shape[-1]
    e_steps = out_e_ref.shape[1]
    dn = out_n_ref.shape[2] // 2
    de = out_e_ref.shape[2] // 2
    sn = s_steps * n
    off1, off2, off3 = sel_offsets

    # ---- masked R-GCN conditioning: single (S*N, ED*N) @ (ED*N, O) MXU pass ----
    x16 = x_ref[0].astype(jnp.bfloat16)                                   # (N, nd)
    h0 = jnp.dot(x16, wemb_ref[...], preferred_element_type=jnp.float32)  # (N, H)
    h0_16 = h0.astype(jnp.bfloat16)
    for r in range(num_rel):                                              # static, ED small
        rhs_ref[r * n:(r + 1) * n, :] = jnp.dot(
            h0_16, wrel_ref[r], preferred_element_type=jnp.float32)
    rhs16 = rhs_ref[...].astype(jnp.bfloat16)                             # (ED*N, O)

    masked = amask_ref[...] * adj_ref[0][None, :, :]                      # (S, N, ED*N) f32
    lhs16 = masked.reshape(sn, num_rel * n).astype(jnp.bfloat16)          # (S*N, ED*N)
    h = jnp.maximum(
        jnp.dot(lhs16, rhs16, preferred_element_type=jnp.float32), 0.0)   # (S*N, O)
    h16 = h.astype(jnp.bfloat16)

    # ---- graph pooling + link-node gathers via one static selection matmul ----
    cond_all = jnp.dot(sel_ref[...], h16, preferred_element_type=jnp.float32)
    node_cond = cond_all[0:n]                                             # (N, O)
    edge_g = cond_all[off1:off1 + e_steps]                                # (E, O)
    emb_a = cond_all[off2:off2 + e_steps]                                 # (E, O)
    emb_b = cond_all[off3:off3 + e_steps]                                 # (E, O)

    # ---- sigmoid affine coupling (static unroll over flow layers) ----
    def couple(x0, cond_parts, w1_r, b1_r, wst_r, bst_r, d):
        parts16 = [p.astype(jnp.bfloat16) for p in cond_parts]
        xc = x0
        ld = jnp.zeros_like(x0)
        for l in range(num_layers):
            w1_l = w1_r[l]                                                # (P*O, H) bf16
            acc = jnp.dot(parts16[0], w1_l[0:o, :],
                          preferred_element_type=jnp.float32)
            for pi in range(1, len(parts16)):                             # split-weight form
                acc = acc + jnp.dot(parts16[pi], w1_l[pi * o:(pi + 1) * o, :],
                                    preferred_element_type=jnp.float32)
            hid = jnp.tanh(acc + b1_r[l])                                 # (R, H)
            st = jnp.dot(hid.astype(jnp.bfloat16), wst_r[l],
                         preferred_element_type=jnp.float32) + bst_r[l]   # (R, 2D)
            sg = jax.nn.sigmoid(st[:, :d] + 2.0)
            t = st[:, d:]
            xc = (xc + t) * sg
            ld = ld + jnp.log(sg)                                         # sigmoid > 0
        return xc, ld

    zn, ldn = couple(xn_ref[0], [node_cond],
                     nw1_ref, nb1_ref, nwst_ref, nbst_ref, dn)
    ze, lde = couple(xe_ref[0], [edge_g, emb_a, emb_b],
                     ew1_ref, eb1_ref, ewst_ref, ebst_ref, de)

    out_n_ref[...] = jnp.concatenate([zn, ldn], axis=-1)[None]            # (1, N, 2*Dn)
    out_e_ref[...] = jnp.concatenate([ze, lde], axis=-1)[None]            # (1, E, 2*De)


# ----------------------------------------------------------------------------
# GraphFlowModel (forward pass only), parameters created deterministically.
# ----------------------------------------------------------------------------
class GraphFlowModelPallas:
    def __init__(self, max_size, node_dim, edge_dim, edge_unroll, args, key):
        self.max_size = max_size
        self.node_dim = node_dim
        self.edge_dim = edge_dim
        self.edge_unroll = edge_unroll
        self.args = args
        self.num_flow_layer = args["num_flow_layer"]
        self.nhid = args["nhid"]
        self.nout = args["nout"]
        self.deq_coeff = args["deq_coeff"]
        self.deq_type = args["deq_type"]

        (self.node_masks, self.adj_masks,
         self.link_prediction_index, self.flow_core_edge_masks) = initialize_masks(
            max_node_unroll=max_size, max_edge_unroll=edge_unroll)

        self.latent_step = self.node_masks.shape[0]
        self.latent_node_length = self.max_size * self.node_dim
        self.latent_edge_length = (self.latent_step - self.max_size) * self.edge_dim

        self.constant_pi = jnp.asarray([3.1415926535], jnp.float32)
        self.prior_ln_var = jnp.zeros((1,), jnp.float32)   # learn_prior False -> fixed 0

        S = self.latent_step
        N = self.max_size
        ED = self.edge_dim
        E = S - N

        # static step masks, tiled relation-major on columns: (S, N, ED*N)
        amask_tiled = np.tile(self.adj_masks[:, :, None, :], (1, 1, ED, 1)).reshape(S, N, ED * N)
        self.amask_tiled = jnp.asarray(amask_tiled, jnp.float32)

        # static selection matrix (graph pooling + link-node gathers), bf16 (exact 0/1)
        sel_np, self.sel_offsets = build_selection_matrix(S, N, E, self.link_prediction_index)
        self.sel = jnp.asarray(sel_np, jnp.bfloat16)

        self._edge_rows, self._edge_cols = np.nonzero(self.flow_core_edge_masks)
        assert len(self._edge_rows) == E

        # deterministic synthetic parameters (MXU weights stored bf16, biases f32)
        L, H, O = self.num_flow_layer, self.nhid, self.nout
        ks = jax.random.split(key, 10)
        scale = 0.1

        def w(k, shape):
            return (scale * jax.random.normal(k, shape, jnp.float32)).astype(jnp.bfloat16)

        self.w_emb = w(ks[0], (node_dim, H))                            # (nd, H)
        self.w_rel = w(ks[1], (edge_dim, H, O))                         # (ED, H, O)
        # node ST nets (s and t projections fused along the output dim)
        self.node_w1 = w(ks[2], (L, O, H))
        self.node_b1 = jnp.zeros((L, 1, H), jnp.float32)
        node_ws = w(ks[3], (L, H, node_dim))
        node_wt = w(ks[4], (L, H, node_dim))
        self.node_wst = jnp.concatenate([node_ws, node_wt], axis=-1)     # (L, H, 2*Dn) bf16
        self.node_bst = jnp.zeros((L, 1, 2 * node_dim), jnp.float32)
        # edge ST nets (conditioned on [graph_emb, emb(node_a), emb(node_b)])
        self.edge_w1 = w(ks[5], (L, 3 * O, H))
        self.edge_b1 = jnp.zeros((L, 1, H), jnp.float32)
        edge_ws = w(ks[6], (L, H, edge_dim))
        edge_wt = w(ks[7], (L, H, edge_dim))
        self.edge_wst = jnp.concatenate([edge_ws, edge_wt], axis=-1)     # (L, H, 2*De) bf16
        self.edge_bst = jnp.zeros((L, 1, 2 * edge_dim), jnp.float32)

    # ---- the single fused pallas_call ----
    def _fused_call(self, x, adj_folded, xn_deq, xe_deq):
        B, N, nd = x.shape
        ED = self.edge_dim
        S = self.latent_step
        E = S - self.max_size
        H, O, L = self.nhid, self.nout, self.num_flow_layer
        Dn, De = self.node_dim, self.edge_dim
        sel_rows = self.sel.shape[0]

        kernel = functools.partial(graphflow_kernel, num_rel=ED, num_layers=L,
                                   sel_offsets=self.sel_offsets)

        flops = B * (2 * N * nd * H + ED * 2 * N * H * O
                     + 2 * S * N * ED * N * O + 2 * sel_rows * S * N * O
                     + L * (2 * N * O * H + 4 * N * H * Dn)
                     + L * (6 * E * O * H + 4 * E * H * De))
        transcendentals = B * L * (N * (H + 2 * Dn) + E * (H + 2 * De))
        bytes_accessed = int(
            4 * (x.size + adj_folded.size + xn_deq.size + xe_deq.size
                 + self.amask_tiled.size
                 + self.node_b1.size + self.node_bst.size
                 + self.edge_b1.size + self.edge_bst.size
                 + B * N * 2 * Dn + B * E * 2 * De)
            + 2 * (self.sel.size + self.w_emb.size + self.w_rel.size
                   + self.node_w1.size + self.node_wst.size
                   + self.edge_w1.size + self.edge_wst.size))

        out_node, out_edge = pl.pallas_call(
            kernel,
            out_shape=(jax.ShapeDtypeStruct((B, N, 2 * Dn), jnp.float32),
                       jax.ShapeDtypeStruct((B, E, 2 * De), jnp.float32)),
            grid=(B,),
            in_specs=[
                pl.BlockSpec((1, N, nd), lambda b: (b, 0, 0)),            # x (discrete)
                pl.BlockSpec((1, N, ED * N), lambda b: (b, 0, 0)),        # adj, relation-major cols
                pl.BlockSpec((1, N, Dn), lambda b: (b, 0, 0)),            # dequantized node feats
                pl.BlockSpec((1, E, De), lambda b: (b, 0, 0)),            # dequantized edge feats
                pl.BlockSpec((S, N, ED * N), lambda b: (0, 0, 0)),        # tiled step masks
                pl.BlockSpec((sel_rows, S * N), lambda b: (0, 0)),        # selection matrix (bf16)
                pl.BlockSpec((nd, H), lambda b: (0, 0)),                  # w_emb (bf16)
                pl.BlockSpec((ED, H, O), lambda b: (0, 0, 0)),            # w_rel (bf16)
                pl.BlockSpec((L, O, H), lambda b: (0, 0, 0)),             # node w1 (bf16)
                pl.BlockSpec((L, 1, H), lambda b: (0, 0, 0)),             # node b1
                pl.BlockSpec((L, H, 2 * Dn), lambda b: (0, 0, 0)),        # node wst (bf16)
                pl.BlockSpec((L, 1, 2 * Dn), lambda b: (0, 0, 0)),        # node bst
                pl.BlockSpec((L, 3 * O, H), lambda b: (0, 0, 0)),         # edge w1 (bf16)
                pl.BlockSpec((L, 1, H), lambda b: (0, 0, 0)),             # edge b1
                pl.BlockSpec((L, H, 2 * De), lambda b: (0, 0, 0)),        # edge wst (bf16)
                pl.BlockSpec((L, 1, 2 * De), lambda b: (0, 0, 0)),        # edge bst
            ],
            out_specs=(pl.BlockSpec((1, N, 2 * Dn), lambda b: (b, 0, 0)),
                       pl.BlockSpec((1, E, 2 * De), lambda b: (b, 0, 0))),
            scratch_shapes=[pltpu.VMEM((ED * N, O), jnp.float32)],
            compiler_params=pltpu.CompilerParams(dimension_semantics=("parallel",)),
            cost_estimate=pl.CostEstimate(flops=flops, transcendentals=transcendentals,
                                          bytes_accessed=bytes_accessed),
        )(x, adj_folded, xn_deq, xe_deq, self.amask_tiled, self.sel,
          self.w_emb, self.w_rel,
          self.node_w1, self.node_b1, self.node_wst, self.node_bst,
          self.edge_w1, self.edge_b1, self.edge_wst, self.edge_bst)
        return out_node, out_edge

    def forward(self, inp_node_features, inp_adj_features, deq_key):
        assert self.deq_type == "random"
        B, N, _ = inp_node_features.shape
        ED = self.edge_dim
        E = self.latent_step - self.max_size

        # flow_core_edge_masks selection + permute(0, 2, 1)  (glue)
        adj_sel = inp_adj_features[:, :, self._edge_rows, self._edge_cols]   # (B, ED, E)
        inp_adj_cont = jnp.transpose(adj_sel, (0, 2, 1))                     # (B, E, ED)

        # random dequantization (glue)
        k1, k2 = jax.random.split(deq_key)
        inp_node_cont = inp_node_features + self.deq_coeff * jax.random.uniform(
            k1, inp_node_features.shape, jnp.float32)
        inp_adj_cont = inp_adj_cont + self.deq_coeff * jax.random.uniform(
            k2, inp_adj_cont.shape, jnp.float32)

        # adjacency with the relation axis folded into columns: (B, N, ED*N)
        adj_folded = jnp.transpose(inp_adj_features, (0, 2, 1, 3)).reshape(B, N, ED * N)

        # ---- fused flow core (single Pallas kernel) ----
        out_node, out_edge = self._fused_call(
            inp_node_features, adj_folded, inp_node_cont, inp_adj_cont)

        Dn, De = self.node_dim, self.edge_dim
        z_node = out_node[:, :, :Dn].reshape(B, N * Dn)
        z_edge = out_edge[:, :, :De].reshape(B, E * De)
        logdet_node = jnp.sum(out_node[:, :, Dn:], axis=(1, 2))
        logdet_edge = jnp.sum(out_edge[:, :, De:], axis=(1, 2))

        z = (z_node, z_edge)
        logdet = (logdet_node, logdet_edge)
        return z, logdet, self.prior_ln_var


if __name__ == "__main__":
    B, N, NODE_DIM, EDGE_DIM, EDGE_UNROLL = 2, 8, 8, 4, 4
    args = dict(num_flow_layer=2, nhid=16, nout=16,
                deq_coeff=0.9, deq_type="random", learn_prior=False)

    key = jax.random.PRNGKey(0)
    k_param, k_x, k_a, k_deq = jax.random.split(key, 4)

    model = GraphFlowModelPallas(N, NODE_DIM, EDGE_DIM, EDGE_UNROLL, args, k_param)

    # deterministic one-hot node / adjacency features (like the discrete graph inputs)
    node_cat = jax.random.randint(k_x, (B, N), 0, NODE_DIM)
    inp_node_features = jax.nn.one_hot(node_cat, NODE_DIM, dtype=jnp.float32)   # (B, N, NODE_DIM)
    edge_cat = jax.random.randint(k_a, (B, N, N), 0, EDGE_DIM)
    inp_adj_features = jnp.transpose(
        jax.nn.one_hot(edge_cat, EDGE_DIM, dtype=jnp.float32), (0, 3, 1, 2))    # (B, ED, N, N)

    z, logdet, prior_ln_var = model.forward(inp_node_features, inp_adj_features, k_deq)
    jax.block_until_ready(z)
    jax.block_until_ready(logdet)

    assert z[0].shape == (B, model.latent_node_length)
    assert z[1].shape == (B, model.latent_edge_length)
    assert logdet[0].shape == (B,) and logdet[1].shape == (B,)
    assert bool(jnp.all(jnp.isfinite(z[0]))) and bool(jnp.all(jnp.isfinite(z[1])))
    assert bool(jnp.all(jnp.isfinite(logdet[0]))) and bool(jnp.all(jnp.isfinite(logdet[1])))
    print("KERNEL_OK")
</pallas_src>

<mosaic_0001>
module attributes {stable_mosaic.version = 11 : i64} {
  func.func @graphflow_kernel(%arg0: i32, %arg1: memref<1x8x8xf32, #tpu.memory_space<vmem>>, %arg2: memref<1x8x32xf32, #tpu.memory_space<vmem>>, %arg3: memref<1x8x8xf32, #tpu.memory_space<vmem>>, %arg4: memref<1x22x4xf32, #tpu.memory_space<vmem>>, %arg5: memref<30x8x32xf32, #tpu.memory_space<vmem>>, %arg6: memref<80x240xbf16, #tpu.memory_space<vmem>>, %arg7: memref<8x16xbf16, #tpu.memory_space<vmem>>, %arg8: memref<4x16x16xbf16, #tpu.memory_space<vmem>>, %arg9: memref<2x16x16xbf16, #tpu.memory_space<vmem>>, %arg10: memref<2x1x16xf32, #tpu.memory_space<vmem>>, %arg11: memref<2x16x16xbf16, #tpu.memory_space<vmem>>, %arg12: memref<2x1x16xf32, #tpu.memory_space<vmem>>, %arg13: memref<2x48x16xbf16, #tpu.memory_space<vmem>>, %arg14: memref<2x1x16xf32, #tpu.memory_space<vmem>>, %arg15: memref<2x16x8xbf16, #tpu.memory_space<vmem>>, %arg16: memref<2x1x8xf32, #tpu.memory_space<vmem>>, %arg17: memref<1x8x16xf32, #tpu.memory_space<vmem>>, %arg18: memref<1x22x8xf32, #tpu.memory_space<vmem>>, %arg19: memref<32x16xf32, #tpu.memory_space<vmem>>) attributes {dimension_semantics = [#tpu.dimension_semantics<parallel>], iteration_bounds = array<i64: 2>, scalar_prefetch = 0 : i64, scratch_operands = 1 : i64, tpu.core_type = #tpu.core_type<tc>, window_params = [{transform_indices = @transform_0, window_bounds = array<i64: 1, 8, 8>}, {transform_indices = @transform_1, window_bounds = array<i64: 1, 8, 32>}, {transform_indices = @transform_2, window_bounds = array<i64: 1, 8, 8>}, {transform_indices = @transform_3, window_bounds = array<i64: 1, 22, 4>}, {pipeline_mode = #tpu.pipeline_mode<synchronous>, transform_indices = @transform_4, window_bounds = array<i64: 30, 8, 32>}, {pipeline_mode = #tpu.pipeline_mode<synchronous>, transform_indices = @transform_5, window_bounds = array<i64: 80, 240>}, {pipeline_mode = #tpu.pipeline_mode<synchronous>, transform_indices = @transform_6, window_bounds = array<i64: 8, 16>}, {pipeline_mode = #tpu.pipeline_mode<synchronous>, transform_indices = @transform_7, window_bounds = array<i64: 4, 16, 16>}, {pipeline_mode = #tpu.pipeline_mode<synchronous>, transform_indices = @transform_8, window_bounds = array<i64: 2, 16, 16>}, {pipeline_mode = #tpu.pipeline_mode<synchronous>, transform_indices = @transform_9, window_bounds = array<i64: 2, 1, 16>}, {pipeline_mode = #tpu.pipeline_mode<synchronous>, transform_indices = @transform_10, window_bounds = array<i64: 2, 16, 16>}, {pipeline_mode = #tpu.pipeline_mode<synchronous>, transform_indices = @transform_11, window_bounds = array<i64: 2, 1, 16>}, {pipeline_mode = #tpu.pipeline_mode<synchronous>, transform_indices = @transform_12, window_bounds = array<i64: 2, 48, 16>}, {pipeline_mode = #tpu.pipeline_mode<synchronous>, transform_indices = @transform_13, window_bounds = array<i64: 2, 1, 16>}, {pipeline_mode = #tpu.pipeline_mode<synchronous>, transform_indices = @transform_14, window_bounds = array<i64: 2, 16, 8>}, {pipeline_mode = #tpu.pipeline_mode<synchronous>, transform_indices = @transform_15, window_bounds = array<i64: 2, 1, 8>}, {transform_indices = @transform_16, window_bounds = array<i64: 1, 8, 16>}, {transform_indices = @transform_17, window_bounds = array<i64: 1, 22, 8>}]} {
    %c0 = arith.constant 0 : index
    %c0_0 = arith.constant 0 : index
    %c0_1 = arith.constant 0 : index
    %0 = vector.load %arg1[%c0, %c0_0, %c0_1] : memref<1x8x8xf32, #tpu.memory_space<vmem>>, vector<1x8x8xf32>
    %1 = vector.shape_cast %0 : vector<1x8x8xf32> to vector<8x8xf32>
    %2 = arith.truncf %1 : vector<8x8xf32> to vector<8x8xbf16>
    %c0_2 = arith.constant 0 : index
    %c0_3 = arith.constant 0 : index
    %3 = vector.load %arg7[%c0_2, %c0_3] : memref<8x16xbf16, #tpu.memory_space<vmem>>, vector<8x16xbf16>
    %cst = arith.constant dense<0.000000e+00> : vector<8x16xf32>
    %4 = tpu.matmul %2, %3, %cst {dimension_numbers = #tpu.dot_dimension_numbers<[1], [0], [0], [1], [0, 0, 1, 1], [], []>} : vector<8x8xbf16>, vector<8x16xbf16>, vector<8x16xf32> -> vector<8x16xf32>
    %5 = arith.truncf %4 : vector<8x16xf32> to vector<8x16xbf16>
    %c0_4 = arith.constant 0 : index
    %c0_5 = arith.constant 0 : index
    %c0_6 = arith.constant 0 : index
    %6 = vector.load %arg8[%c0_4, %c0_5, %c0_6] : memref<4x16x16xbf16, #tpu.memory_space<vmem>>, vector<1x16x16xbf16>
    %7 = vector.shape_cast %6 : vector<1x16x16xbf16> to vector<16x16xbf16>
    %cst_7 = arith.constant dense<0.000000e+00> : vector<8x16xf32>
    %8 = tpu.matmul %5, %7, %cst_7 {dimension_numbers = #tpu.dot_dimension_numbers<[1], [0], [0], [1], [0, 0, 1, 1], [], []>} : vector<8x16xbf16>, vector<16x16xbf16>, vector<8x16xf32> -> vector<8x16xf32>
    %c0_8 = arith.constant 0 : index
    %c0_9 = arith.constant 0 : index
    %9 = vector.load %arg19[%c0_8, %c0_9] : memref<32x16xf32, #tpu.memory_space<vmem>>, vector<8x16xf32>
    tpu.vector_store %arg19[%c0_8, %c0_9], %8 {strides = array<i32>} : memref<32x16xf32, #tpu.memory_space<vmem>>, vector<8x16xf32>,
    %c1 = arith.constant 1 : index
    %c0_10 = arith.constant 0 : index
    %c0_11 = arith.constant 0 : index
    %10 = vector.load %arg8[%c1, %c0_10, %c0_11] : memref<4x16x16xbf16, #tpu.memory_space<vmem>>, vector<1x16x16xbf16>
    %11 = vector.shape_cast %10 : vector<1x16x16xbf16> to vector<16x16xbf16>
    %cst_12 = arith.constant dense<0.000000e+00> : vector<8x16xf32>
    %12 = tpu.matmul %5, %11, %cst_12 {dimension_numbers = #tpu.dot_dimension_numbers<[1], [0], [0], [1], [0, 0, 1, 1], [], []>} : vector<8x16xbf16>, vector<16x16xbf16>, vector<8x16xf32> -> vector<8x16xf32>
    %c8 = arith.constant 8 : index
    %c0_13 = arith.constant 0 : index
    %13 = vector.load %arg19[%c8, %c0_13] : memref<32x16xf32, #tpu.memory_space<vmem>>, vector<8x16xf32>
    tpu.vector_store %arg19[%c8, %c0_13], %12 {strides = array<i32>} : memref<32x16xf32, #tpu.memory_space<vmem>>, vector<8x16xf32>,
    %c2 = arith.constant 2 : index
    %c0_14 = arith.constant 0 : index
    %c0_15 = arith.constant 0 : index
    %14 = vector.load %arg8[%c2, %c0_14, %c0_15] : memref<4x16x16xbf16, #tpu.memory_space<vmem>>, vector<1x16x16xbf16>
    %15 = vector.shape_cast %14 : vector<1x16x16xbf16> to vector<16x16xbf16>
    %cst_16 = arith.constant dense<0.000000e+00> : vector<8x16xf32>
    %16 = tpu.matmul %5, %15, %cst_16 {dimension_numbers = #tpu.dot_dimension_numbers<[1], [0], [0], [1], [0, 0, 1, 1], [], []>} : vector<8x16xbf16>, vector<16x16xbf16>, vector<8x16xf32> -> vector<8x16xf32>
    %c16 = arith.constant 16 : index
    %c0_17 = arith.constant 0 : index
    %17 = vector.load %arg19[%c16, %c0_17] : memref<32x16xf32, #tpu.memory_space<vmem>>, vector<8x16xf32>
    tpu.vector_store %arg19[%c16, %c0_17], %16 {strides = array<i32>} : memref<32x16xf32, #tpu.memory_space<vmem>>, vector<8x16xf32>,
    %c3 = arith.constant 3 : index
    %c0_18 = arith.constant 0 : index
    %c0_19 = arith.constant 0 : index
    %18 = vector.load %arg8[%c3, %c0_18, %c0_19] : memref<4x16x16xbf16, #tpu.memory_space<vmem>>, vector<1x16x16xbf16>
    %19 = vector.shape_cast %18 : vector<1x16x16xbf16> to vector<16x16xbf16>
    %cst_20 = arith.constant dense<0.000000e+00> : vector<8x16xf32>
    %20 = tpu.matmul %5, %19, %cst_20 {dimension_numbers = #tpu.dot_dimension_numbers<[1], [0], [0], [1], [0, 0, 1, 1], [], []>} : vector<8x16xbf16>, vector<16x16xbf16>, vector<8x16xf32> -> vector<8x16xf32>
    %c24 = arith.constant 24 : index
    %c0_21 = arith.constant 0 : index
    %21 = vector.load %arg19[%c24, %c0_21] : memref<32x16xf32, #tpu.memory_space<vmem>>, vector<8x16xf32>
    tpu.vector_store %arg19[%c24, %c0_21], %20 {strides = array<i32>} : memref<32x16xf32, #tpu.memory_space<vmem>>, vector<8x16xf32>,
    %c0_22 = arith.constant 0 : index
    %c0_23 = arith.constant 0 : index
    %22 = vector.load %arg19[%c0_22, %c0_23] : memref<32x16xf32, #tpu.memory_space<vmem>>, vector<32x16xf32>
    %23 = arith.truncf %22 : vector<32x16xf32> to vector<32x16xbf16>
    %c0_24 = arith.constant 0 : index
    %c0_25 = arith.constant 0 : index
    %c0_26 = arith.constant 0 : index
    %24 = vector.load %arg5[%c0_24, %c0_25, %c0_26] : memref<30x8x32xf32, #tpu.memory_space<vmem>>, vector<30x8x32xf32>
    %c0_27 = arith.constant 0 : index
    %c0_28 = arith.constant 0 : index
    %c0_29 = arith.constant 0 : index
    %25 = vector.load %arg2[%c0_27, %c0_28, %c0_29] : memref<1x8x32xf32, #tpu.memory_space<vmem>>, vector<1x8x32xf32>
    %26 = vector.shape_cast %25 : vector<1x8x32xf32> to vector<8x32xf32>
    %27 = vector.shape_cast %26 : vector<8x32xf32> to vector<1x8x32xf32>
    %28 = vector.broadcast %27 : vector<1x8x32xf32> to vector<30x8x32xf32>
    %29 = arith.mulf %24, %28 : vector<30x8x32xf32>
    %30 = vector.shape_cast %29 : vector<30x8x32xf32> to vector<240x32xf32>
    %31 = arith.truncf %30 : vector<240x32xf32> to vector<240x32xbf16>
    %cst_30 = arith.constant dense<0.000000e+00> : vector<240x16xf32>
    %32 = tpu.matmul %31, %23, %cst_30 {dimension_numbers = #tpu.dot_dimension_numbers<[1], [0], [0], [1], [0, 0, 1, 1], [], []>} : vector<240x32xbf16>, vector<32x16xbf16>, vector<240x16xf32> -> vector<240x16xf32>
    %cst_31 = arith.constant 0.000000e+00 : f32
    %33 = vector.broadcast %cst_31 : f32 to vector<240x16xf32>
    %34 = arith.maximumf %32, %33 : vector<240x16xf32>
    %35 = arith.truncf %34 : vector<240x16xf32> to vector<240x16xbf16>
    %c0_32 = arith.constant 0 : index
    %c0_33 = arith.constant 0 : index
    %36 = vector.load %arg6[%c0_32, %c0_33] : memref<80x240xbf16, #tpu.memory_space<vmem>>, vector<80x240xbf16>
    %cst_34 = arith.constant dense<0.000000e+00> : vector<80x16xf32>
    %37 = tpu.matmul %36, %35, %cst_34 {dimension_numbers = #tpu.dot_dimension_numbers<[1], [0], [0], [1], [0, 0, 1, 1], [], []>} : vector<80x240xbf16>, vector<240x16xbf16>, vector<80x16xf32> -> vector<80x16xf32>
    %38 = vector.extract_strided_slice %37 {offsets = [0, 0], sizes = [8, 16], strides = [1, 1]} : vector<80x16xf32> to vector<8x16xf32>
    %39 = vector.extract_strided_slice %37 {offsets = [8, 0], sizes = [22, 16], strides = [1, 1]} : vector<80x16xf32> to vector<22x16xf32>
    %40 = vector.extract_strided_slice %37 {offsets = [32, 0], sizes = [22, 16], strides = [1, 1]} : vector<80x16xf32> to vector<22x16xf32>
    %41 = vector.extract_strided_slice %37 {offsets = [56, 0], sizes = [22, 16], strides = [1, 1]} : vector<80x16xf32> to vector<22x16xf32>
    %c0_35 = arith.constant 0 : index
    %c0_36 = arith.constant 0 : index
    %c0_37 = arith.constant 0 : index
    %42 = vector.load %arg3[%c0_35, %c0_36, %c0_37] : memref<1x8x8xf32, #tpu.memory_space<vmem>>, vector<1x8x8xf32>
    %43 = vector.shape_cast %42 : vector<1x8x8xf32> to vector<8x8xf32>
    %44 = arith.truncf %38 : vector<8x16xf32> to vector<8x16xbf16>
    %cst_38 = arith.constant 0.000000e+00 : f32
    %45 = vector.broadcast %cst_38 : f32 to vector<8x8xf32>
    %c0_39 = arith.constant 0 : index
    %c0_40 = arith.constant 0 : index
    %c0_41 = arith.constant 0 : index
    %46 = vector.load %arg9[%c0_39, %c0_40, %c0_41] : memref<2x16x16xbf16, #tpu.memory_space<vmem>>, vector<1x16x16xbf16>
    %47 = vector.shape_cast %46 : vector<1x16x16xbf16> to vector<16x16xbf16>
    %cst_42 = arith.constant dense<0.000000e+00> : vector<8x16xf32>
    %48 = tpu.matmul %44, %47, %cst_42 {dimension_numbers = #tpu.dot_dimension_numbers<[1], [0], [0], [1], [0, 0, 1, 1], [], []>} : vector<8x16xbf16>, vector<16x16xbf16>, vector<8x16xf32> -> vector<8x16xf32>
    %c0_43 = arith.constant 0 : index
    %c0_44 = arith.constant 0 : index
    %c0_45 = arith.constant 0 : index
    %49 = vector.load %arg10[%c0_43, %c0_44, %c0_45] : memref<2x1x16xf32, #tpu.memory_space<vmem>>, vector<1x1x16xf32>
    %50 = vector.shape_cast %49 : vector<1x1x16xf32> to vector<1x16xf32>
    %51 = vector.broadcast %50 : vector<1x16xf32> to vector<8x16xf32>
    %52 = arith.addf %48, %51 : vector<8x16xf32>
    %53 = math.tanh %52 : vector<8x16xf32>
    %54 = arith.truncf %53 : vector<8x16xf32> to vector<8x16xbf16>
    %c0_46 = arith.constant 0 : index
    %c0_47 = arith.constant 0 : index
    %c0_48 = arith.constant 0 : index
    %55 = vector.load %arg11[%c0_46, %c0_47, %c0_48] : memref<2x16x16xbf16, #tpu.memory_space<vmem>>, vector<1x16x16xbf16>
    %56 = vector.shape_cast %55 : vector<1x16x16xbf16> to vector<16x16xbf16>
    %cst_49 = arith.constant dense<0.000000e+00> : vector<8x16xf32>
    %57 = tpu.matmul %54, %56, %cst_49 {dimension_numbers = #tpu.dot_dimension_numbers<[1], [0], [0], [1], [0, 0, 1, 1], [], []>} : vector<8x16xbf16>, vector<16x16xbf16>, vector<8x16xf32> -> vector<8x16xf32>
    %c0_50 = arith.constant 0 : index
    %c0_51 = arith.constant 0 : index
    %c0_52 = arith.constant 0 : index
    %58 = vector.load %arg12[%c0_50, %c0_51, %c0_52] : memref<2x1x16xf32, #tpu.memory_space<vmem>>, vector<1x1x16xf32>
    %59 = vector.shape_cast %58 : vector<1x1x16xf32> to vector<1x16xf32>
    %60 = vector.broadcast %59 : vector<1x16xf32> to vector<8x16xf32>
    %61 = arith.addf %57, %60 : vector<8x16xf32>
    %62 = vector.extract_strided_slice %61 {offsets = [0, 0], sizes = [8, 8], strides = [1, 1]} : vector<8x16xf32> to vector<8x8xf32>
    %cst_53 = arith.constant 2.000000e+00 : f32
    %63 = vector.broadcast %cst_53 : f32 to vector<8x8xf32>
    %64 = arith.addf %62, %63 : vector<8x8xf32>
    %65 = arith.negf %64 : vector<8x8xf32>
    %66 = math.exp %65 : vector<8x8xf32>
    %cst_54 = arith.constant 1.000000e+00 : f32
    %67 = vector.broadcast %cst_54 : f32 to vector<8x8xf32>
    %68 = arith.addf %67, %66 : vector<8x8xf32>
    %69 = arith.divf %67, %68 : vector<8x8xf32>
    %70 = vector.extract_strided_slice %61 {offsets = [0, 8], sizes = [8, 8], strides = [1, 1]} : vector<8x16xf32> to vector<8x8xf32>
    %71 = arith.addf %43, %70 : vector<8x8xf32>
    %72 = arith.mulf %71, %69 : vector<8x8xf32>
    %73 = math.log %69 : vector<8x8xf32>
    %74 = arith.addf %45, %73 : vector<8x8xf32>
    %c1_55 = arith.constant 1 : index
    %c0_56 = arith.constant 0 : index
    %c0_57 = arith.constant 0 : index
    %75 = vector.load %arg9[%c1_55, %c0_56, %c0_57] : memref<2x16x16xbf16, #tpu.memory_space<vmem>>, vector<1x16x16xbf16>
    %76 = vector.shape_cast %75 : vector<1x16x16xbf16> to vector<16x16xbf16>
    %cst_58 = arith.constant dense<0.000000e+00> : vector<8x16xf32>
    %77 = tpu.matmul %44, %76, %cst_58 {dimension_numbers = #tpu.dot_dimension_numbers<[1], [0], [0], [1], [0, 0, 1, 1], [], []>} : vector<8x16xbf16>, vector<16x16xbf16>, vector<8x16xf32> -> vector<8x16xf32>
    %c1_59 = arith.constant 1 : index
    %c0_60 = arith.constant 0 : index
    %c0_61 = arith.constant 0 : index
    %78 = vector.load %arg10[%c1_59, %c0_60, %c0_61] : memref<2x1x16xf32, #tpu.memory_space<vmem>>, vector<1x1x16xf32>
    %79 = vector.shape_cast %78 : vector<1x1x16xf32> to vector<1x16xf32>
    %80 = vector.broadcast %79 : vector<1x16xf32> to vector<8x16xf32>
    %81 = arith.addf %77, %80 : vector<8x16xf32>
    %82 = math.tanh %81 : vector<8x16xf32>
    %83 = arith.truncf %82 : vector<8x16xf32> to vector<8x16xbf16>
    %c1_62 = arith.constant 1 : index
    %c0_63 = arith.constant 0 : index
    %c0_64 = arith.constant 0 : index
    %84 = vector.load %arg11[%c1_62, %c0_63, %c0_64] : memref<2x16x16xbf16, #tpu.memory_space<vmem>>, vector<1x16x16xbf16>
    %85 = vector.shape_cast %84 : vector<1x16x16xbf16> to vector<16x16xbf16>
    %cst_65 = arith.constant dense<0.000000e+00> : vector<8x16xf32>
    %86 = tpu.matmul %83, %85, %cst_65 {dimension_numbers = #tpu.dot_dimension_numbers<[1], [0], [0], [1], [0, 0, 1, 1], [], []>} : vector<8x16xbf16>, vector<16x16xbf16>, vector<8x16xf32> -> vector<8x16xf32>
    %c1_66 = arith.constant 1 : index
    %c0_67 = arith.constant 0 : index
    %c0_68 = arith.constant 0 : index
    %87 = vector.load %arg12[%c1_66, %c0_67, %c0_68] : memref<2x1x16xf32, #tpu.memory_space<vmem>>, vector<1x1x16xf32>
    %88 = vector.shape_cast %87 : vector<1x1x16xf32> to vector<1x16xf32>
    %89 = vector.broadcast %88 : vector<1x16xf32> to vector<8x16xf32>
    %90 = arith.addf %86, %89 : vector<8x16xf32>
    %91 = vector.extract_strided_slice %90 {offsets = [0, 0], sizes = [8, 8], strides = [1, 1]} : vector<8x16xf32> to vector<8x8xf32>
    %cst_69 = arith.constant 2.000000e+00 : f32
    %92 = vector.broadcast %cst_69 : f32 to vector<8x8xf32>
    %93 = arith.addf %91, %92 : vector<8x8xf32>
    %94 = arith.negf %93 : vector<8x8xf32>
    %95 = math.exp %94 : vector<8x8xf32>
    %cst_70 = arith.constant 1.000000e+00 : f32
    %96 = vector.broadcast %cst_70 : f32 to vector<8x8xf32>
    %97 = arith.addf %96, %95 : vector<8x8xf32>
    %98 = arith.divf %96, %97 : vector<8x8xf32>
    %99 = vector.extract_strided_slice %90 {offsets = [0, 8], sizes = [8, 8], strides = [1, 1]} : vector<8x16xf32> to vector<8x8xf32>
    %100 = arith.addf %72, %99 : vector<8x8xf32>
    %101 = arith.mulf %100, %98 : vector<8x8xf32>
    %102 = math.log %98 : vector<8x8xf32>
    %103 = arith.addf %74, %102 : vector<8x8xf32>
    %c0_71 = arith.constant 0 : index
    %c0_72 = arith.constant 0 : index
    %c0_73 = arith.constant 0 : index
    %104 = vector.load %arg4[%c0_71, %c0_72, %c0_73] : memref<1x22x4xf32, #tpu.memory_space<vmem>>, vector<1x22x4xf32>
    %105 = vector.shape_cast %104 : vector<1x22x4xf32> to vector<22x4xf32>
    %106 = arith.truncf %39 : vector<22x16xf32> to vector<22x16xbf16>
    %107 = arith.truncf %40 : vector<22x16xf32> to vector<22x16xbf16>
    %108 = arith.truncf %41 : vector<22x16xf32> to vector<22x16xbf16>
    %cst_74 = arith.constant 0.000000e+00 : f32
    %109 = vector.broadcast %cst_74 : f32 to vector<22x4xf32>
    %c0_75 = arith.constant 0 : index
    %c0_76 = arith.constant 0 : index
    %c0_77 = arith.constant 0 : index
    %110 = vector.load %arg13[%c0_75, %c0_76, %c0_77] : memref<2x48x16xbf16, #tpu.memory_space<vmem>>, vector<1x48x16xbf16>
    %111 = vector.shape_cast %110 : vector<1x48x16xbf16> to vector<48x16xbf16>
    %112 = vector.extract_strided_slice %111 {offsets = [0, 0], sizes = [16, 16], strides = [1, 1]} : vector<48x16xbf16> to vector<16x16xbf16>
    %cst_78 = arith.constant dense<0.000000e+00> : vector<22x16xf32>
    %113 = tpu.matmul %106, %112, %cst_78 {dimension_numbers = #tpu.dot_dimension_numbers<[1], [0], [0], [1], [0, 0, 1, 1], [], []>} : vector<22x16xbf16>, vector<16x16xbf16>, vector<22x16xf32> -> vector<22x16xf32>
    %114 = vector.extract_strided_slice %111 {offsets = [16, 0], sizes = [16, 16], strides = [1, 1]} : vector<48x16xbf16> to vector<16x16xbf16>
    %cst_79 = arith.constant dense<0.000000e+00> : vector<22x16xf32>
    %115 = tpu.matmul %107, %114, %cst_79 {dimension_numbers = #tpu.dot_dimension_numbers<[1], [0], [0], [1], [0, 0, 1, 1], [], []>} : vector<22x16xbf16>, vector<16x16xbf16>, vector<22x16xf32> -> vector<22x16xf32>
    %116 = arith.addf %113, %115 : vector<22x16xf32>
    %117 = vector.extract_strided_slice %111 {offsets = [32, 0], sizes = [16, 16], strides = [1, 1]} : vector<48x16xbf16> to vector<16x16xbf16>
    %cst_80 = arith.constant dense<0.000000e+00> : vector<22x16xf32>
    %118 = tpu.matmul %108, %117, %cst_80 {dimension_numbers = #tpu.dot_dimension_numbers<[1], [0], [0], [1], [0, 0, 1, 1], [], []>} : vector<22x16xbf16>, vector<16x16xbf16>, vector<22x16xf32> -> vector<22x16xf32>
    %119 = arith.addf %116, %118 : vector<22x16xf32>
    %c0_81 = arith.constant 0 : index
    %c0_82 = arith.constant 0 : index
    %c0_83 = arith.constant 0 : index
    %120 = vector.load %arg14[%c0_81, %c0_82, %c0_83] : memref<2x1x16xf32, #tpu.memory_space<vmem>>, vector<1x1x16xf32>
    %121 = vector.shape_cast %120 : vector<1x1x16xf32> to vector<1x16xf32>
    %122 = vector.broadcast %121 : vector<1x16xf32> to vector<22x16xf32>
    %123 = arith.addf %119, %122 : vector<22x16xf32>
    %124 = math.tanh %123 : vector<22x16xf32>
    %125 = arith.truncf %124 : vector<22x16xf32> to vector<22x16xbf16>
    %c0_84 = arith.constant 0 : index
    %c0_85 = arith.constant 0 : index
    %c0_86 = arith.constant 0 : index
    %126 = vector.load %arg15[%c0_84, %c0_85, %c0_86] : memref<2x16x8xbf16, #tpu.memory_space<vmem>>, vector<1x16x8xbf16>
    %127 = vector.shape_cast %126 : vector<1x16x8xbf16> to vector<16x8xbf16>
    %cst_87 = arith.constant dense<0.000000e+00> : vector<22x8xf32>
    %128 = tpu.matmul %125, %127, %cst_87 {dimension_numbers = #tpu.dot_dimension_numbers<[1], [0], [0], [1], [0, 0, 1, 1], [], []>} : vector<22x16xbf16>, vector<16x8xbf16>, vector<22x8xf32> -> vector<22x8xf32>
    %c0_88 = arith.constant 0 : index
    %c0_89 = arith.constant 0 : index
    %c0_90 = arith.constant 0 : index
    %129 = vector.load %arg16[%c0_88, %c0_89, %c0_90] : memref<2x1x8xf32, #tpu.memory_space<vmem>>, vector<1x1x8xf32>
    %130 = vector.shape_cast %129 : vector<1x1x8xf32> to vector<1x8xf32>
    %131 = vector.broadcast %130 : vector<1x8xf32> to vector<22x8xf32>
    %132 = arith.addf %128, %131 : vector<22x8xf32>
    %133 = vector.extract_strided_slice %132 {offsets = [0, 0], sizes = [22, 4], strides = [1, 1]} : vector<22x8xf32> to vector<22x4xf32>
    %cst_91 = arith.constant 2.000000e+00 : f32
    %134 = vector.broadcast %cst_91 : f32 to vector<22x4xf32>
    %135 = arith.addf %133, %134 : vector<22x4xf32>
    %136 = arith.negf %135 : vector<22x4xf32>
    %137 = math.exp %136 : vector<22x4xf32>
    %cst_92 = arith.constant 1.000000e+00 : f32
    %138 = vector.broadcast %cst_92 : f32 to vector<22x4xf32>
    %139 = arith.addf %138, %137 : vector<22x4xf32>
    %140 = arith.divf %138, %139 : vector<22x4xf32>
    %141 = vector.extract_strided_slice %132 {offsets = [0, 4], sizes = [22, 4], strides = [1, 1]} : vector<22x8xf32> to vector<22x4xf32>
    %142 = arith.addf %105, %141 : vector<22x4xf32>
    %143 = arith.mulf %142, %140 : vector<22x4xf32>
    %144 = math.log %140 : vector<22x4xf32>
    %145 = arith.addf %109, %144 : vector<22x4xf32>
    %c1_93 = arith.constant 1 : index
    %c0_94 = arith.constant 0 : index
    %c0_95 = arith.constant 0 : index
    %146 = vector.load %arg13[%c1_93, %c0_94, %c0_95] : memref<2x48x16xbf16, #tpu.memory_space<vmem>>, vector<1x48x16xbf16>
    %147 = vector.shape_cast %146 : vector<1x48x16xbf16> to vector<48x16xbf16>
    %148 = vector.extract_strided_slice %147 {offsets = [0, 0], sizes = [16, 16], strides = [1, 1]} : vector<48x16xbf16> to vector<16x16xbf16>
    %cst_96 = arith.constant dense<0.000000e+00> : vector<22x16xf32>
    %149 = tpu.matmul %106, %148, %cst_96 {dimension_numbers = #tpu.dot_dimension_numbers<[1], [0], [0], [1], [0, 0, 1, 1], [], []>} : vector<22x16xbf16>, vector<16x16xbf16>, vector<22x16xf32> -> vector<22x16xf32>
    %150 = vector.extract_strided_slice %147 {offsets = [16, 0], sizes = [16, 16], strides = [1, 1]} : vector<48x16xbf16> to vector<16x16xbf16>
    %cst_97 = arith.constant dense<0.000000e+00> : vector<22x16xf32>
    %151 = tpu.matmul %107, %150, %cst_97 {dimension_numbers = #tpu.dot_dimension_numbers<[1], [0], [0], [1], [0, 0, 1, 1], [], []>} : vector<22x16xbf16>, vector<16x16xbf16>, vector<22x16xf32> -> vector<22x16xf32>
    %152 = arith.addf %149, %151 : vector<22x16xf32>
    %153 = vector.extract_strided_slice %147 {offsets = [32, 0], sizes = [16, 16], strides = [1, 1]} : vector<48x16xbf16> to vector<16x16xbf16>
    %cst_98 = arith.constant dense<0.000000e+00> : vector<22x16xf32>
    %154 = tpu.matmul %108, %153, %cst_98 {dimension_numbers = #tpu.dot_dimension_numbers<[1], [0], [0], [1], [0, 0, 1, 1], [], []>} : vector<22x16xbf16>, vector<16x16xbf16>, vector<22x16xf32> -> vector<22x16xf32>
    %155 = arith.addf %152, %154 : vector<22x16xf32>
    %c1_99 = arith.constant 1 : index
    %c0_100 = arith.constant 0 : index
    %c0_101 = arith.constant 0 : index
    %156 = vector.load %arg14[%c1_99, %c0_100, %c0_101] : memref<2x1x16xf32, #tpu.memory_space<vmem>>, vector<1x1x16xf32>
    %157 = vector.shape_cast %156 : vector<1x1x16xf32> to vector<1x16xf32>
    %158 = vector.broadcast %157 : vector<1x16xf32> to vector<22x16xf32>
    %159 = arith.addf %155, %158 : vector<22x16xf32>
    %160 = math.tanh %159 : vector<22x16xf32>
    %161 = arith.truncf %160 : vector<22x16xf32> to vector<22x16xbf16>
    %c1_102 = arith.constant 1 : index
    %c0_103 = arith.constant 0 : index
    %c0_104 = arith.constant 0 : index
    %162 = vector.load %arg15[%c1_102, %c0_103, %c0_104] : memref<2x16x8xbf16, #tpu.memory_space<vmem>>, vector<1x16x8xbf16>
    %163 = vector.shape_cast %162 : vector<1x16x8xbf16> to vector<16x8xbf16>
    %cst_105 = arith.constant dense<0.000000e+00> : vector<22x8xf32>
    %164 = tpu.matmul %161, %163, %cst_105 {dimension_numbers = #tpu.dot_dimension_numbers<[1], [0], [0], [1], [0, 0, 1, 1], [], []>} : vector<22x16xbf16>, vector<16x8xbf16>, vector<22x8xf32> -> vector<22x8xf32>
    %c1_106 = arith.constant 1 : index
    %c0_107 = arith.constant 0 : index
    %c0_108 = arith.constant 0 : index
    %165 = vector.load %arg16[%c1_106, %c0_107, %c0_108] : memref<2x1x8xf32, #tpu.memory_space<vmem>>, vector<1x1x8xf32>
    %166 = vector.shape_cast %165 : vector<1x1x8xf32> to vector<1x8xf32>
    %167 = vector.broadcast %166 : vector<1x8xf32> to vector<22x8xf32>
    %168 = arith.addf %164, %167 : vector<22x8xf32>
    %169 = vector.extract_strided_slice %168 {offsets = [0, 0], sizes = [22, 4], strides = [1, 1]} : vector<22x8xf32> to vector<22x4xf32>
    %cst_109 = arith.constant 2.000000e+00 : f32
    %170 = vector.broadcast %cst_109 : f32 to vector<22x4xf32>
    %171 = arith.addf %169, %170 : vector<22x4xf32>
    %172 = arith.negf %171 : vector<22x4xf32>
    %173 = math.exp %172 : vector<22x4xf32>
    %cst_110 = arith.constant 1.000000e+00 : f32
    %174 = vector.broadcast %cst_110 : f32 to vector<22x4xf32>
    %175 = arith.addf %174, %173 : vector<22x4xf32>
    %176 = arith.divf %174, %175 : vector<22x4xf32>
    %177 = vector.extract_strided_slice %168 {offsets = [0, 4], sizes = [22, 4], strides = [1, 1]} : vector<22x8xf32> to vector<22x4xf32>
    %178 = arith.addf %143, %177 : vector<22x4xf32>
    %179 = arith.mulf %178, %176 : vector<22x4xf32>
    %180 = math.log %176 : vector<22x4xf32>
    %181 = arith.addf %145, %180 : vector<22x4xf32>
    %182 = tpu.concatenate %101, %103 in 1 : vector<8x8xf32>, vector<8x8xf32> -> vector<8x16xf32>
    %183 = vector.shape_cast %182 : vector<8x16xf32> to vector<1x8x16xf32>
    %c0_111 = arith.constant 0 : index
    %c0_112 = arith.constant 0 : index
    %c0_113 = arith.constant 0 : index
    %184 = vector.load %arg17[%c0_111, %c0_112, %c0_113] : memref<1x8x16xf32, #tpu.memory_space<vmem>>, vector<1x8x16xf32>
    tpu.vector_store %arg17[%c0_111, %c0_112, %c0_113], %183 {strides = array<i32>} : memref<1x8x16xf32, #tpu.memory_space<vmem>>, vector<1x8x16xf32>,
    %185 = tpu.concatenate %179, %181 in 1 : vector<22x4xf32>, vector<22x4xf32> -> vector<22x8xf32>
    %186 = vector.shape_cast %185 : vector<22x8xf32> to vector<1x22x8xf32>
    %c0_114 = arith.constant 0 : index
    %c0_115 = arith.constant 0 : index
    %c0_116 = arith.constant 0 : index
    %187 = vector.load %arg18[%c0_114, %c0_115, %c0_116] : memref<1x22x8xf32, #tpu.memory_space<vmem>>, vector<1x22x8xf32>
    tpu.vector_store %arg18[%c0_114, %c0_115, %c0_116], %186 {strides = array<i32>} : memref<1x22x8xf32, #tpu.memory_space<vmem>>, vector<1x22x8xf32>,
    return
  }
  func.func @transform_0(%arg0: i32) -> (i32, i32, i32) {
    %c0_i32 = arith.constant 0 : i32
    %c0_i32_0 = arith.constant 0 : i32
    %c0_i32_1 = arith.constant 0 : i32
    return %arg0, %c0_i32, %c0_i32_0 : i32, i32, i32
  }
  func.func @transform_1(%arg0: i32) -> (i32, i32, i32) {
    %c0_i32 = arith.constant 0 : i32
    %c0_i32_0 = arith.constant 0 : i32
    %c0_i32_1 = arith.constant 0 : i32
    return %arg0, %c0_i32, %c0_i32_0 : i32, i32, i32
  }
  func.func @transform_2(%arg0: i32) -> (i32, i32, i32) {
    %c0_i32 = arith.constant 0 : i32
    %c0_i32_0 = arith.constant 0 : i32
    %c0_i32_1 = arith.constant 0 : i32
    return %arg0, %c0_i32, %c0_i32_0 : i32, i32, i32
  }
  func.func @transform_3(%arg0: i32) -> (i32, i32, i32) {
    %c0_i32 = arith.constant 0 : i32
    %c0_i32_0 = arith.constant 0 : i32
    %c0_i32_1 = arith.constant 0 : i32
    return %arg0, %c0_i32, %c0_i32_0 : i32, i32, i32
  }
  func.func @transform_4(%arg0: i32) -> (i32, i32, i32) {
    %c0_i32 = arith.constant 0 : i32
    %c0_i32_0 = arith.constant 0 : i32
    %c0_i32_1 = arith.constant 0 : i32
    %c0_i32_2 = arith.constant 0 : i32
    return %c0_i32, %c0_i32_0, %c0_i32_1 : i32, i32, i32
  }
  func.func @transform_5(%arg0: i32) -> (i32, i32) {
    %c0_i32 = arith.constant 0 : i32
    %c0_i32_0 = arith.constant 0 : i32
    %c0_i32_1 = arith.constant 0 : i32
    return %c0_i32, %c0_i32_0 : i32, i32
  }
  func.func @transform_6(%arg0: i32) -> (i32, i32) {
    %c0_i32 = arith.constant 0 : i32
    %c0_i32_0 = arith.constant 0 : i32
    %c0_i32_1 = arith.constant 0 : i32
    return %c0_i32, %c0_i32_0 : i32, i32
  }
  func.func @transform_7(%arg0: i32) -> (i32, i32, i32) {
    %c0_i32 = arith.constant 0 : i32
    %c0_i32_0 = arith.constant 0 : i32
    %c0_i32_1 = arith.constant 0 : i32
    %c0_i32_2 = arith.constant 0 : i32
    return %c0_i32, %c0_i32_0, %c0_i32_1 : i32, i32, i32
  }
  func.func @transform_8(%arg0: i32) -> (i32, i32, i32) {
    %c0_i32 = arith.constant 0 : i32
    %c0_i32_0 = arith.constant 0 : i32
    %c0_i32_1 = arith.constant 0 : i32
    %c0_i32_2 = arith.constant 0 : i32
    return %c0_i32, %c0_i32_0, %c0_i32_1 : i32, i32, i32
  }
  func.func @transform_9(%arg0: i32) -> (i32, i32, i32) {
    %c0_i32 = arith.constant 0 : i32
    %c0_i32_0 = arith.constant 0 : i32
    %c0_i32_1 = arith.constant 0 : i32
    %c0_i32_2 = arith.constant 0 : i32
    return %c0_i32, %c0_i32_0, %c0_i32_1 : i32, i32, i32
  }
  func.func @transform_10(%arg0: i32) -> (i32, i32, i32) {
    %c0_i32 = arith.constant 0 : i32
    %c0_i32_0 = arith.constant 0 : i32
    %c0_i32_1 = arith.constant 0 : i32
    %c0_i32_2 = arith.constant 0 : i32
    return %c0_i32, %c0_i32_0, %c0_i32_1 : i32, i32, i32
  }
  func.func @transform_11(%arg0: i32) -> (i32, i32, i32) {
    %c0_i32 = arith.constant 0 : i32
    %c0_i32_0 = arith.constant 0 : i32
    %c0_i32_1 = arith.constant 0 : i32
    %c0_i32_2 = arith.constant 0 : i32
    return %c0_i32, %c0_i32_0, %c0_i32_1 : i32, i32, i32
  }
  func.func @transform_12(%arg0: i32) -> (i32, i32, i32) {
    %c0_i32 = arith.constant 0 : i32
    %c0_i32_0 = arith.constant 0 : i32
    %c0_i32_1 = arith.constant 0 : i32
    %c0_i32_2 = arith.constant 0 : i32
    return %c0_i32, %c0_i32_0, %c0_i32_1 : i32, i32, i32
  }
  func.func @transform_13(%arg0: i32) -> (i32, i32, i32) {
    %c0_i32 = arith.constant 0 : i32
    %c0_i32_0 = arith.constant 0 : i32
    %c0_i32_1 = arith.constant 0 : i32
    %c0_i32_2 = arith.constant 0 : i32
    return %c0_i32, %c0_i32_0, %c0_i32_1 : i32, i32, i32
  }
  func.func @transform_14(%arg0: i32) -> (i32, i32, i32) {
    %c0_i32 = arith.constant 0 : i32
    %c0_i32_0 = arith.constant 0 : i32
    %c0_i32_1 = arith.constant 0 : i32
    %c0_i32_2 = arith.constant 0 : i32
    return %c0_i32, %c0_i32_0, %c0_i32_1 : i32, i32, i32
  }
  func.func @transform_15(%arg0: i32) -> (i32, i32, i32) {
    %c0_i32 = arith.constant 0 : i32
    %c0_i32_0 = arith.constant 0 : i32
    %c0_i32_1 = arith.constant 0 : i32
    %c0_i32_2 = arith.constant 0 : i32
    return %c0_i32, %c0_i32_0, %c0_i32_1 : i32, i32, i32
  }
  func.func @transform_16(%arg0: i32) -> (i32, i32, i32) {
    %c0_i32 = arith.constant 0 : i32
    %c0_i32_0 = arith.constant 0 : i32
    %c0_i32_1 = arith.constant 0 : i32
    return %arg0, %c0_i32, %c0_i32_0 : i32, i32, i32
  }
  func.func @transform_17(%arg0: i32) -> (i32, i32, i32) {
    %c0_i32 = arith.constant 0 : i32
    %c0_i32_0 = arith.constant 0 : i32
    %c0_i32_1 = arith.constant 0 : i32
    return %arg0, %c0_i32, %c0_i32_0 : i32, i32, i32
  }
}

</mosaic_0001>

<llo_original>
// kernel: tpu_custom_call.1
$region0: #{tpu_custom_call.1}
  #allocation0 [shape = 'u32[]', space=smem, size = 0x4, offset = 0x4, fixed_abs, tag = 'smem constant byte address 0x4 - core index']
  #allocation1 [shape = 'u32[144,128]{1,0:T(1,128)}', space=vmem, size = 0x12000, scoped, tag = 'internal scratch']
  #allocation2 [shape = 'f32[32,16]{1,0:T(8,128)}', space=vmem, size = 0x4000, scoped, tag = 'scratch operand']
  %s0 = inlined_call_operand.vmem [shape: f32[2,8,8], index: 0, kind: input, shape index: {}]
  %s1 = inlined_call_operand.hbm [shape: f32[2,8,32], index: 1, kind: input, shape index: {}]
  %s2 = inlined_call_operand.hbm [shape: f32[2,8,8], index: 2, kind: input, shape index: {}]
  %s3 = inlined_call_operand.vmem [shape: f32[2,22,4], index: 3, kind: input, shape index: {}]
  %s4 = inlined_call_operand.hbm [shape: f32[30,8,32], index: 4, kind: input, shape index: {}]
  %s5 = inlined_call_operand.vmem [shape: bf16[80,240], index: 5, kind: input, shape index: {}]
  %s6 = inlined_call_operand.hbm [shape: bf16[8,16], index: 6, kind: input, shape index: {}]
  %s7 = inlined_call_operand.vmem [shape: bf16[4,16,16], index: 7, kind: input, shape index: {}]
  %s8 = inlined_call_operand.hbm [shape: bf16[2,16,16], index: 8, kind: input, shape index: {}]
  %s9 = inlined_call_operand.hbm [shape: f32[2,1,16], index: 9, kind: input, shape index: {}]
  %s10 = inlined_call_operand.vmem [shape: bf16[2,16,16], index: 10, kind: input, shape index: {}]
  %s11 = inlined_call_operand.hbm [shape: f32[2,1,16], index: 11, kind: input, shape index: {}]
  %s12 = inlined_call_operand.vmem [shape: bf16[2,48,16], index: 12, kind: input, shape index: {}]
  %s13 = inlined_call_operand.hbm [shape: f32[2,1,16], index: 13, kind: input, shape index: {}]
  %s14 = inlined_call_operand.vmem [shape: bf16[2,16,8], index: 14, kind: input, shape index: {}]
  %s15 = inlined_call_operand.vmem [shape: f32[2,1,8], index: 15, kind: input, shape index: {}]
  %s16 = inlined_call_operand.hbm [shape: f32[2,8,16], index: 16, kind: output, shape index: {0}]
  %s17 = inlined_call_operand.vmem [shape: f32[2,22,8], index: 17, kind: output, shape index: {1}]
  %18 = xla_tuple %s16, %s17
  %s19 = sld [smem:[#allocation0]]
  $region137: #{tpu_custom_call.1} parent=0
    _
  %s21 = ssub.s32 1, %s19
  %s22 = scalar_select 0, %s21, %s19
  $region1: #{tpu_custom_call.1} parent=0
    #allocation3 [shape = 'u8[8192]{0}', space=vmem, size = 0x2000, scoped, tag = 'input window, operand 1']
    #allocation4 [shape = 's32[2]{0}', space=sflag, size = 0x8, scoped, tag = 'scoped memory for tpu_custom_call.1']
    #allocation5 [shape = 's32[2]{0}', space=sflag, size = 0x8, scoped, tag = 'scoped memory for tpu_custom_call.1']
    #allocation6 [shape = 'u8[8192]{0}', space=vmem, size = 0x2000, scoped, tag = 'input window, operand 2']
    #allocation7 [shape = 's32[2]{0}', space=sflag, size = 0x8, scoped, tag = 'scoped memory for tpu_custom_call.1']
    #allocation8 [shape = 'u8[122880]{0}', space=vmem, size = 0x1e000, scoped, tag = 'input window, operand 4, single buffered']
    #allocation9 [shape = 'u8[2048]{0}', space=vmem, size = 0x800, scoped, tag = 'input window, operand 6, single buffered']
    #allocation10 [shape = 's32[1]{0}', space=sflag, size = 0x4, scoped, tag = 'scoped memory for tpu_custom_call.1']
    #allocation11 [shape = 'u8[8192]{0}', space=vmem, size = 0x2000, scoped, tag = 'input window, operand 8, single buffered']
    #allocation12 [shape = 'u8[1024]{0}', space=vmem, size = 0x400, scoped, tag = 'input window, operand 9, single buffered']
    #allocation13 [shape = 's32[1]{0}', space=sflag, size = 0x4, scoped, tag = 'scoped memory for tpu_custom_call.1']
    #allocation14 [shape = 'u8[1024]{0}', space=vmem, size = 0x400, scoped, tag = 'input window, operand 11, single buffered']
    #allocation15 [shape = 'u8[1024]{0}', space=vmem, size = 0x400, scoped, tag = 'input window, operand 13, single buffered']
    #allocation16 [shape = 's32[1]{0}', space=sflag, size = 0x4, scoped, tag = 'scoped memory for tpu_custom_call.1']
    #allocation17 [shape = 'u8[8192]{0}', space=vmem, size = 0x2000, scoped, tag = 'output window, operand 0']
    %23 = vsyncpa [#allocation4], 0
    %s24 = scalar_lea.sflag [#allocation4], 1
    %25 = vsyncpa %s24, 0
    %26 = vsyncpa [#allocation7], 0
    %s27 = scalar_lea.sflag [#allocation7], 1
    %28 = vsyncpa %s27, 0
    %29 = vsyncpa [#allocation10], 0
    %30 = vsyncpa [#allocation13], 0
    %31 = vsyncpa [#allocation16], 0
    %32 = vsyncpa [#allocation5], 0
    %s33 = scalar_lea.sflag [#allocation5], 1
    %34 = vsyncpa %s33, 0
    loop: start=0, step=1, limit=4
    $region2: #{tpu_custom_call.1} parent=1 // loop_pre_header
      _
    $region3: #{tpu_custom_call.1} parent=1 // loop_header
      %s36 = sphi 0, %s40
      %p37 = scmp.ge.s32.totalorder %s36, 4
      %s46 = sphi 0, %s48
      %s49 = sphi 0, %s46
      %s50 = sphi 0, %s49
      %s66 = sphi 0, %s50
      %s72 = sphi 0, %s74
      %s75 = sphi 0, %s72
      %s76 = sphi 0, %s75
      %s92 = sphi 0, %s76
      %s98 = sphi 0, %s100
      %s101 = sphi 0, %s98
      %s102 = sphi 0, %s101
      %s118 = sphi 0, %s102
      %s124 = sphi 0, %s126
      %s127 = sphi 0, %s124
      %s128 = sphi 0, %s127
      %s144 = sphi 0, %s128
      %s148 = sphi 0, %s148
      %s150 = sphi 0, %s148
      %s151 = sphi 0, %s150
      %s165 = sphi 0, %s151
      %s169 = sphi 0, %s169
      %s171 = sphi 0, %s169
      %s172 = sphi 0, %s171
      %s186 = sphi 0, %s172
      %s190 = sphi 0, %s190
      %s192 = sphi 0, %s190
      %s193 = sphi 0, %s192
      %s207 = sphi 0, %s193
      %s211 = sphi 0, %s211
      %s213 = sphi 0, %s211
      %s214 = sphi 0, %s213
      %s228 = sphi 0, %s214
      %s232 = sphi 0, %s232
      %s234 = sphi 0, %s232
      %s235 = sphi 0, %s234
      %s249 = sphi 0, %s235
      %s253 = sphi 0, %s253
      %s255 = sphi 0, %s253
      %s256 = sphi 0, %s255
      %s270 = sphi 0, %s256
      %s274 = sphi 0, %s274
      %s276 = sphi 0, %s274
      %s277 = sphi 0, %s276
      %s291 = sphi 0, %s277
      %s295 = sphi 0, %s295
      %s297 = sphi 0, %s295
      %s298 = sphi 0, %s297
      %s312 = sphi 0, %s298
      %s316 = sphi 0, %s316
      %s318 = sphi 0, %s316
      %s319 = sphi 0, %s318
      %s333 = sphi 0, %s319
      %s337 = sphi 0, %s337
      %s339 = sphi 0, %s337
      %s340 = sphi 0, %s339
      %s354 = sphi 0, %s340
      %s358 = sphi 0, %s358
      %s360 = sphi 0, %s358
      %s361 = sphi 0, %s360
      %s375 = sphi 0, %s361
      %s379 = sphi 0, %s379
      %s381 = sphi 0, %s379
      %s382 = sphi 0, %s381
      %s396 = sphi 0, %s382
      %s402 = sphi 0, %s404
      %s405 = sphi 0, %s402
      %s406 = sphi 0, %s405
      %s422 = sphi 0, %s406
      %s428 = sphi 0, %s430
      %s431 = sphi 0, %s428
      %s432 = sphi 0, %s431
      %s448 = sphi 0, %s432
    $region4: #{tpu_custom_call.1} parent=1 // loop_header_branch
      %39 = sbr.rel (%p37) target = $region8
    $region5: #{tpu_custom_call.1} parent=1 // loop_body
      %s41 = ssub.s32 %s36, 1
      %s42 = ssub.s32 %s36, 2
      %s43 = sadd.s32 %s36, 1
      %s44 = ssub.s32 %s36, %s43
      %p45 = scmp.eq.s32.totalorder %s44, 0
      %s47 = sadd.s32 %s46, 1
      %s48 = scalar_select %p45, %s46, %s47
      %p51 = pneg %p45
      %p52 = scmp.eq.s32.totalorder %s36, 1
      %p53 = por %p51, %p52
      %p54 = scmp.ne.s32.totalorder %s46, %s49
      %p55 = scmp.eq.s32.totalorder %s36, 0
      %p56 = por %p54, %p55
      %p57 = scmp.ne.s32.totalorder %s46, %s49
      %p58 = scmp.eq.s32.totalorder %s41, 1
      %p59 = por %p57, %p58
      %p60 = scmp.ne.s32.totalorder %s49, %s50
      %p61 = scmp.eq.s32.totalorder %s41, 0
      %p62 = por %p60, %p61
      %p63 = scmp.ne.s32.totalorder %s49, %s50
      %p64 = scmp.eq.s32.totalorder %s42, 1
      %p65 = por %p63, %p64
      %p67 = scmp.ne.s32.totalorder %s50, %s66
      %p68 = scmp.eq.s32.totalorder %s42, 0
      %p69 = por %p67, %p68
      %s70 = ssub.s32 %s36, %s43
      %p71 = scmp.eq.s32.totalorder %s70, 0
      %s73 = sadd.s32 %s72, 1
      %s74 = scalar_select %p71, %s72, %s73
      %p77 = pneg %p71
      %p78 = scmp.eq.s32.totalorder %s36, 1
      %p79 = por %p77, %p78
      %p80 = scmp.ne.s32.totalorder %s72, %s75
      %p81 = scmp.eq.s32.totalorder %s36, 0
      %p82 = por %p80, %p81
      %p83 = scmp.ne.s32.totalorder %s72, %s75
      %p84 = scmp.eq.s32.totalorder %s41, 1
      %p85 = por %p83, %p84
      %p86 = scmp.ne.s32.totalorder %s75, %s76
      %p87 = scmp.eq.s32.totalorder %s41, 0
      %p88 = por %p86, %p87
      %p89 = scmp.ne.s32.totalorder %s75, %s76
      %p90 = scmp.eq.s32.totalorder %s42, 1
      %p91 = por %p89, %p90
      %p93 = scmp.ne.s32.totalorder %s76, %s92
      %p94 = scmp.eq.s32.totalorder %s42, 0
      %p95 = por %p93, %p94
      %s96 = ssub.s32 %s36, %s43
      %p97 = scmp.eq.s32.totalorder %s96, 0
      %s99 = sadd.s32 %s98, 1
      %s100 = scalar_select %p97, %s98, %s99
      %p103 = pneg %p97
      %p104 = scmp.eq.s32.totalorder %s36, 1
      %p105 = por %p103, %p104
      %p106 = scmp.ne.s32.totalorder %s98, %s101
      %p107 = scmp.eq.s32.totalorder %s36, 0
      %p108 = por %p106, %p107
      %p109 = scmp.ne.s32.totalorder %s98, %s101
      %p110 = scmp.eq.s32.totalorder %s41, 1
      %p111 = por %p109, %p110
      %p112 = scmp.ne.s32.totalorder %s101, %s102
      %p113 = scmp.eq.s32.totalorder %s41, 0
      %p114 = por %p112, %p113
      %p115 = scmp.ne.s32.totalorder %s101, %s102
      %p116 = scmp.eq.s32.totalorder %s42, 1
      %p117 = por %p115, %p116
      %p119 = scmp.ne.s32.totalorder %s102, %s118
      %p120 = scmp.eq.s32.totalorder %s42, 0
      %p121 = por %p119, %p120
      %s122 = ssub.s32 %s36, %s43
      %p123 = scmp.eq.s32.totalorder %s122, 0
      %s125 = sadd.s32 %s124, 1
      %s126 = scalar_select %p123, %s124, %s125
      %p129 = pneg %p123
      %p130 = scmp.eq.s32.totalorder %s36, 1
      %p131 = por %p129, %p130
      %p132 = scmp.ne.s32.totalorder %s124, %s127
      %p133 = scmp.eq.s32.totalorder %s36, 0
      %p134 = por %p132, %p133
      %p135 = scmp.ne.s32.totalorder %s124, %s127
      %p136 = scmp.eq.s32.totalorder %s41, 1
      %p137 = por %p135, %p136
      %p138 = scmp.ne.s32.totalorder %s127, %s128
      %p139 = scmp.eq.s32.totalorder %s41, 0
      %p140 = por %p138, %p139
      %p141 = scmp.ne.s32.totalorder %s127, %s128
      %p142 = scmp.eq.s32.totalorder %s42, 1
      %p143 = por %p141, %p142
      %p145 = scmp.ne.s32.totalorder %s128, %s144
      %p146 = scmp.eq.s32.totalorder %s42, 0
      %p147 = por %p145, %p146
      %s149 = sadd.s32 %s148, 1
      %p152 = scmp.eq.s32.totalorder %s36, 1
      %p153 = scmp.ne.s32.totalorder %s148, %s150
      %p154 = scmp.eq.s32.totalorder %s36, 0
      %p155 = por %p153, %p154
      %p156 = scmp.ne.s32.totalorder %s148, %s150
      %p157 = scmp.eq.s32.totalorder %s41, 1
      %p158 = por %p156, %p157
      %p159 = scmp.ne.s32.totalorder %s150, %s151
      %p160 = scmp.eq.s32.totalorder %s41, 0
      %p161 = por %p159, %p160
      %p162 = scmp.ne.s32.totalorder %s150, %s151
      %p163 = scmp.eq.s32.totalorder %s42, 1
      %p164 = por %p162, %p163
      %p166 = scmp.ne.s32.totalorder %s151, %s165
      %p167 = scmp.eq.s32.totalorder %s42, 0
      %p168 = por %p166, %p167
      %s170 = sadd.s32 %s169, 1
      %p173 = scmp.eq.s32.totalorder %s36, 1
      %p174 = scmp.ne.s32.totalorder %s169, %s171
      %p175 = scmp.eq.s32.totalorder %s36, 0
      %p176 = por %p174, %p175
      %p177 = scmp.ne.s32.totalorder %s169, %s171
      %p178 = scmp.eq.s32.totalorder %s41, 1
      %p179 = por %p177, %p178
      %p180 = scmp.ne.s32.totalorder %s171, %s172
      %p181 = scmp.eq.s32.totalorder %s41, 0
      %p182 = por %p180, %p181
      %p183 = scmp.ne.s32.totalorder %s171, %s172
      %p184 = scmp.eq.s32.totalorder %s42, 1
      %p185 = por %p183, %p184
      %p187 = scmp.ne.s32.totalorder %s172, %s186
      %p188 = scmp.eq.s32.totalorder %s42, 0
      %p189 = por %p187, %p188
      %s191 = sadd.s32 %s190, 1
      %p194 = scmp.eq.s32.totalorder %s36, 1
      %p195 = scmp.ne.s32.totalorder %s190, %s192
      %p196 = scmp.eq.s32.totalorder %s36, 0
      %p197 = por %p195, %p196
      %p198 = scmp.ne.s32.totalorder %s190, %s192
      %p199 = scmp.eq.s32.totalorder %s41, 1
      %p200 = por %p198, %p199
      %p201 = scmp.ne.s32.totalorder %s192, %s193
      %p202 = scmp.eq.s32.totalorder %s41, 0
      %p203 = por %p201, %p202
      %p204 = scmp.ne.s32.totalorder %s192, %s193
      %p205 = scmp.eq.s32.totalorder %s42, 1
      %p206 = por %p204, %p205
      %p208 = scmp.ne.s32.totalorder %s193, %s207
      %p209 = scmp.eq.s32.totalorder %s42, 0
      %p210 = por %p208, %p209
      %s212 = sadd.s32 %s211, 1
      %p215 = scmp.eq.s32.totalorder %s36, 1
      %p216 = scmp.ne.s32.totalorder %s211, %s213
      %p217 = scmp.eq.s32.totalorder %s36, 0
      %p218 = por %p216, %p217
      %p219 = scmp.ne.s32.totalorder %s211, %s213
      %p220 = scmp.eq.s32.totalorder %s41, 1
      %p221 = por %p219, %p220
      %p222 = scmp.ne.s32.totalorder %s213, %s214
      %p223 = scmp.eq.s32.totalorder %s41, 0
      %p224 = por %p222, %p223
      %p225 = scmp.ne.s32.totalorder %s213, %s214
      %p226 = scmp.eq.s32.totalorder %s42, 1
      %p227 = por %p225, %p226
      %p229 = scmp.ne.s32.totalorder %s214, %s228
      %p230 = scmp.eq.s32.totalorder %s42, 0
      %p231 = por %p229, %p230
      %s233 = sadd.s32 %s232, 1
      %p236 = scmp.eq.s32.totalorder %s36, 1
      %p237 = scmp.ne.s32.totalorder %s232, %s234
      %p238 = scmp.eq.s32.totalorder %s36, 0
      %p239 = por %p237, %p238
      %p240 = scmp.ne.s32.totalorder %s232, %s234
      %p241 = scmp.eq.s32.totalorder %s41, 1
      %p242 = por %p240, %p241
      %p243 = scmp.ne.s32.totalorder %s234, %s235
      %p244 = scmp.eq.s32.totalorder %s41, 0
      %p245 = por %p243, %p244
      %p246 = scmp.ne.s32.totalorder %s234, %s235
      %p247 = scmp.eq.s32.totalorder %s42, 1
      %p248 = por %p246, %p247
      %p250 = scmp.ne.s32.totalorder %s235, %s249
      %p251 = scmp.eq.s32.totalorder %s42, 0
      %p252 = por %p250, %p251
      %s254 = sadd.s32 %s253, 1
      %p257 = scmp.eq.s32.totalorder %s36, 1
      %p258 = scmp.ne.s32.totalorder %s253, %s255
      %p259 = scmp.eq.s32.totalorder %s36, 0
      %p260 = por %p258, %p259
      %p261 = scmp.ne.s32.totalorder %s253, %s255
      %p262 = scmp.eq.s32.totalorder %s41, 1
      %p263 = por %p261, %p262
      %p264 = scmp.ne.s32.totalorder %s255, %s256
      %p265 = scmp.eq.s32.totalorder %s41, 0
      %p266 = por %p264, %p265
      %p267 = scmp.ne.s32.totalorder %s255, %s256
      %p268 = scmp.eq.s32.totalorder %s42, 1
      %p269 = por %p267, %p268
      %p271 = scmp.ne.s32.totalorder %s256, %s270
      %p272 = scmp.eq.s32.totalorder %s42, 0
      %p273 = por %p271, %p272
      %s275 = sadd.s32 %s274, 1
      %p278 = scmp.eq.s32.totalorder %s36, 1
      %p279 = scmp.ne.s32.totalorder %s274, %s276
      %p280 = scmp.eq.s32.totalorder %s36, 0
      %p281 = por %p279, %p280
      %p282 = scmp.ne.s32.totalorder %s274, %s276
      %p283 = scmp.eq.s32.totalorder %s41, 1
      %p284 = por %p282, %p283
      %p285 = scmp.ne.s32.totalorder %s276, %s277
      %p286 = scmp.eq.s32.totalorder %s41, 0
      %p287 = por %p285, %p286
      %p288 = scmp.ne.s32.totalorder %s276, %s277
      %p289 = scmp.eq.s32.totalorder %s42, 1
      %p290 = por %p288, %p289
      %p292 = scmp.ne.s32.totalorder %s277, %s291
      %p293 = scmp.eq.s32.totalorder %s42, 0
      %p294 = por %p292, %p293
      %s296 = sadd.s32 %s295, 1
      %p299 = scmp.eq.s32.totalorder %s36, 1
      %p300 = scmp.ne.s32.totalorder %s295, %s297
      %p301 = scmp.eq.s32.totalorder %s36, 0
      %p302 = por %p300, %p301
      %p303 = scmp.ne.s32.totalorder %s295, %s297
      %p304 = scmp.eq.s32.totalorder %s41, 1
      %p305 = por %p303, %p304
      %p306 = scmp.ne.s32.totalorder %s297, %s298
      %p307 = scmp.eq.s32.totalorder %s41, 0
      %p308 = por %p306, %p307
      %p309 = scmp.ne.s32.totalorder %s297, %s298
      %p310 = scmp.eq.s32.totalorder %s42, 1
      %p311 = por %p309, %p310
      %p313 = scmp.ne.s32.totalorder %s298, %s312
      %p314 = scmp.eq.s32.totalorder %s42, 0
      %p315 = por %p313, %p314
      %s317 = sadd.s32 %s316, 1
      %p320 = scmp.eq.s32.totalorder %s36, 1
      %p321 = scmp.ne.s32.totalorder %s316, %s318
      %p322 = scmp.eq.s32.totalorder %s36, 0
      %p323 = por %p321, %p322
      %p324 = scmp.ne.s32.totalorder %s316, %s318
      %p325 = scmp.eq.s32.totalorder %s41, 1
      %p326 = por %p324, %p325
      %p327 = scmp.ne.s32.totalorder %s318, %s319
      %p328 = scmp.eq.s32.totalorder %s41, 0
      %p329 = por %p327, %p328
      %p330 = scmp.ne.s32.totalorder %s318, %s319
      %p331 = scmp.eq.s32.totalorder %s42, 1
      %p332 = por %p330, %p331
      %p334 = scmp.ne.s32.totalorder %s319, %s333
      %p335 = scmp.eq.s32.totalorder %s42, 0
      %p336 = por %p334, %p335
      %s338 = sadd.s32 %s337, 1
      %p341 = scmp.eq.s32.totalorder %s36, 1
      %p342 = scmp.ne.s32.totalorder %s337, %s339
      %p343 = scmp.eq.s32.totalorder %s36, 0
      %p344 = por %p342, %p343
      %p345 = scmp.ne.s32.totalorder %s337, %s339
      %p346 = scmp.eq.s32.totalorder %s41, 1
      %p347 = por %p345, %p346
      %p348 = scmp.ne.s32.totalorder %s339, %s340
      %p349 = scmp.eq.s32.totalorder %s41, 0
      %p350 = por %p348, %p349
      %p351 = scmp.ne.s32.totalorder %s339, %s340
      %p352 = scmp.eq.s32.totalorder %s42, 1
      %p353 = por %p351, %p352
      %p355 = scmp.ne.s32.totalorder %s340, %s354
      %p356 = scmp.eq.s32.totalorder %s42, 0
      %p357 = por %p355, %p356
      %s359 = sadd.s32 %s358, 1
      %p362 = scmp.eq.s32.totalorder %s36, 1
      %p363 = scmp.ne.s32.totalorder %s358, %s360
      %p364 = scmp.eq.s32.totalorder %s36, 0
      %p365 = por %p363, %p364
      %p366 = scmp.ne.s32.totalorder %s358, %s360
      %p367 = scmp.eq.s32.totalorder %s41, 1
      %p368 = por %p366, %p367
      %p369 = scmp.ne.s32.totalorder %s360, %s361
      %p370 = scmp.eq.s32.totalorder %s41, 0
      %p371 = por %p369, %p370
      %p372 = scmp.ne.s32.totalorder %s360, %s361
      %p373 = scmp.eq.s32.totalorder %s42, 1
      %p374 = por %p372, %p373
      %p376 = scmp.ne.s32.totalorder %s361, %s375
      %p377 = scmp.eq.s32.totalorder %s42, 0
      %p378 = por %p376, %p377
      %s380 = sadd.s32 %s379, 1
      %p383 = scmp.eq.s32.totalorder %s36, 1
      %p384 = scmp.ne.s32.totalorder %s379, %s381
      %p385 = scmp.eq.s32.totalorder %s36, 0
      %p386 = por %p384, %p385
      %p387 = scmp.ne.s32.totalorder %s379, %s381
      %p388 = scmp.eq.s32.totalorder %s41, 1
      %p389 = por %p387, %p388
      %p390 = scmp.ne.s32.totalorder %s381, %s382
      %p391 = scmp.eq.s32.totalorder %s41, 0
      %p392 = por %p390, %p391
      %p393 = scmp.ne.s32.totalorder %s381, %s382
      %p394 = scmp.eq.s32.totalorder %s42, 1
      %p395 = por %p393, %p394
      %p397 = scmp.ne.s32.totalorder %s382, %s396
      %p398 = scmp.eq.s32.totalorder %s42, 0
      %p399 = por %p397, %p398
      %s400 = ssub.s32 %s36, %s43
      %p401 = scmp.eq.s32.totalorder %s400, 0
      %s403 = sadd.s32 %s402, 1
      %s404 = scalar_select %p401, %s402, %s403
      %p407 = pneg %p401
      %p408 = scmp.eq.s32.totalorder %s36, 1
      %p409 = por %p407, %p408
      %p410 = scmp.ne.s32.totalorder %s402, %s405
      %p411 = scmp.eq.s32.totalorder %s36, 0
      %p412 = por %p410, %p411
      %p413 = scmp.ne.s32.totalorder %s402, %s405
      %p414 = scmp.eq.s32.totalorder %s41, 1
      %p415 = por %p413, %p414
      %p416 = scmp.ne.s32.totalorder %s405, %s406
      %p417 = scmp.eq.s32.totalorder %s41, 0
      %p418 = por %p416, %p417
      %p419 = scmp.ne.s32.totalorder %s405, %s406
      %p420 = scmp.eq.s32.totalorder %s42, 1
      %p421 = por %p419, %p420
      %p423 = scmp.ne.s32.totalorder %s406, %s422
      %p424 = scmp.eq.s32.totalorder %s42, 0
      %p425 = por %p423, %p424
      %s426 = ssub.s32 %s36, %s43
      %p427 = scmp.eq.s32.totalorder %s426, 0
      %s429 = sadd.s32 %s428, 1
      %s430 = scalar_select %p427, %s428, %s429
      %p433 = pneg %p427
      %p434 = scmp.eq.s32.totalorder %s36, 1
      %p435 = por %p433, %p434
      %p436 = scmp.ne.s32.totalorder %s428, %s431
      %p437 = scmp.eq.s32.totalorder %s36, 0
      %p438 = por %p436, %p437
      %p439 = scmp.ne.s32.totalorder %s428, %s431
      %p440 = scmp.eq.s32.totalorder %s41, 1
      %p441 = por %p439, %p440
      %p442 = scmp.ne.s32.totalorder %s431, %s432
      %p443 = scmp.eq.s32.totalorder %s41, 0
      %p444 = por %p442, %p443
      %p445 = scmp.ne.s32.totalorder %s431, %s432
      %p446 = scmp.eq.s32.totalorder %s42, 1
      %p447 = por %p445, %p446
      %p449 = scmp.ne.s32.totalorder %s432, %s448
      %p450 = scmp.eq.s32.totalorder %s42, 0
      %p451 = por %p449, %p450
      %p452 = scmp.le.s32.totalorder 1, %s36
      %p453 = scmp.lt.s32.totalorder %s36, 3
      %p454 = pnand %p452, %p453
      %p455 = pneg %p454
      // Predicated region
      $region9: #{tpu_custom_call.1} parent=5 // pred_check
        _
      $region10: #{tpu_custom_call.1} parent=5 // pred_check_branch
        %457 = sbr.rel (%p454) target = $region12
      $region11: #{tpu_custom_call.1} parent=5 // pred_region
        %s458 = ssub.s32 %s36, 1
        // Predicated region
        $region13: #{tpu_custom_call.1} parent=11 // pred_check
          %p459 = pneg %p161
        $region14: #{tpu_custom_call.1} parent=11 // pred_check_branch
          %461 = sbr.rel (%p459) target = $region16
        $region15: #{tpu_custom_call.1} parent=11 // pred_region
          %s463 = ssub.s32 3840, 3840
          %464 = vsyncadd [#allocation7], %s463
          %s465 = sshll.u32 [#allocation8], 4
          %s466 = int_to_ptr.vmem [resolvable:$true] %s465
          %471 = dma.hbm_to_vmem [thread:$0]  %s4, 3840, %s466, [#allocation7], 128, 128, 8
        $region16: #{tpu_custom_call.1} parent=11 // pred_fallthru
          _
        // Predicated region
        $region17: #{tpu_custom_call.1} parent=11 // pred_check
          %p472 = pneg %p182
        $region18: #{tpu_custom_call.1} parent=11 // pred_check_branch
          %474 = sbr.rel (%p472) target = $region20
        $region19: #{tpu_custom_call.1} parent=11 // pred_region
          _
        $region20: #{tpu_custom_call.1} parent=11 // pred_fallthru
          _
        // Predicated region
        $region21: #{tpu_custom_call.1} parent=11 // pred_check
          %p475 = pneg %p203
        $region22: #{tpu_custom_call.1} parent=11 // pred_check_branch
          %477 = sbr.rel (%p475) target = $region24
        $region23: #{tpu_custom_call.1} parent=11 // pred_region
          %s479 = ssub.s32 64, 64
          %480 = vsyncadd [#allocation10], %s479
          %s482 = sshll.u32 [#allocation9], 4
          %s483 = int_to_ptr.vmem [resolvable:$true] %s482
          %485 = dma.hbm_to_vmem [thread:$0]  %s6, 64, %s483, [#allocation10]
        $region24: #{tpu_custom_call.1} parent=11 // pred_fallthru
          _
        // Predicated region
        $region25: #{tpu_custom_call.1} parent=11 // pred_check
          %p486 = pneg %p224
        $region26: #{tpu_custom_call.1} parent=11 // pred_check_branch
          %488 = sbr.rel (%p486) target = $region28
        $region27: #{tpu_custom_call.1} parent=11 // pred_region
          _
        $region28: #{tpu_custom_call.1} parent=11 // pred_fallthru
          _
        // Predicated region
        $region29: #{tpu_custom_call.1} parent=11 // pred_check
          %p489 = pneg %p245
        $region30: #{tpu_custom_call.1} parent=11 // pred_check_branch
          %491 = sbr.rel (%p489) target = $region32
        $region31: #{tpu_custom_call.1} parent=11 // pred_region
          %s493 = ssub.s32 256, 256
          %494 = vsyncadd [#allocation10], %s493
          %s495 = sshll.u32 [#allocation11], 4
          %s496 = int_to_ptr.vmem [resolvable:$true] %s495
          %501 = dma.hbm_to_vmem [thread:$0]  %s8, 256, %s496, [#allocation10], 64, 64, 4
        $region32: #{tpu_custom_call.1} parent=11 // pred_fallthru
          _
        // Predicated region
        $region33: #{tpu_custom_call.1} parent=11 // pred_check
          %p502 = pneg %p266
        $region34: #{tpu_custom_call.1} parent=11 // pred_check_branch
          %504 = sbr.rel (%p502) target = $region36
        $region35: #{tpu_custom_call.1} parent=11 // pred_region
          %s506 = ssub.s32 32, 32
          %507 = vsyncadd [#allocation13], %s506
          %s508 = sshll.u32 [#allocation12], 4
          %s509 = int_to_ptr.vmem [resolvable:$true] %s508
          %514 = dma.hbm_to_vmem [thread:$0]  %s9, 32, %s509, [#allocation13], 16, 16, 1
        $region36: #{tpu_custom_call.1} parent=11 // pred_fallthru
          _
        // Predicated region
        $region37: #{tpu_custom_call.1} parent=11 // pred_check
          %p515 = pneg %p287
        $region38: #{tpu_custom_call.1} parent=11 // pred_check_branch
          %517 = sbr.rel (%p515) target = $region40
        $region39: #{tpu_custom_call.1} parent=11 // pred_region
          _
        $region40: #{tpu_custom_call.1} parent=11 // pred_fallthru
          _
        // Predicated region
        $region41: #{tpu_custom_call.1} parent=11 // pred_check
          %p518 = pneg %p308
        $region42: #{tpu_custom_call.1} parent=11 // pred_check_branch
          %520 = sbr.rel (%p518) target = $region44
        $region43: #{tpu_custom_call.1} parent=11 // pred_region
          %s522 = ssub.s32 32, 32
          %523 = vsyncadd [#allocation13], %s522
          %s524 = sshll.u32 [#allocation14], 4
          %s525 = int_to_ptr.vmem [resolvable:$true] %s524
          %530 = dma.hbm_to_vmem [thread:$0]  %s11, 32, %s525, [#allocation13], 16, 16, 1
        $region44: #{tpu_custom_call.1} parent=11 // pred_fallthru
          _
        // Predicated region
        $region45: #{tpu_custom_call.1} parent=11 // pred_check
          %p531 = pneg %p329
        $region46: #{tpu_custom_call.1} parent=11 // pred_check_branch
          %533 = sbr.rel (%p531) target = $region48
        $region47: #{tpu_custom_call.1} parent=11 // pred_region
          _
        $region48: #{tpu_custom_call.1} parent=11 // pred_fallthru
          _
        // Predicated region
        $region49: #{tpu_custom_call.1} parent=11 // pred_check
          %p534 = pneg %p350
        $region50: #{tpu_custom_call.1} parent=11 // pred_check_branch
          %536 = sbr.rel (%p534) target = $region52
        $region51: #{tpu_custom_call.1} parent=11 // pred_region
          %s538 = ssub.s32 32, 32
          %539 = vsyncadd [#allocation16], %s538
          %s540 = sshll.u32 [#allocation15], 4
          %s541 = int_to_ptr.vmem [resolvable:$true] %s540
          %546 = dma.hbm_to_vmem [thread:$0]  %s13, 32, %s541, [#allocation16], 16, 16, 1
        $region52: #{tpu_custom_call.1} parent=11 // pred_fallthru
          _
        // Predicated region
        $region53: #{tpu_custom_call.1} parent=11 // pred_check
          %p547 = pneg %p371
        $region54: #{tpu_custom_call.1} parent=11 // pred_check_branch
          %549 = sbr.rel (%p547) target = $region56
        $region55: #{tpu_custom_call.1} parent=11 // pred_region
          _
        $region56: #{tpu_custom_call.1} parent=11 // pred_fallthru
          _
        // Predicated region
        $region57: #{tpu_custom_call.1} parent=11 // pred_check
          %p550 = pneg %p392
        $region58: #{tpu_custom_call.1} parent=11 // pred_check_branch
          %552 = sbr.rel (%p550) target = $region60
        $region59: #{tpu_custom_call.1} parent=11 // pred_region
          _
        $region60: #{tpu_custom_call.1} parent=11 // pred_fallthru
          _
      $region12: #{tpu_custom_call.1} parent=5 // pred_fallthru
        _
      %p553 = scmp.lt.s32.totalorder %s36, 2
      // Predicated region
      $region61: #{tpu_custom_call.1} parent=5 // pred_check
        %p554 = pneg %p553
      $region62: #{tpu_custom_call.1} parent=5 // pred_check_branch
        %556 = sbr.rel (%p554) target = $region64
      $region63: #{tpu_custom_call.1} parent=5 // pred_region
        // Predicated region
        $region65: #{tpu_custom_call.1} parent=63 // pred_check
          %p557 = pneg %p56
        $region66: #{tpu_custom_call.1} parent=63 // pred_check_branch
          %559 = sbr.rel (%p557) target = $region68
        $region67: #{tpu_custom_call.1} parent=63 // pred_region
          %p560 = scmp.lt.s32.totalorder %s36, 1
          %s561 = scalar_select %p560, %s36, 1
          %s562 = smul.addr %s561, 8
          %s563 = scalar_lea.vmem %s0, %s562
        $region68: #{tpu_custom_call.1} parent=63 // pred_fallthru
          _
        // Predicated region
        $region69: #{tpu_custom_call.1} parent=63 // pred_check
          %p564 = pneg %p82
        $region70: #{tpu_custom_call.1} parent=63 // pred_check_branch
          %566 = sbr.rel (%p564) target = $region72
        $region71: #{tpu_custom_call.1} parent=63 // pred_region
          %s567 = sand.u32 %s72, 1
          %s568 = scalar_lea.sflag [#allocation4], %s567
          %s569 = sand.u32 %s72, 1
          %s570 = smul.addr %s569, 8
          %s571 = scalar_lea.vmem [#allocation3], %s570
          %s573 = ssub.s32 128, 128
          %574 = vsyncadd %s568, %s573
          %s575 = smul.addr %s36, 128
          %s576 = scalar_lea.hbm %s1, %s575
          %s578 = sshll.u32 %s571, 4
          %s579 = int_to_ptr.vmem [resolvable:$true] %s578
          %581 = dma.hbm_to_vmem [thread:$0]  %s576, 128, %s579, %s568
        $region72: #{tpu_custom_call.1} parent=63 // pred_fallthru
          _
        // Predicated region
        $region73: #{tpu_custom_call.1} parent=63 // pred_check
          %p582 = pneg %p108
        $region74: #{tpu_custom_call.1} parent=63 // pred_check_branch
          %584 = sbr.rel (%p582) target = $region76
        $region75: #{tpu_custom_call.1} parent=63 // pred_region
          %s585 = sand.u32 %s36, 1
          %s586 = scalar_lea.sflag [#allocation7], %s585
          %s587 = sand.u32 %s98, 1
          %s588 = smul.addr %s587, 8
          %s589 = scalar_lea.vmem [#allocation6], %s588
          %s591 = ssub.s32 128, 128
          %592 = vsyncadd %s586, %s591
          %s593 = smul.addr %s36, 128
          %s594 = scalar_lea.hbm %s2, %s593
          %s596 = sshll.u32 %s589, 4
          %s597 = int_to_ptr.vmem [resolvable:$true] %s596
          %599 = dma.hbm_to_vmem [thread:$0]  %s594, 128, %s597, %s586
        $region76: #{tpu_custom_call.1} parent=63 // pred_fallthru
          _
        // Predicated region
        $region77: #{tpu_custom_call.1} parent=63 // pred_check
          %p600 = pneg %p134
        $region78: #{tpu_custom_call.1} parent=63 // pred_check_branch
          %602 = sbr.rel (%p600) target = $region80
        $region79: #{tpu_custom_call.1} parent=63 // pred_region
          %p603 = scmp.lt.s32.totalorder %s36, 1
          %s604 = scalar_select %p603, %s36, 1
          %s605 = smul.addr %s604, 3
          %s606 = smul.addr %s605, 8
          %s607 = scalar_lea.vmem %s3, %s606
        $region80: #{tpu_custom_call.1} parent=63 // pred_fallthru
          _
      $region64: #{tpu_custom_call.1} parent=5 // pred_fallthru
        _
      %p608 = scmp.le.s32.totalorder 1, %s36
      %p609 = scmp.lt.s32.totalorder %s36, 3
      %p610 = pnand %p608, %p609
      %p611 = pneg %p610
      // Predicated region
      $region81: #{tpu_custom_call.1} parent=5 // pred_check
        _
      $region82: #{tpu_custom_call.1} parent=5 // pred_check_branch
        %613 = sbr.rel (%p610) target = $region84
      $region83: #{tpu_custom_call.1} parent=5 // pred_region
        %s614 = ssub.s32 %s36, 1
        %s615 = sand.u32 %s75, 1
        %s616 = scalar_lea.sflag [#allocation4], %s615
        %s617 = sand.u32 %s75, 1
        %s618 = smul.addr %s617, 8
        %s619 = scalar_lea.vmem [#allocation3], %s618
        // Predicated region
        $region85: #{tpu_custom_call.1} parent=83 // pred_check
          %p620 = pneg %p88
        $region86: #{tpu_custom_call.1} parent=83 // pred_check_branch
          %622 = sbr.rel (%p620) target = $region88
        $region87: #{tpu_custom_call.1} parent=83 // pred_region
          %623 = dma.done %s616, 128
        $region88: #{tpu_custom_call.1} parent=83 // pred_fallthru
          _
        %s624 = sand.u32 %s41, 1
        %s625 = scalar_lea.sflag [#allocation7], %s624
        %s626 = sand.u32 %s101, 1
        %s627 = smul.addr %s626, 8
        %s628 = scalar_lea.vmem [#allocation6], %s627
        // Predicated region
        $region89: #{tpu_custom_call.1} parent=83 // pred_check
          %p629 = pneg %p114
        $region90: #{tpu_custom_call.1} parent=83 // pred_check_branch
          %631 = sbr.rel (%p629) target = $region92
        $region91: #{tpu_custom_call.1} parent=83 // pred_region
          %632 = dma.done %s625, 128
        $region92: #{tpu_custom_call.1} parent=83 // pred_fallthru
          _
        // Predicated region
        $region93: #{tpu_custom_call.1} parent=83 // pred_check
          %p633 = pneg %p161
        $region94: #{tpu_custom_call.1} parent=83 // pred_check_branch
          %635 = sbr.rel (%p633) target = $region96
        $region95: #{tpu_custom_call.1} parent=83 // pred_region
          %636 = dma.done [#allocation7], 3840
        $region96: #{tpu_custom_call.1} parent=83 // pred_fallthru
          _
        // Predicated region
        $region97: #{tpu_custom_call.1} parent=83 // pred_check
          %p637 = pneg %p203
        $region98: #{tpu_custom_call.1} parent=83 // pred_check_branch
          %639 = sbr.rel (%p637) target = $region100
        $region99: #{tpu_custom_call.1} parent=83 // pred_region
          %640 = dma.done [#allocation10], 64
        $region100: #{tpu_custom_call.1} parent=83 // pred_fallthru
          _
        // Predicated region
        $region101: #{tpu_custom_call.1} parent=83 // pred_check
          %p641 = pneg %p245
        $region102: #{tpu_custom_call.1} parent=83 // pred_check_branch
          %643 = sbr.rel (%p641) target = $region104
        $region103: #{tpu_custom_call.1} parent=83 // pred_region
          %644 = dma.done [#allocation10], 256
        $region104: #{tpu_custom_call.1} parent=83 // pred_fallthru
          _
        // Predicated region
        $region105: #{tpu_custom_call.1} parent=83 // pred_check
          %p645 = pneg %p266
        $region106: #{tpu_custom_call.1} parent=83 // pred_check_branch
          %647 = sbr.rel (%p645) target = $region108
        $region107: #{tpu_custom_call.1} parent=83 // pred_region
          %648 = dma.done [#allocation13], 32
        $region108: #{tpu_custom_call.1} parent=83 // pred_fallthru
          _
        // Predicated region
        $region109: #{tpu_custom_call.1} parent=83 // pred_check
          %p649 = pneg %p308
        $region110: #{tpu_custom_call.1} parent=83 // pred_check_branch
          %651 = sbr.rel (%p649) target = $region112
        $region111: #{tpu_custom_call.1} parent=83 // pred_region
          %652 = dma.done [#allocation13], 32
        $region112: #{tpu_custom_call.1} parent=83 // pred_fallthru
          _
        // Predicated region
        $region113: #{tpu_custom_call.1} parent=83 // pred_check
          %p653 = pneg %p350
        $region114: #{tpu_custom_call.1} parent=83 // pred_check_branch
          %655 = sbr.rel (%p653) target = $region116
        $region115: #{tpu_custom_call.1} parent=83 // pred_region
          %656 = dma.done [#allocation16], 32
        $region116: #{tpu_custom_call.1} parent=83 // pred_fallthru
          _
        %p657 = scmp.lt.s32.totalorder %s41, 1
        %s658 = scalar_select %p657, %s41, 1
        %s659 = smul.addr %s658, 8
        %s660 = scalar_lea.vmem %s0, %s659
        %p661 = pneg %p62
        %p662 = pneg %p59
        %s663 = sand.u32 %s75, 1
        %s664 = scalar_lea.sflag [#allocation4], %s663
        %s665 = sand.u32 %s75, 1
        %s666 = smul.addr %s665, 8
        %s667 = scalar_lea.vmem [#allocation3], %s666
        %p668 = pneg %p88
        %p669 = pneg %p85
        %s670 = sand.u32 %s41, 1
        %s671 = scalar_lea.sflag [#allocation7], %s670
        %s672 = sand.u32 %s101, 1
        %s673 = smul.addr %s672, 8
        %s674 = scalar_lea.vmem [#allocation6], %s673
        %p675 = pneg %p114
        %p676 = pneg %p111
        %p677 = scmp.lt.s32.totalorder %s41, 1
        %s678 = scalar_select %p677, %s41, 1
        %s679 = smul.addr %s678, 3
        %s680 = smul.addr %s679, 8
        %s681 = scalar_lea.vmem %s3, %s680
        %p682 = pneg %p140
        %p683 = pneg %p137
        %p684 = pneg %p161
        %p685 = pneg %p158
        %p686 = pneg %p182
        %p687 = pneg %p179
        %p688 = pneg %p203
        %p689 = pneg %p200
        %p690 = pneg %p224
        %p691 = pneg %p221
        %p692 = pneg %p245
        %p693 = pneg %p242
        %p694 = pneg %p266
        %p695 = pneg %p263
        %p696 = pneg %p287
        %p697 = pneg %p284
        %p698 = pneg %p308
        %p699 = pneg %p305
        %p700 = pneg %p329
        %p701 = pneg %p326
        %p702 = pneg %p350
        %p703 = pneg %p347
        %p704 = pneg %p371
        %p705 = pneg %p368
        %p706 = pneg %p392
        %p707 = pneg %p389
        %p708 = pneg %p418
        %p709 = pneg %p415
        %s710 = sand.u32 %s405, 1
        %s711 = scalar_lea.sflag [#allocation5], %s710
        %s712 = sand.u32 %s405, 1
        %s713 = smul.addr %s712, 8
        %s714 = scalar_lea.vmem [#allocation17], %s713
        %p715 = pneg %p444
        %p716 = pneg %p441
        %p717 = scmp.lt.s32.totalorder %s41, 1
        %s718 = scalar_select %p717, %s41, 1
        %s719 = smul.addr %s718, 3
        %s720 = smul.addr %s719, 8
        %s721 = scalar_lea.vmem %s17, %s720
        %p722 = scmp.lt.s32.totalorder %s41, 1
        %s723 = scalar_select %p722, %s41, 1
        %s724 = smul.addr %s723, 8
        %s725 = scalar_lea.vmem %s0, %s724
        %p726 = scmp.lt.s32.totalorder %s41, 1
        %s727 = scalar_select %p726, %s41, 1
        %s728 = smul.addr %s727, 3
        %s729 = smul.addr %s728, 8
        %s730 = scalar_lea.vmem %s3, %s729
        %p731 = scmp.lt.s32.totalorder %s41, 1
        %s732 = scalar_select %p731, %s41, 1
        %s733 = smul.addr %s732, 3
        %s734 = smul.addr %s733, 8
        %s735 = scalar_lea.vmem %s17, %s734
        %v737 = vld [vmem:[%s725] sm:$0xff]
        %v738 = vpack.c.bf16 %v737, %v737
        %v739 = vld [vmem:[#allocation9] sm:$0xf]
        %vm740 = vcmask 64512
        %v742 = vsel %vm740, %v738, 0
        %vm744 = vcmask 1043456
        %v746 = vsel %vm744, %v739, 0
        %748 = vmatprep.subr.bf16.mxu0 0
        %749 = vmatpush1.bf16.msra.mxu0 0
        %750 = vmatprep.subr.bf16.mxu0 0
        %751 = vmatpush1.bf16.msra.mxu0 0
        %752 = vmatprep.subr.bf16.mxu0 0
        %753 = vmatpush1.bf16.msra.mxu0 0
        %754 = vmatprep.subr.bf16.mxu0 0
        %755 = vmatpush1.bf16.msra.mxu0 0
        %756 = vmatprep.subr.bf16.mxu0 0
        %757 = vmatpush1.bf16.msra.mxu0 0
        %758 = vmatprep.subr.bf16.mxu0 0
        %759 = vmatpush1.bf16.msra.mxu0 0
        %760 = vmatprep.subr.bf16.mxu0 0
        %761 = vmatpush1.bf16.msra.mxu0 0
        %762 = vmatprep.subr.bf16.mxu0 0
        %763 = vmatpush1.bf16.msra.mxu0 %v746
        %764 = vmatprep.subr.bf16.mxu0 0
        %765 = vmatpush2.bf16.msra.mxu0 0
        %766 = vmatprep.subr.bf16.mxu0 0
        %767 = vmatpush2.bf16.msra.mxu0 0
        %768 = vmatprep.subr.bf16.mxu0 0
        %769 = vmatpush2.bf16.msra.mxu0 0
        %770 = vmatprep.subr.bf16.mxu0 0
        %771 = vmatpush2.bf16.msra.mxu0 0
        %772 = vmatprep.subr.bf16.mxu0 0
        %773 = vmatpush2.bf16.msra.mxu0 0
        %774 = vmatprep.subr.bf16.mxu0 0
        %775 = vmatpush2.bf16.msra.mxu0 0
        %776 = vmatprep.subr.bf16.mxu0 0
        %777 = vmatpush2.bf16.msra.mxu0 0
        %778 = vmatprep.subr.bf16.mxu0 0
        %779 = vmatpush2.bf16.msra.mxu0 0
        %780 = vmatprep.mubr.bf16.mxu0 0
        %781 = vmatmul.mubr.bf16.gmra.mxu0 %v742
        %v782 = vpop.f32.mrf.mxu0
        %v783 = vadd.f32 0.0, %v782
        %v784 = vpop.f32.mrf.mxu0
        %v785 = vpop.f32.mrf.mxu0
        %v786 = vpop.f32.mrf.mxu0
        %787 = vdwg.mxu0
        %v788 = vpack.c.bf16 %v783, %v783
        %v789 = vld [vmem:[%s7] sm:$0xf]
        %v790 = vld [vmem:[%s7 + $0x4] sm:$0xf]
        %v793 = vunpack.c.l.b16 %v789
        %v794 = vunpack.c.l.b16 %v790
        %v795 = vpack.c.b16 %v794, %v793
        %vm797 = vcmask 130048
        %v799 = vsel %vm797, %v788, 0
        %801 = vmatprep.subr.bf16.mxu0 0
        %802 = vmatpush1.bf16.msra.mxu0 0
        %803 = vmatprep.subr.bf16.mxu0 0
        %804 = vmatpush1.bf16.msra.mxu0 0
        %805 = vmatprep.subr.bf16.mxu0 0
        %806 = vmatpush1.bf16.msra.mxu0 0
        %807 = vmatprep.subr.bf16.mxu0 0
        %808 = vmatpush1.bf16.msra.mxu0 0
        %809 = vmatprep.subr.bf16.mxu0 0
        %810 = vmatpush1.bf16.msra.mxu0 0
        %811 = vmatprep.subr.bf16.mxu0 0
        %812 = vmatpush1.bf16.msra.mxu0 0
        %813 = vmatprep.subr.bf16.mxu0 0
        %814 = vmatpush1.bf16.msra.mxu0 0
        %815 = vmatprep.subr.bf16.mxu0 0
        %816 = vmatpush1.bf16.msra.mxu0 %v795
        %817 = vmatprep.subr.bf16.mxu0 0
        %818 = vmatpush2.bf16.msra.mxu0 0
        %819 = vmatprep.subr.bf16.mxu0 0
        %820 = vmatpush2.bf16.msra.mxu0 0
        %821 = vmatprep.subr.bf16.mxu0 0
        %822 = vmatpush2.bf16.msra.mxu0 0
        %823 = vmatprep.subr.bf16.mxu0 0
        %824 = vmatpush2.bf16.msra.mxu0 0
        %825 = vmatprep.subr.bf16.mxu0 0
        %826 = vmatpush2.bf16.msra.mxu0 0
        %827 = vmatprep.subr.bf16.mxu0 0
        %828 = vmatpush2.bf16.msra.mxu0 0
        %829 = vmatprep.subr.bf16.mxu0 0
        %830 = vmatpush2.bf16.msra.mxu0 0
        %831 = vmatprep.subr.bf16.mxu0 0
        %832 = vmatpush2.bf16.msra.mxu0 0
        %833 = vmatprep.mubr.bf16.mxu0 0
        %834 = vmatmul.mubr.bf16.gmra.mxu0 %v799
        %v835 = vpop.f32.mrf.mxu0
        %v836 = vadd.f32 0.0, %v835
        %v837 = vpop.f32.mrf.mxu0
        %v838 = vpop.f32.mrf.mxu0
        %v839 = vpop.f32.mrf.mxu0
        %840 = vdwg.mxu0
        %841 = vst.msk [vmem:[#allocation2] sm:$0xff] %vm797, %v836
        %s842 = scalar_lea.vmem %s7, 8
        %v843 = vld [vmem:[%s842] sm:$0xf]
        %v844 = vld [vmem:[%s842 + $0x4] sm:$0xf]
        %v847 = vunpack.c.l.b16 %v843
        %v848 = vunpack.c.l.b16 %v844
        %v849 = vpack.c.b16 %v848, %v847
        %851 = vmatprep.subr.bf16.mxu0 0
        %852 = vmatpush1.bf16.msra.mxu0 0
        %853 = vmatprep.subr.bf16.mxu0 0
        %854 = vmatpush1.bf16.msra.mxu0 0
        %855 = vmatprep.subr.bf16.mxu0 0
        %856 = vmatpush1.bf16.msra.mxu0 0
        %857 = vmatprep.subr.bf16.mxu0 0
        %858 = vmatpush1.bf16.msra.mxu0 0
        %859 = vmatprep.subr.bf16.mxu0 0
        %860 = vmatpush1.bf16.msra.mxu0 0
        %861 = vmatprep.subr.bf16.mxu0 0
        %862 = vmatpush1.bf16.msra.mxu0 0
        %863 = vmatprep.subr.bf16.mxu0 0
        %864 = vmatpush1.bf16.msra.mxu0 0
        %865 = vmatprep.subr.bf16.mxu0 0
        %866 = vmatpush1.bf16.msra.mxu0 %v849
        %867 = vmatprep.subr.bf16.mxu0 0
        %868 = vmatpush2.bf16.msra.mxu0 0
        %869 = vmatprep.subr.bf16.mxu0 0
        %870 = vmatpush2.bf16.msra.mxu0 0
        %871 = vmatprep.subr.bf16.mxu0 0
        %872 = vmatpush2.bf16.msra.mxu0 0
        %873 = vmatprep.subr.bf16.mxu0 0
        %874 = vmatpush2.bf16.msra.mxu0 0
        %875 = vmatprep.subr.bf16.mxu0 0
        %876 = vmatpush2.bf16.msra.mxu0 0
        %877 = vmatprep.subr.bf16.mxu0 0
        %878 = vmatpush2.bf16.msra.mxu0 0
        %879 = vmatprep.subr.bf16.mxu0 0
        %880 = vmatpush2.bf16.msra.mxu0 0
        %881 = vmatprep.subr.bf16.mxu0 0
        %882 = vmatpush2.bf16.msra.mxu0 0
        %883 = vmatprep.mubr.bf16.mxu0 0
        %884 = vmatmul.mubr.bf16.gmra.mxu0 %v799
        %v885 = vpop.f32.mrf.mxu0
        %v886 = vadd.f32 0.0, %v885
        %v887 = vpop.f32.mrf.mxu0
        %v888 = vpop.f32.mrf.mxu0
        %v889 = vpop.f32.mrf.mxu0
        %890 = vdwg.mxu0
        %891 = vst.msk [vmem:[#allocation2 + $0x8] sm:$0xff] %vm797, %v886
        %s892 = scalar_lea.vmem %s7, 16
        %v893 = vld [vmem:[%s892] sm:$0xf]
        %v894 = vld [vmem:[%s892 + $0x4] sm:$0xf]
        %v897 = vunpack.c.l.b16 %v893
        %v898 = vunpack.c.l.b16 %v894
        %v899 = vpack.c.b16 %v898, %v897
        %901 = vmatprep.subr.bf16.mxu0 0
        %902 = vmatpush1.bf16.msra.mxu0 0
        %903 = vmatprep.subr.bf16.mxu0 0
        %904 = vmatpush1.bf16.msra.mxu0 0
        %905 = vmatprep.subr.bf16.mxu0 0
        %906 = vmatpush1.bf16.msra.mxu0 0
        %907 = vmatprep.subr.bf16.mxu0 0
        %908 = vmatpush1.bf16.msra.mxu0 0
        %909 = vmatprep.subr.bf16.mxu0 0
        %910 = vmatpush1.bf16.msra.mxu0 0
        %911 = vmatprep.subr.bf16.mxu0 0
        %912 = vmatpush1.bf16.msra.mxu0 0
        %913 = vmatprep.subr.bf16.mxu0 0
        %914 = vmatpush1.bf16.msra.mxu0 0
        %915 = vmatprep.subr.bf16.mxu0 0
        %916 = vmatpush1.bf16.msra.mxu0 %v899
        %917 = vmatprep.subr.bf16.mxu0 0
        %918 = vmatpush2.bf16.msra.mxu0 0
        %919 = vmatprep.subr.bf16.mxu0 0
        %920 = vmatpush2.bf16.msra.mxu0 0
        %921 = vmatprep.subr.bf16.mxu0 0
        %922 = vmatpush2.bf16.msra.mxu0 0
        %923 = vmatprep.subr.bf16.mxu0 0
        %924 = vmatpush2.bf16.msra.mxu0 0
        %925 = vmatprep.subr.bf16.mxu0 0
        %926 = vmatpush2.bf16.msra.mxu0 0
        %927 = vmatprep.subr.bf16.mxu0 0
        %928 = vmatpush2.bf16.msra.mxu0 0
        %929 = vmatprep.subr.bf16.mxu0 0
        %930 = vmatpush2.bf16.msra.mxu0 0
        %931 = vmatprep.subr.bf16.mxu0 0
        %932 = vmatpush2.bf16.msra.mxu0 0
        %933 = vmatprep.mubr.bf16.mxu0 0
        %934 = vmatmul.mubr.bf16.gmra.mxu0 %v799
        %v935 = vpop.f32.mrf.mxu0
        %v936 = vadd.f32 0.0, %v935
        %v937 = vpop.f32.mrf.mxu0
        %v938 = vpop.f32.mrf.mxu0
        %v939 = vpop.f32.mrf.mxu0
        %940 = vdwg.mxu0
        %941 = vst.msk [vmem:[#allocation2 + $0x10] sm:$0xff] %vm797, %v936
        %s942 = scalar_lea.vmem %s7, 24
        %v943 = vld [vmem:[%s942] sm:$0xf]
        %v944 = vld [vmem:[%s942 + $0x4] sm:$0xf]
        %v947 = vunpack.c.l.b16 %v943
        %v948 = vunpack.c.l.b16 %v944
        %v949 = vpack.c.b16 %v948, %v947
        %951 = vmatprep.subr.bf16.mxu0 0
        %952 = vmatpush1.bf16.msra.mxu0 0
        %953 = vmatprep.subr.bf16.mxu0 0
        %954 = vmatpush1.bf16.msra.mxu0 0
        %955 = vmatprep.subr.bf16.mxu0 0
        %956 = vmatpush1.bf16.msra.mxu0 0
        %957 = vmatprep.subr.bf16.mxu0 0
        %958 = vmatpush1.bf16.msra.mxu0 0
        %959 = vmatprep.subr.bf16.mxu0 0
        %960 = vmatpush1.bf16.msra.mxu0 0
        %961 = vmatprep.subr.bf16.mxu0 0
        %962 = vmatpush1.bf16.msra.mxu0 0
        %963 = vmatprep.subr.bf16.mxu0 0
        %964 = vmatpush1.bf16.msra.mxu0 0
        %965 = vmatprep.subr.bf16.mxu0 0
        %966 = vmatpush1.bf16.msra.mxu0 %v949
        %967 = vmatprep.subr.bf16.mxu0 0
        %968 = vmatpush2.bf16.msra.mxu0 0
        %969 = vmatprep.subr.bf16.mxu0 0
        %970 = vmatpush2.bf16.msra.mxu0 0
        %971 = vmatprep.subr.bf16.mxu0 0
        %972 = vmatpush2.bf16.msra.mxu0 0
        %973 = vmatprep.subr.bf16.mxu0 0
        %974 = vmatpush2.bf16.msra.mxu0 0
        %975 = vmatprep.subr.bf16.mxu0 0
        %976 = vmatpush2.bf16.msra.mxu0 0
        %977 = vmatprep.subr.bf16.mxu0 0
        %978 = vmatpush2.bf16.msra.mxu0 0
        %979 = vmatprep.subr.bf16.mxu0 0
        %980 = vmatpush2.bf16.msra.mxu0 0
        %981 = vmatprep.subr.bf16.mxu0 0
        %982 = vmatpush2.bf16.msra.mxu0 0
        %983 = vmatprep.mubr.bf16.mxu0 0
        %984 = vmatmul.mubr.bf16.gmra.mxu0 %v799
        %v985 = vpop.f32.mrf.mxu0
        %v986 = vadd.f32 0.0, %v985
        %v987 = vpop.f32.mrf.mxu0
        %v988 = vpop.f32.mrf.mxu0
        %v989 = vpop.f32.mrf.mxu0
        %990 = vdwg.mxu0
        %991 = vst.msk [vmem:[#allocation2 + $0x18] sm:$0xff] %vm797, %v986
        %v992 = vld [vmem:[#allocation2] sm:$0xff]
        %v993 = vld [vmem:[#allocation2 + $0x8] sm:$0xff]
        %v994 = vld [vmem:[#allocation2 + $0x10] sm:$0xff]
        %v995 = vld [vmem:[#allocation2 + $0x18] sm:$0xff]
        %v996 = vpack.c.bf16 %v993, %v992
        %v997 = vpack.c.bf16 %v995, %v994
        %v998 = vld [vmem:[#allocation8] sm:$0xff]
        %v999 = vld [vmem:[#allocation8 + $0x8] sm:$0xff]
        %v1000 = vld [vmem:[#allocation8 + $0x10] sm:$0xff]
        %v1001 = vld [vmem:[#allocation8 + $0x18] sm:$0xff]
        %v1002 = vld [vmem:[#allocation8 + $0x20] sm:$0xff]
        %v1003 = vld [vmem:[#allocation8 + $0x28] sm:$0xff]
        %v1004 = vld [vmem:[#allocation8 + $0x30] sm:$0xff]
        %v1005 = vld [vmem:[#allocation8 + $0x38] sm:$0xff]
        %v1006 = vld [vmem:[#allocation8 + $0x40] sm:$0xff]
        %v1007 = vld [vmem:[#allocation8 + $0x48] sm:$0xff]
        %v1008 = vld [vmem:[#allocation8 + $0x50] sm:$0xff]
        %v1009 = vld [vmem:[#allocation8 + $0x58] sm:$0xff]
        %v1010 = vld [vmem:[#allocation8 + $0x60] sm:$0xff]
        %v1011 = vld [vmem:[#allocation8 + $0x68] sm:$0xff]
        %v1012 = vld [vmem:[#allocation8 + $0x70] sm:$0xff]
        %v1013 = vld [vmem:[#allocation8 + $0x78] sm:$0xff]
        %v1014 = vld [vmem:[#allocation8 + $0x80] sm:$0xff]
        %v1015 = vld [vmem:[#allocation8 + $0x88] sm:$0xff]
        %v1016 = vld [vmem:[#allocation8 + $0x90] sm:$0xff]
        %v1017 = vld [vmem:[#allocation8 + $0x98] sm:$0xff]
        %v1018 = vld [vmem:[#allocation8 + $0xa0] sm:$0xff]
        %v1019 = vld [vmem:[#allocation8 + $0xa8] sm:$0xff]
        %v1020 = vld [vmem:[#allocation8 + $0xb0] sm:$0xff]
        %v1021 = vld [vmem:[#allocation8 + $0xb8] sm:$0xff]
        %v1022 = vld [vmem:[#allocation8 + $0xc0] sm:$0xff]
        %v1023 = vld [vmem:[#allocation8 + $0xc8] sm:$0xff]
        %v1024 = vld [vmem:[#allocation8 + $0xd0] sm:$0xff]
        %v1025 = vld [vmem:[#allocation8 + $0xd8] sm:$0xff]
        %v1026 = vld [vmem:[#allocation8 + $0xe0] sm:$0xff]
        %v1027 = vld [vmem:[#allocation8 + $0xe8] sm:$0xff]
        %v1028 = vld [vmem:[%s619] sm:$0xff]
        %v1029 = vmul.f32 %v998, %v1028
        %v1030 = vmul.f32 %v999, %v1028
        %v1031 = vmul.f32 %v1000, %v1028
        %v1032 = vmul.f32 %v1001, %v1028
        %v1033 = vmul.f32 %v1002, %v1028
        %v1034 = vmul.f32 %v1003, %v1028
        %v1035 = vmul.f32 %v1004, %v1028
        %v1036 = vmul.f32 %v1005, %v1028
        %v1037 = vmul.f32 %v1006, %v1028
        %v1038 = vmul.f32 %v1007, %v1028
        %v1039 = vmul.f32 %v1008, %v1028
        %v1040 = vmul.f32 %v1009, %v1028
        %v1041 = vmul.f32 %v1010, %v1028
        %v1042 = vmul.f32 %v1011, %v1028
        %v1043 = vmul.f32 %v1012, %v1028
        %v1044 = vmul.f32 %v1013, %v1028
        %v1045 = vmul.f32 %v1014, %v1028
        %v1046 = vmul.f32 %v1015, %v1028
        %v1047 = vmul.f32 %v1016, %v1028
        %v1048 = vmul.f32 %v1017, %v1028
        %v1049 = vmul.f32 %v1018, %v1028
        %v1050 = vmul.f32 %v1019, %v1028
        %v1051 = vmul.f32 %v1020, %v1028
        %v1052 = vmul.f32 %v1021, %v1028
        %v1053 = vmul.f32 %v1022, %v1028
        %v1054 = vmul.f32 %v1023, %v1028
        %v1055 = vmul.f32 %v1024, %v1028
        %v1056 = vmul.f32 %v1025, %v1028
        %v1057 = vmul.f32 %v1026, %v1028
        %v1058 = vmul.f32 %v1027, %v1028
        %v1059 = vpack.c.bf16 %v1030, %v1029
        %v1060 = vpack.c.bf16 %v1032, %v1031
        %v1061 = vpack.c.bf16 %v1034, %v1033
        %v1062 = vpack.c.bf16 %v1036, %v1035
        %v1063 = vpack.c.bf16 %v1038, %v1037
        %v1064 = vpack.c.bf16 %v1040, %v1039
        %v1065 = vpack.c.bf16 %v1042, %v1041
        %v1066 = vpack.c.bf16 %v1044, %v1043
        %v1067 = vpack.c.bf16 %v1046, %v1045
        %v1068 = vpack.c.bf16 %v1048, %v1047
        %v1069 = vpack.c.bf16 %v1050, %v1049
        %v1070 = vpack.c.bf16 %v1052, %v1051
        %v1071 = vpack.c.bf16 %v1054, %v1053
        %v1072 = vpack.c.bf16 %v1056, %v1055
        %v1073 = vpack.c.bf16 %v1058, %v1057
        %vm1074 = vcmask 261120
        %v1076 = vsel %vm1074, %v1059, 0
        %v1079 = vsel %vm1074, %v1060, 0
        %v1082 = vsel %vm1074, %v1061, 0
        %v1085 = vsel %vm1074, %v1062, 0
        %v1088 = vsel %vm1074, %v1063, 0
        %v1091 = vsel %vm1074, %v1064, 0
        %v1094 = vsel %vm1074, %v1065, 0
        %v1097 = vsel %vm1074, %v1066, 0
        %v1100 = vsel %vm1074, %v1067, 0
        %v1103 = vsel %vm1074, %v1068, 0
        %v1106 = vsel %vm1074, %v1069, 0
        %v1109 = vsel %vm1074, %v1070, 0
        %v1112 = vsel %vm1074, %v1071, 0
        %v1115 = vsel %vm1074, %v1072, 0
        %v1118 = vsel %vm1074, %v1073, 0
        %1120 = vmatprep.subr.bf16.mxu0 0
        %1121 = vmatpush1.bf16.msra.mxu0 0
        %1122 = vmatprep.subr.bf16.mxu0 0
        %1123 = vmatpush1.bf16.msra.mxu0 0
        %1124 = vmatprep.subr.bf16.mxu0 0
        %1125 = vmatpush1.bf16.msra.mxu0 0
        %1126 = vmatprep.subr.bf16.mxu0 0
        %1127 = vmatpush1.bf16.msra.mxu0 0
        %1128 = vmatprep.subr.bf16.mxu0 0
        %1129 = vmatpush1.bf16.msra.mxu0 0
        %1130 = vmatprep.subr.bf16.mxu0 0
        %1131 = vmatpush1.bf16.msra.mxu0 0
        %1132 = vmatprep.subr.bf16.mxu0 0
        %1133 = vmatpush1.bf16.msra.mxu0 %v997
        %1134 = vmatprep.subr.bf16.mxu0 0
        %1135 = vmatpush1.bf16.msra.mxu0 %v996
        %1136 = vmatprep.subr.bf16.mxu0 0
        %1137 = vmatpush2.bf16.msra.mxu0 0
        %1138 = vmatprep.subr.bf16.mxu0 0
        %1139 = vmatpush2.bf16.msra.mxu0 0
        %1140 = vmatprep.subr.bf16.mxu0 0
        %1141 = vmatpush2.bf16.msra.mxu0 0
        %1142 = vmatprep.subr.bf16.mxu0 0
        %1143 = vmatpush2.bf16.msra.mxu0 0
        %1144 = vmatprep.subr.bf16.mxu0 0
        %1145 = vmatpush2.bf16.msra.mxu0 0
        %1146 = vmatprep.subr.bf16.mxu0 0
        %1147 = vmatpush2.bf16.msra.mxu0 0
        %1148 = vmatprep.subr.bf16.mxu0 0
        %1149 = vmatpush2.bf16.msra.mxu0 0
        %1150 = vmatprep.subr.bf16.mxu0 0
        %1151 = vmatpush2.bf16.msra.mxu0 0
        %1152 = vmatprep.mubr.bf16.mxu0 0
        %1153 = vmatmul.mubr.bf16.gmra.mxu0 %v1076
        %v1154 = vpop.f32.mrf.mxu0
        %v1155 = vadd.f32 0.0, %v1154
        %v1156 = vpop.f32.mrf.mxu0
        %v1157 = vpop.f32.mrf.mxu0
        %v1158 = vadd.f32 0.0, %v1157
        %v1159 = vpop.f32.mrf.mxu0
        %1160 = vmatprep.mubr.bf16.mxu0 0
        %1161 = vmatmul.mubr.bf16.gmra.mxu0 %v1079
        %v1162 = vpop.f32.mrf.mxu0
        %v1163 = vadd.f32 0.0, %v1162
        %v1164 = vpop.f32.mrf.mxu0
        %v1165 = vpop.f32.mrf.mxu0
        %v1166 = vadd.f32 0.0, %v1165
        %v1167 = vpop.f32.mrf.mxu0
        %1168 = vmatprep.mubr.bf16.mxu0 0
        %1169 = vmatmul.mubr.bf16.gmra.mxu0 %v1082
        %v1170 = vpop.f32.mrf.mxu0
        %v1171 = vadd.f32 0.0, %v1170
        %v1172 = vpop.f32.mrf.mxu0
        %v1173 = vpop.f32.mrf.mxu0
        %v1174 = vadd.f32 0.0, %v1173
        %v1175 = vpop.f32.mrf.mxu0
        %1176 = vmatprep.mubr.bf16.mxu0 0
        %1177 = vmatmul.mubr.bf16.gmra.mxu0 %v1085
        %v1178 = vpop.f32.mrf.mxu0
        %v1179 = vadd.f32 0.0, %v1178
        %v1180 = vpop.f32.mrf.mxu0
        %v1181 = vpop.f32.mrf.mxu0
        %v1182 = vadd.f32 0.0, %v1181
        %v1183 = vpop.f32.mrf.mxu0
        %1184 = vmatprep.mubr.bf16.mxu0 0
        %1185 = vmatmul.mubr.bf16.gmra.mxu0 %v1088
        %v1186 = vpop.f32.mrf.mxu0
        %v1187 = vadd.f32 0.0, %v1186
        %v1188 = vpop.f32.mrf.mxu0
        %v1189 = vpop.f32.mrf.mxu0
        %v1190 = vadd.f32 0.0, %v1189
        %v1191 = vpop.f32.mrf.mxu0
        %1192 = vmatprep.mubr.bf16.mxu0 0
        %1193 = vmatmul.mubr.bf16.gmra.mxu0 %v1091
        %v1194 = vpop.f32.mrf.mxu0
        %v1195 = vadd.f32 0.0, %v1194
        %v1196 = vpop.f32.mrf.mxu0
        %v1197 = vpop.f32.mrf.mxu0
        %v1198 = vadd.f32 0.0, %v1197
        %v1199 = vpop.f32.mrf.mxu0
        %1200 = vmatprep.mubr.bf16.mxu0 0
        %1201 = vmatmul.mubr.bf16.gmra.mxu0 %v1094
        %v1202 = vpop.f32.mrf.mxu0
        %v1203 = vadd.f32 0.0, %v1202
        %v1204 = vpop.f32.mrf.mxu0
        %v1205 = vpop.f32.mrf.mxu0
        %v1206 = vadd.f32 0.0, %v1205
        %v1207 = vpop.f32.mrf.mxu0
        %1208 = vmatprep.mubr.bf16.mxu0 0
        %1209 = vmatmul.mubr.bf16.gmra.mxu0 %v1097
        %v1210 = vpop.f32.mrf.mxu0
        %v1211 = vadd.f32 0.0, %v1210
        %v1212 = vpop.f32.mrf.mxu0
        %v1213 = vpop.f32.mrf.mxu0
        %v1214 = vadd.f32 0.0, %v1213
        %v1215 = vpop.f32.mrf.mxu0
        %1216 = vmatprep.mubr.bf16.mxu0 0
        %1217 = vmatmul.mubr.bf16.gmra.mxu0 %v1100
        %v1218 = vpop.f32.mrf.mxu0
        %v1219 = vadd.f32 0.0, %v1218
        %v1220 = vpop.f32.mrf.mxu0
        %v1221 = vpop.f32.mrf.mxu0
        %v1222 = vadd.f32 0.0, %v1221
        %v1223 = vpop.f32.mrf.mxu0
        %1224 = vmatprep.mubr.bf16.mxu0 0
        %1225 = vmatmul.mubr.bf16.gmra.mxu0 %v1103
        %v1226 = vpop.f32.mrf.mxu0
        %v1227 = vadd.f32 0.0, %v1226
        %v1228 = vpop.f32.mrf.mxu0
        %v1229 = vpop.f32.mrf.mxu0
        %v1230 = vadd.f32 0.0, %v1229
        %v1231 = vpop.f32.mrf.mxu0
        %1232 = vmatprep.mubr.bf16.mxu0 0
        %1233 = vmatmul.mubr.bf16.gmra.mxu0 %v1106
        %v1234 = vpop.f32.mrf.mxu0
        %v1235 = vadd.f32 0.0, %v1234
        %v1236 = vpop.f32.mrf.mxu0
        %v1237 = vpop.f32.mrf.mxu0
        %v1238 = vadd.f32 0.0, %v1237
        %v1239 = vpop.f32.mrf.mxu0
        %1240 = vmatprep.mubr.bf16.mxu0 0
        %1241 = vmatmul.mubr.bf16.gmra.mxu0 %v1109
        %v1242 = vpop.f32.mrf.mxu0
        %v1243 = vadd.f32 0.0, %v1242
        %v1244 = vpop.f32.mrf.mxu0
        %v1245 = vpop.f32.mrf.mxu0
        %v1246 = vadd.f32 0.0, %v1245
        %v1247 = vpop.f32.mrf.mxu0
        %1248 = vmatprep.mubr.bf16.mxu0 0
        %1249 = vmatmul.mubr.bf16.gmra.mxu0 %v1112
        %v1250 = vpop.f32.mrf.mxu0
        %v1251 = vadd.f32 0.0, %v1250
        %v1252 = vpop.f32.mrf.mxu0
        %v1253 = vpop.f32.mrf.mxu0
        %v1254 = vadd.f32 0.0, %v1253
        %v1255 = vpop.f32.mrf.mxu0
        %1256 = vmatprep.mubr.bf16.mxu0 0
        %1257 = vmatmul.mubr.bf16.gmra.mxu0 %v1115
        %v1258 = vpop.f32.mrf.mxu0
        %v1259 = vadd.f32 0.0, %v1258
        %v1260 = vpop.f32.mrf.mxu0
        %v1261 = vpop.f32.mrf.mxu0
        %v1262 = vadd.f32 0.0, %v1261
        %v1263 = vpop.f32.mrf.mxu0
        %1264 = vmatprep.mubr.bf16.mxu0 0
        %1265 = vmatmul.mubr.bf16.gmra.mxu0 %v1118
        %v1266 = vpop.f32.mrf.mxu0
        %v1267 = vadd.f32 0.0, %v1266
        %v1268 = vpop.f32.mrf.mxu0
        %v1269 = vpop.f32.mrf.mxu0
        %v1270 = vadd.f32 0.0, %v1269
        %v1271 = vpop.f32.mrf.mxu0
        %1272 = vdwg.mxu0
        %v1273 = vmax.f32 %v1155, 0.0
        %v1274 = vmax.f32 %v1158, 0.0
        %v1275 = vmax.f32 %v1163, 0.0
        %v1276 = vmax.f32 %v1166, 0.0
        %v1277 = vmax.f32 %v1171, 0.0
        %v1278 = vmax.f32 %v1174, 0.0
        %v1279 = vmax.f32 %v1179, 0.0
        %v1280 = vmax.f32 %v1182, 0.0
        %v1281 = vmax.f32 %v1187, 0.0
        %v1282 = vmax.f32 %v1190, 0.0
        %v1283 = vmax.f32 %v1195, 0.0
        %v1284 = vmax.f32 %v1198, 0.0
        %v1285 = vmax.f32 %v1203, 0.0
        %v1286 = vmax.f32 %v1206, 0.0
        %v1287 = vmax.f32 %v1211, 0.0
        %v1288 = vmax.f32 %v1214, 0.0
        %v1289 = vmax.f32 %v1219, 0.0
        %v1290 = vmax.f32 %v1222, 0.0
        %v1291 = vmax.f32 %v1227, 0.0
        %v1292 = vmax.f32 %v1230, 0.0
        %v1293 = vmax.f32 %v1235, 0.0
        %v1294 = vmax.f32 %v1238, 0.0
        %v1295 = vmax.f32 %v1243, 0.0
        %v1296 = vmax.f32 %v1246, 0.0
        %v1297 = vmax.f32 %v1251, 0.0
        %v1298 = vmax.f32 %v1254, 0.0
        %v1299 = vmax.f32 %v1259, 0.0
        %v1300 = vmax.f32 %v1262, 0.0
        %v1301 = vmax.f32 %v1267, 0.0
        %v1302 = vmax.f32 %v1270, 0.0
        %v1303 = vpack.c.bf16 %v1274, %v1273
        %v1304 = vpack.c.bf16 %v1276, %v1275
        %v1305 = vpack.c.bf16 %v1278, %v1277
        %v1306 = vpack.c.bf16 %v1280, %v1279
        %v1307 = vpack.c.bf16 %v1282, %v1281
        %v1308 = vpack.c.bf16 %v1284, %v1283
        %v1309 = vpack.c.bf16 %v1286, %v1285
        %v1310 = vpack.c.bf16 %v1288, %v1287
        %v1311 = vpack.c.bf16 %v1290, %v1289
        %v1312 = vpack.c.bf16 %v1292, %v1291
        %v1313 = vpack.c.bf16 %v1294, %v1293
        %v1314 = vpack.c.bf16 %v1296, %v1295
        %v1315 = vpack.c.bf16 %v1298, %v1297
        %v1316 = vpack.c.bf16 %v1300, %v1299
        %v1317 = vpack.c.bf16 %v1302, %v1301
        %v1318 = vld [vmem:[%s5] sm:$0xff]
        %v1319 = vld [vmem:[%s5 + $0x8] sm:$0xff]
        %v1320 = vld [vmem:[%s5 + $0x10] sm:$0xff]
        %v1321 = vld [vmem:[%s5 + $0x18] sm:$0xff]
        %v1322 = vld [vmem:[%s5 + $0x20] sm:$0xff]
        %v1323 = vld [vmem:[%s5 + $0x28] sm:$0xff]
        %v1324 = vld [vmem:[%s5 + $0x30] sm:$0xff]
        %v1325 = vld [vmem:[%s5 + $0x38] sm:$0xff]
        %v1326 = vld [vmem:[%s5 + $0x40] sm:$0xff]
        %v1327 = vld [vmem:[%s5 + $0x48] sm:$0xff]
        %v1338 = vunpack.c.l.b16 %v1318
        %v1339 = vunpack.c.h.b16 %v1318
        %v1340 = vunpack.c.l.b16 %v1319
        %v1341 = vunpack.c.h.b16 %v1319
        %v1342 = vunpack.c.l.b16 %v1320
        %v1343 = vunpack.c.h.b16 %v1320
        %v1344 = vunpack.c.l.b16 %v1321
        %v1345 = vunpack.c.h.b16 %v1321
        %v1346 = vunpack.c.l.b16 %v1322
        %v1347 = vunpack.c.h.b16 %v1322
        %v1348 = vunpack.c.l.b16 %v1323
        %v1349 = vunpack.c.h.b16 %v1323
        %v1350 = vunpack.c.l.b16 %v1324
        %v1351 = vunpack.c.h.b16 %v1324
        %v1352 = vunpack.c.l.b16 %v1325
        %v1353 = vunpack.c.h.b16 %v1325
        %v1354 = vunpack.c.l.b16 %v1326
        %v1355 = vunpack.c.h.b16 %v1326
        %v1356 = vunpack.c.l.b16 %v1327
        %v1357 = vunpack.c.h.b16 %v1327
        %v1358 = vpack.c.b16 %v1340, %v1338
        %v1359 = vpack.c.b16 %v1341, %v1339
        %v1360 = vpack.c.b16 %v1344, %v1342
        %v1361 = vpack.c.b16 %v1345, %v1343
        %v1362 = vpack.c.b16 %v1348, %v1346
        %v1363 = vpack.c.b16 %v1349, %v1347
        %v1364 = vpack.c.b16 %v1352, %v1350
        %v1365 = vpack.c.b16 %v1353, %v1351
        %v1366 = vpack.c.b16 %v1356, %v1354
        %v1367 = vpack.c.b16 %v1357, %v1355
        %vm1373 = vcmask 916480
        %v1375 = vsel %vm1373, %v1359, 0
        %v1378 = vsel %vm1373, %v1361, 0
        %v1381 = vsel %vm1373, %v1363, 0
        %v1384 = vsel %vm1373, %v1365, 0
        %v1387 = vsel %vm1373, %v1367, 0
        %1389 = vmatprep.subr.bf16.mxu0 0
        %1390 = vmatpush1.bf16.msra.mxu0 %v1310
        %1391 = vmatprep.subr.bf16.mxu0 0
        %1392 = vmatpush1.bf16.msra.mxu0 %v1309
        %1393 = vmatprep.subr.bf16.mxu0 0
        %1394 = vmatpush1.bf16.msra.mxu0 %v1308
        %1395 = vmatprep.subr.bf16.mxu0 0
        %1396 = vmatpush1.bf16.msra.mxu0 %v1307
        %1397 = vmatprep.subr.bf16.mxu0 0
        %1398 = vmatpush1.bf16.msra.mxu0 %v1306
        %1399 = vmatprep.subr.bf16.mxu0 0
        %1400 = vmatpush1.bf16.msra.mxu0 %v1305
        %1401 = vmatprep.subr.bf16.mxu0 0
        %1402 = vmatpush1.bf16.msra.mxu0 %v1304
        %1403 = vmatprep.subr.bf16.mxu0 0
        %1404 = vmatpush1.bf16.msra.mxu0 %v1303
        %1405 = vmatprep.subr.bf16.mxu0 0
        %1406 = vmatpush2.bf16.msra.mxu0 0
        %1407 = vmatprep.subr.bf16.mxu0 0
        %1408 = vmatpush2.bf16.msra.mxu0 %v1317
        %1409 = vmatprep.subr.bf16.mxu0 0
        %1410 = vmatpush2.bf16.msra.mxu0 %v1316
        %1411 = vmatprep.subr.bf16.mxu0 0
        %1412 = vmatpush2.bf16.msra.mxu0 %v1315
        %1413 = vmatprep.subr.bf16.mxu0 0
        %1414 = vmatpush2.bf16.msra.mxu0 %v1314
        %1415 = vmatprep.subr.bf16.mxu0 0
        %1416 = vmatpush2.bf16.msra.mxu0 %v1313
        %1417 = vmatprep.subr.bf16.mxu0 0
        %1418 = vmatpush2.bf16.msra.mxu0 %v1312
        %1419 = vmatprep.subr.bf16.mxu0 0
        %1420 = vmatpush2.bf16.msra.mxu0 %v1311
        %1421 = vmatprep.mubr.bf16.mxu0 %v1375
        %1422 = vmatmul.mubr.bf16.gmra.mxu0 %v1358
        %v1423 = vpop.f32.mrf.mxu0
        %v1424 = vadd.f32 0.0, %v1423
        %v1425 = vpop.f32.mrf.mxu0
        %v1426 = vpop.f32.mrf.mxu0
        %v1427 = vadd.f32 0.0, %v1426
        %v1428 = vpop.f32.mrf.mxu0
        %1429 = vmatprep.mubr.bf16.mxu0 %v1378
        %1430 = vmatmul.mubr.bf16.gmra.mxu0 %v1360
        %v1431 = vpop.f32.mrf.mxu0
        %v1432 = vadd.f32 0.0, %v1431
        %v1433 = vpop.f32.mrf.mxu0
        %v1434 = vpop.f32.mrf.mxu0
        %v1435 = vadd.f32 0.0, %v1434
        %v1436 = vpop.f32.mrf.mxu0
        %1437 = vmatprep.mubr.bf16.mxu0 %v1381
        %1438 = vmatmul.mubr.bf16.gmra.mxu0 %v1362
        %v1439 = vpop.f32.mrf.mxu0
        %v1440 = vadd.f32 0.0, %v1439
        %v1441 = vpop.f32.mrf.mxu0
        %v1442 = vpop.f32.mrf.mxu0
        %v1443 = vadd.f32 0.0, %v1442
        %v1444 = vpop.f32.mrf.mxu0
        %1445 = vmatprep.mubr.bf16.mxu0 %v1384
        %1446 = vmatmul.mubr.bf16.gmra.mxu0 %v1364
        %v1447 = vpop.f32.mrf.mxu0
        %v1448 = vadd.f32 0.0, %v1447
        %v1449 = vpop.f32.mrf.mxu0
        %v1450 = vpop.f32.mrf.mxu0
        %v1451 = vadd.f32 0.0, %v1450
        %v1452 = vpop.f32.mrf.mxu0
        %1453 = vmatprep.mubr.bf16.mxu0 %v1387
        %1454 = vmatmul.mubr.bf16.gmra.mxu0 %v1366
        %v1455 = vpop.f32.mrf.mxu0
        %v1456 = vadd.f32 0.0, %v1455
        %v1457 = vpop.f32.mrf.mxu0
        %v1458 = vpop.f32.mrf.mxu0
        %v1459 = vadd.f32 0.0, %v1458
        %v1460 = vpop.f32.mrf.mxu0
        %1461 = vdwg.mxu0
        %v1462 = vld [vmem:[%s628] sm:$0xff]
        %v1463 = vpack.c.bf16 %v1424, %v1424
        %v1464 = vld [vmem:[#allocation11] sm:$0xf]
        %v1465 = vld [vmem:[#allocation11 + $0x4] sm:$0xf]
        %v1466 = vld [vmem:[#allocation12] sm:$0x1]
        %v1468 = vlaneseq
        %v1469 = vshrl.u32 %v1468, 7
        %v1470 = vsub.s32 0, %v1469
        %v1471 = vrot.slane %v1466, %v1470
        %v1475 = vunpack.c.l.b16 %v1464
        %v1476 = vunpack.c.l.b16 %v1465
        %v1477 = vpack.c.b16 %v1476, %v1475
        %v1480 = vsel %vm797, %v1463, 0
        %1482 = vmatprep.subr.bf16.mxu0 0
        %1483 = vmatpush1.bf16.msra.mxu0 0
        %1484 = vmatprep.subr.bf16.mxu0 0
        %1485 = vmatpush1.bf16.msra.mxu0 0
        %1486 = vmatprep.subr.bf16.mxu0 0
        %1487 = vmatpush1.bf16.msra.mxu0 0
        %1488 = vmatprep.subr.bf16.mxu0 0
        %1489 = vmatpush1.bf16.msra.mxu0 0
        %1490 = vmatprep.subr.bf16.mxu0 0
        %1491 = vmatpush1.bf16.msra.mxu0 0
        %1492 = vmatprep.subr.bf16.mxu0 0
        %1493 = vmatpush1.bf16.msra.mxu0 0
        %1494 = vmatprep.subr.bf16.mxu0 0
        %1495 = vmatpush1.bf16.msra.mxu0 0
        %1496 = vmatprep.subr.bf16.mxu0 0
        %1497 = vmatpush1.bf16.msra.mxu0 %v1477
        %1498 = vmatprep.subr.bf16.mxu0 0
        %1499 = vmatpush2.bf16.msra.mxu0 0
        %1500 = vmatprep.subr.bf16.mxu0 0
        %1501 = vmatpush2.bf16.msra.mxu0 0
        %1502 = vmatprep.subr.bf16.mxu0 0
        %1503 = vmatpush2.bf16.msra.mxu0 0
        %1504 = vmatprep.subr.bf16.mxu0 0
        %1505 = vmatpush2.bf16.msra.mxu0 0
        %1506 = vmatprep.subr.bf16.mxu0 0
        %1507 = vmatpush2.bf16.msra.mxu0 0
        %1508 = vmatprep.subr.bf16.mxu0 0
        %1509 = vmatpush2.bf16.msra.mxu0 0
        %1510 = vmatprep.subr.bf16.mxu0 0
        %1511 = vmatpush2.bf16.msra.mxu0 0
        %1512 = vmatprep.subr.bf16.mxu0 0
        %1513 = vmatpush2.bf16.msra.mxu0 0
        %1514 = vmatprep.mubr.bf16.mxu0 0
        %1515 = vmatmul.mubr.bf16.gmra.mxu0 %v1480
        %v1516 = vpop.f32.mrf.mxu0
        %v1517 = vadd.f32 %v1471, %v1516
        %v1518 = vpop.f32.mrf.mxu0
        %v1519 = vpop.f32.mrf.mxu0
        %v1520 = vpop.f32.mrf.mxu0
        %1521 = vdwg.mxu0
        %v1522 = vtanh.pop %v1517
        %v1523 = vpack.c.bf16 %v1522, %v1522
        %v1524 = vld [vmem:[%s10] sm:$0xf]
        %v1525 = vld [vmem:[%s10 + $0x4] sm:$0xf]
        %v1526 = vld [vmem:[#allocation14] sm:$0x1]
        %v1528 = vlaneseq
        %v1529 = vshrl.u32 %v1528, 7
        %v1530 = vsub.s32 0, %v1529
        %v1531 = vrot.slane %v1526, %v1530
        %v1535 = vunpack.c.l.b16 %v1524
        %v1536 = vunpack.c.l.b16 %v1525
        %v1537 = vpack.c.b16 %v1536, %v1535
        %v1540 = vsel %vm797, %v1523, 0
        %1542 = vmatprep.subr.bf16.mxu0 0
        %1543 = vmatpush1.bf16.msra.mxu0 0
        %1544 = vmatprep.subr.bf16.mxu0 0
        %1545 = vmatpush1.bf16.msra.mxu0 0
        %1546 = vmatprep.subr.bf16.mxu0 0
        %1547 = vmatpush1.bf16.msra.mxu0 0
        %1548 = vmatprep.subr.bf16.mxu0 0
        %1549 = vmatpush1.bf16.msra.mxu0 0
        %1550 = vmatprep.subr.bf16.mxu0 0
        %1551 = vmatpush1.bf16.msra.mxu0 0
        %1552 = vmatprep.subr.bf16.mxu0 0
        %1553 = vmatpush1.bf16.msra.mxu0 0
        %1554 = vmatprep.subr.bf16.mxu0 0
        %1555 = vmatpush1.bf16.msra.mxu0 0
        %1556 = vmatprep.subr.bf16.mxu0 0
        %1557 = vmatpush1.bf16.msra.mxu0 %v1537
        %1558 = vmatprep.subr.bf16.mxu0 0
        %1559 = vmatpush2.bf16.msra.mxu0 0
        %1560 = vmatprep.subr.bf16.mxu0 0
        %1561 = vmatpush2.bf16.msra.mxu0 0
        %1562 = vmatprep.subr.bf16.mxu0 0
        %1563 = vmatpush2.bf16.msra.mxu0 0
        %1564 = vmatprep.subr.bf16.mxu0 0
        %1565 = vmatpush2.bf16.msra.mxu0 0
        %1566 = vmatprep.subr.bf16.mxu0 0
        %1567 = vmatpush2.bf16.msra.mxu0 0
        %1568 = vmatprep.subr.bf16.mxu0 0
        %1569 = vmatpush2.bf16.msra.mxu0 0
        %1570 = vmatprep.subr.bf16.mxu0 0
        %1571 = vmatpush2.bf16.msra.mxu0 0
        %1572 = vmatprep.subr.bf16.mxu0 0
        %1573 = vmatpush2.bf16.msra.mxu0 0
        %1574 = vmatprep.mubr.bf16.mxu0 0
        %1575 = vmatmul.mubr.bf16.gmra.mxu0 %v1540
        %v1576 = vpop.f32.mrf.mxu0
        %v1577 = vadd.f32 %v1531, %v1576
        %v1578 = vpop.f32.mrf.mxu0
        %v1579 = vpop.f32.mrf.mxu0
        %v1580 = vpop.f32.mrf.mxu0
        %1581 = vdwg.mxu0
        %v1582 = vadd.f32 %v1577, 2.0
        %v1583 = vxor.u32 %v1582, 2147483648
        %v1584 = vmul.f32 %v1583, 1.442695
        %v1585 = vpow.pop %v1584
        %v1586 = vadd.f32 %v1585, 1.0
        %v1587 = vrcp.pop %v1586
        %v1588 = vmul.f32 1.0, %v1587
        %1590 = vrot.lane.b32.xlu0 %v1577, 120
        %v1591 = vpop.permute.xlu0 %1590
        %v1593 = vadd.f32 %v1462, %v1591
        %v1594 = vmul.f32 %v1593, %v1588
        %v1595 = vlog2.pop %v1588
        %v1596 = vmul.f32 %v1595, 0.6931472
        %v1597 = vadd.f32 %v1596, 0.0
        %s1598 = scalar_lea.vmem [#allocation11], 8
        %v1599 = vld [vmem:[%s1598] sm:$0xf]
        %v1600 = vld [vmem:[%s1598 + $0x4] sm:$0xf]
        %s1601 = scalar_lea.vmem [#allocation12], 1
        %v1602 = vld [vmem:[%s1601] sm:$0x1]
        %v1604 = vlaneseq
        %v1605 = vshrl.u32 %v1604, 7
        %v1606 = vsub.s32 0, %v1605
        %v1607 = vrot.slane %v1602, %v1606
        %v1611 = vunpack.c.l.b16 %v1599
        %v1612 = vunpack.c.l.b16 %v1600
        %v1613 = vpack.c.b16 %v1612, %v1611
        %1615 = vmatprep.subr.bf16.mxu0 0
        %1616 = vmatpush1.bf16.msra.mxu0 0
        %1617 = vmatprep.subr.bf16.mxu0 0
        %1618 = vmatpush1.bf16.msra.mxu0 0
        %1619 = vmatprep.subr.bf16.mxu0 0
        %1620 = vmatpush1.bf16.msra.mxu0 0
        %1621 = vmatprep.subr.bf16.mxu0 0
        %1622 = vmatpush1.bf16.msra.mxu0 0
        %1623 = vmatprep.subr.bf16.mxu0 0
        %1624 = vmatpush1.bf16.msra.mxu0 0
        %1625 = vmatprep.subr.bf16.mxu0 0
        %1626 = vmatpush1.bf16.msra.mxu0 0
        %1627 = vmatprep.subr.bf16.mxu0 0
        %1628 = vmatpush1.bf16.msra.mxu0 0
        %1629 = vmatprep.subr.bf16.mxu0 0
        %1630 = vmatpush1.bf16.msra.mxu0 %v1613
        %1631 = vmatprep.subr.bf16.mxu0 0
        %1632 = vmatpush2.bf16.msra.mxu0 0
        %1633 = vmatprep.subr.bf16.mxu0 0
        %1634 = vmatpush2.bf16.msra.mxu0 0
        %1635 = vmatprep.subr.bf16.mxu0 0
        %1636 = vmatpush2.bf16.msra.mxu0 0
        %1637 = vmatprep.subr.bf16.mxu0 0
        %1638 = vmatpush2.bf16.msra.mxu0 0
        %1639 = vmatprep.subr.bf16.mxu0 0
        %1640 = vmatpush2.bf16.msra.mxu0 0
        %1641 = vmatprep.subr.bf16.mxu0 0
        %1642 = vmatpush2.bf16.msra.mxu0 0
        %1643 = vmatprep.subr.bf16.mxu0 0
        %1644 = vmatpush2.bf16.msra.mxu0 0
        %1645 = vmatprep.subr.bf16.mxu0 0
        %1646 = vmatpush2.bf16.msra.mxu0 0
        %1647 = vmatprep.mubr.bf16.mxu0 0
        %1648 = vmatmul.mubr.bf16.gmra.mxu0 %v1480
        %v1649 = vpop.f32.mrf.mxu0
        %v1650 = vadd.f32 %v1607, %v1649
        %v1651 = vpop.f32.mrf.mxu0
        %v1652 = vpop.f32.mrf.mxu0
        %v1653 = vpop.f32.mrf.mxu0
        %1654 = vdwg.mxu0
        %v1655 = vtanh.pop %v1650
        %v1656 = vpack.c.bf16 %v1655, %v1655
        %s1657 = scalar_lea.vmem %s10, 8
        %v1658 = vld [vmem:[%s1657] sm:$0xf]
        %v1659 = vld [vmem:[%s1657 + $0x4] sm:$0xf]
        %s1660 = scalar_lea.vmem [#allocation14], 1
        %v1661 = vld [vmem:[%s1660] sm:$0x1]
        %v1663 = vlaneseq
        %v1664 = vshrl.u32 %v1663, 7
        %v1665 = vsub.s32 0, %v1664
        %v1666 = vrot.slane %v1661, %v1665
        %v1670 = vunpack.c.l.b16 %v1658
        %v1671 = vunpack.c.l.b16 %v1659
        %v1672 = vpack.c.b16 %v1671, %v1670
        %v1675 = vsel %vm797, %v1656, 0
        %1677 = vmatprep.subr.bf16.mxu0 0
        %1678 = vmatpush1.bf16.msra.mxu0 0
        %1679 = vmatprep.subr.bf16.mxu0 0
        %1680 = vmatpush1.bf16.msra.mxu0 0
        %1681 = vmatprep.subr.bf16.mxu0 0
        %1682 = vmatpush1.bf16.msra.mxu0 0
        %1683 = vmatprep.subr.bf16.mxu0 0
        %1684 = vmatpush1.bf16.msra.mxu0 0
        %1685 = vmatprep.subr.bf16.mxu0 0
        %1686 = vmatpush1.bf16.msra.mxu0 0
        %1687 = vmatprep.subr.bf16.mxu0 0
        %1688 = vmatpush1.bf16.msra.mxu0 0
        %1689 = vmatprep.subr.bf16.mxu0 0
        %1690 = vmatpush1.bf16.msra.mxu0 0
        %1691 = vmatprep.subr.bf16.mxu0 0
        %1692 = vmatpush1.bf16.msra.mxu0 %v1672
        %1693 = vmatprep.subr.bf16.mxu0 0
        %1694 = vmatpush2.bf16.msra.mxu0 0
        %1695 = vmatprep.subr.bf16.mxu0 0
        %1696 = vmatpush2.bf16.msra.mxu0 0
        %1697 = vmatprep.subr.bf16.mxu0 0
        %1698 = vmatpush2.bf16.msra.mxu0 0
        %1699 = vmatprep.subr.bf16.mxu0 0
        %1700 = vmatpush2.bf16.msra.mxu0 0
        %1701 = vmatprep.subr.bf16.mxu0 0
        %1702 = vmatpush2.bf16.msra.mxu0 0
        %1703 = vmatprep.subr.bf16.mxu0 0
        %1704 = vmatpush2.bf16.msra.mxu0 0
        %1705 = vmatprep.subr.bf16.mxu0 0
        %1706 = vmatpush2.bf16.msra.mxu0 0
        %1707 = vmatprep.subr.bf16.mxu0 0
        %1708 = vmatpush2.bf16.msra.mxu0 0
        %1709 = vmatprep.mubr.bf16.mxu0 0
        %1710 = vmatmul.mubr.bf16.gmra.mxu0 %v1675
        %v1711 = vpop.f32.mrf.mxu0
        %v1712 = vadd.f32 %v1666, %v1711
        %v1713 = vpop.f32.mrf.mxu0
        %v1714 = vpop.f32.mrf.mxu0
        %v1715 = vpop.f32.mrf.mxu0
        %1716 = vdwg.mxu0
        %v1717 = vadd.f32 %v1712, 2.0
        %v1718 = vxor.u32 %v1717, 2147483648
        %v1719 = vmul.f32 %v1718, 1.442695
        %v1720 = vpow.pop %v1719
        %v1721 = vadd.f32 %v1720, 1.0
        %v1722 = vrcp.pop %v1721
        %v1723 = vmul.f32 1.0, %v1722
        %1725 = vrot.lane.b32.xlu0 %v1712, 120
        %v1726 = vpop.permute.xlu0 %1725
        %v1728 = vadd.f32 %v1594, %v1726
        %v1729 = vmul.f32 %v1728, %v1723
        %v1730 = vlog2.pop %v1723
        %v1731 = vmul.f32 %v1730, 0.6931472
        %v1732 = vadd.f32 %v1597, %v1731
        %v1733 = vld [vmem:[%s730] sm:$0xff]
        %v1734 = vld [vmem:[%s730 + $0x8] sm:$0xff]
        %v1735 = vld [vmem:[%s730 + $0x10] sm:$0x3f]
        %v1736 = vpack.c.bf16 %v1432, %v1427
        %v1737 = vpack.c.bf16 %v1435, %v1435
        %v1738 = vpack.c.bf16 %v1443, %v1440
        %v1739 = vpack.c.bf16 %v1448, %v1448
        %v1740 = vpack.c.bf16 %v1456, %v1451
        %v1741 = vpack.c.bf16 %v1459, %v1459
        %v1742 = vld [vmem:[%s12] sm:$0xf]
        %v1743 = vld [vmem:[%s12 + $0x4] sm:$0xf]
        %v1744 = vld [vmem:[%s12 + $0x8] sm:$0xf]
        %v1745 = vld [vmem:[%s12 + $0xc] sm:$0xf]
        %v1746 = vld [vmem:[%s12 + $0x10] sm:$0xf]
        %v1747 = vld [vmem:[%s12 + $0x14] sm:$0xf]
        %v1750 = vunpack.c.l.b16 %v1744
        %v1751 = vunpack.c.l.b16 %v1745
        %v1752 = vpack.c.b16 %v1751, %v1750
        %v1755 = vsel %vm797, %v1738, 0
        %v1758 = vsel %vm797, %v1739, 0
        %1760 = vmatprep.subr.bf16.mxu0 0
        %1761 = vmatpush1.bf16.msra.mxu0 0
        %1762 = vmatprep.subr.bf16.mxu0 0
        %1763 = vmatpush1.bf16.msra.mxu0 0
        %1764 = vmatprep.subr.bf16.mxu0 0
        %1765 = vmatpush1.bf16.msra.mxu0 0
        %1766 = vmatprep.subr.bf16.mxu0 0
        %1767 = vmatpush1.bf16.msra.mxu0 0
        %1768 = vmatprep.subr.bf16.mxu0 0
        %1769 = vmatpush1.bf16.msra.mxu0 0
        %1770 = vmatprep.subr.bf16.mxu0 0
        %1771 = vmatpush1.bf16.msra.mxu0 0
        %1772 = vmatprep.subr.bf16.mxu0 0
        %1773 = vmatpush1.bf16.msra.mxu0 0
        %1774 = vmatprep.subr.bf16.mxu0 0
        %1775 = vmatpush1.bf16.msra.mxu0 %v1752
        %1776 = vmatprep.subr.bf16.mxu0 0
        %1777 = vmatpush2.bf16.msra.mxu0 0
        %1778 = vmatprep.subr.bf16.mxu0 0
        %1779 = vmatpush2.bf16.msra.mxu0 0
        %1780 = vmatprep.subr.bf16.mxu0 0
        %1781 = vmatpush2.bf16.msra.mxu0 0
        %1782 = vmatprep.subr.bf16.mxu0 0
        %1783 = vmatpush2.bf16.msra.mxu0 0
        %1784 = vmatprep.subr.bf16.mxu0 0
        %1785 = vmatpush2.bf16.msra.mxu0 0
        %1786 = vmatprep.subr.bf16.mxu0 0
        %1787 = vmatpush2.bf16.msra.mxu0 0
        %1788 = vmatprep.subr.bf16.mxu0 0
        %1789 = vmatpush2.bf16.msra.mxu0 0
        %1790 = vmatprep.subr.bf16.mxu0 0
        %1791 = vmatpush2.bf16.msra.mxu0 0
        %1792 = vmatprep.mubr.bf16.mxu0 0
        %1793 = vmatmul.mubr.bf16.gmra.mxu0 %v1755
        %v1794 = vpop.f32.mrf.mxu0
        %v1795 = vadd.f32 0.0, %v1794
        %v1796 = vpop.f32.mrf.mxu0
        %v1797 = vpop.f32.mrf.mxu0
        %v1798 = vadd.f32 0.0, %v1797
        %v1799 = vpop.f32.mrf.mxu0
        %1800 = vmatprep.mubr.bf16.mxu0 0
        %1801 = vmatmul.mubr.bf16.gmra.mxu0 %v1758
        %v1802 = vpop.f32.mrf.mxu0
        %v1803 = vadd.f32 0.0, %v1802
        %v1804 = vpop.f32.mrf.mxu0
        %v1805 = vpop.f32.mrf.mxu0
        %v1806 = vpop.f32.mrf.mxu0
        %1807 = vdwg.mxu0
        %v1810 = vunpack.c.l.b16 %v1742
        %v1811 = vunpack.c.l.b16 %v1743
        %v1812 = vpack.c.b16 %v1811, %v1810
        %v1815 = vsel %vm797, %v1736, 0
        %v1818 = vsel %vm797, %v1737, 0
        %1820 = vmatprep.subr.bf16.mxu0 0
        %1821 = vmatpush1.bf16.msra.mxu0 0
        %1822 = vmatprep.subr.bf16.mxu0 0
        %1823 = vmatpush1.bf16.msra.mxu0 0
        %1824 = vmatprep.subr.bf16.mxu0 0
        %1825 = vmatpush1.bf16.msra.mxu0 0
        %1826 = vmatprep.subr.bf16.mxu0 0
        %1827 = vmatpush1.bf16.msra.mxu0 0
        %1828 = vmatprep.subr.bf16.mxu0 0
        %1829 = vmatpush1.bf16.msra.mxu0 0
        %1830 = vmatprep.subr.bf16.mxu0 0
        %1831 = vmatpush1.bf16.msra.mxu0 0
        %1832 = vmatprep.subr.bf16.mxu0 0
        %1833 = vmatpush1.bf16.msra.mxu0 0
        %1834 = vmatprep.subr.bf16.mxu0 0
        %1835 = vmatpush1.bf16.msra.mxu0 %v1812
        %1836 = vmatprep.subr.bf16.mxu0 0
        %1837 = vmatpush2.bf16.msra.mxu0 0
        %1838 = vmatprep.subr.bf16.mxu0 0
        %1839 = vmatpush2.bf16.msra.mxu0 0
        %1840 = vmatprep.subr.bf16.mxu0 0
        %1841 = vmatpush2.bf16.msra.mxu0 0
        %1842 = vmatprep.subr.bf16.mxu0 0
        %1843 = vmatpush2.bf16.msra.mxu0 0
        %1844 = vmatprep.subr.bf16.mxu0 0
        %1845 = vmatpush2.bf16.msra.mxu0 0
        %1846 = vmatprep.subr.bf16.mxu0 0
        %1847 = vmatpush2.bf16.msra.mxu0 0
        %1848 = vmatprep.subr.bf16.mxu0 0
        %1849 = vmatpush2.bf16.msra.mxu0 0
        %1850 = vmatprep.subr.bf16.mxu0 0
        %1851 = vmatpush2.bf16.msra.mxu0 0
        %1852 = vmatprep.mubr.bf16.mxu0 0
        %1853 = vmatmul.mubr.bf16.gmra.mxu0 %v1815
        %v1854 = vpop.f32.mrf.mxu0
        %v1855 = vadd.f32 %v1795, %v1854
        %v1856 = vpop.f32.mrf.mxu0
        %v1857 = vpop.f32.mrf.mxu0
        %v1858 = vadd.f32 %v1798, %v1857
        %v1859 = vpop.f32.mrf.mxu0
        %1860 = vmatprep.mubr.bf16.mxu0 0
        %1861 = vmatmul.mubr.bf16.gmra.mxu0 %v1818
        %v1862 = vpop.f32.mrf.mxu0
        %v1863 = vadd.f32 %v1803, %v1862
        %v1864 = vpop.f32.mrf.mxu0
        %v1865 = vpop.f32.mrf.mxu0
        %v1866 = vpop.f32.mrf.mxu0
        %1867 = vdwg.mxu0
        %v1870 = vunpack.c.l.b16 %v1746
        %v1871 = vunpack.c.l.b16 %v1747
        %v1872 = vpack.c.b16 %v1871, %v1870
        %v1875 = vsel %vm797, %v1740, 0
        %v1878 = vsel %vm797, %v1741, 0
        %1880 = vmatprep.subr.bf16.mxu0 0
        %1881 = vmatpush1.bf16.msra.mxu0 0
        %1882 = vmatprep.subr.bf16.mxu0 0
        %1883 = vmatpush1.bf16.msra.mxu0 0
        %1884 = vmatprep.subr.bf16.mxu0 0
        %1885 = vmatpush1.bf16.msra.mxu0 0
        %1886 = vmatprep.subr.bf16.mxu0 0
        %1887 = vmatpush1.bf16.msra.mxu0 0
        %1888 = vmatprep.subr.bf16.mxu0 0
        %1889 = vmatpush1.bf16.msra.mxu0 0
        %1890 = vmatprep.subr.bf16.mxu0 0
        %1891 = vmatpush1.bf16.msra.mxu0 0
        %1892 = vmatprep.subr.bf16.mxu0 0
        %1893 = vmatpush1.bf16.msra.mxu0 0
        %1894 = vmatprep.subr.bf16.mxu0 0
        %1895 = vmatpush1.bf16.msra.mxu0 %v1872
        %1896 = vmatprep.subr.bf16.mxu0 0
        %1897 = vmatpush2.bf16.msra.mxu0 0
        %1898 = vmatprep.subr.bf16.mxu0 0
        %1899 = vmatpush2.bf16.msra.mxu0 0
        %1900 = vmatprep.subr.bf16.mxu0 0
        %1901 = vmatpush2.bf16.msra.mxu0 0
        %1902 = vmatprep.subr.bf16.mxu0 0
        %1903 = vmatpush2.bf16.msra.mxu0 0
        %1904 = vmatprep.subr.bf16.mxu0 0
        %1905 = vmatpush2.bf16.msra.mxu0 0
        %1906 = vmatprep.subr.bf16.mxu0 0
        %1907 = vmatpush2.bf16.msra.mxu0 0
        %1908 = vmatprep.subr.bf16.mxu0 0
        %1909 = vmatpush2.bf16.msra.mxu0 0
        %1910 = vmatprep.subr.bf16.mxu0 0
        %1911 = vmatpush2.bf16.msra.mxu0 0
        %1912 = vmatprep.mubr.bf16.mxu0 0
        %1913 = vmatmul.mubr.bf16.gmra.mxu0 %v1875
        %v1914 = vpop.f32.mrf.mxu0
        %v1915 = vadd.f32 0.0, %v1914
        %v1916 = vpop.f32.mrf.mxu0
        %v1917 = vpop.f32.mrf.mxu0
        %v1918 = vadd.f32 0.0, %v1917
        %v1919 = vpop.f32.mrf.mxu0
        %1920 = vmatprep.mubr.bf16.mxu0 0
        %1921 = vmatmul.mubr.bf16.gmra.mxu0 %v1878
        %v1922 = vpop.f32.mrf.mxu0
        %v1923 = vadd.f32 0.0, %v1922
        %v1924 = vpop.f32.mrf.mxu0
        %v1925 = vpop.f32.mrf.mxu0
        %v1926 = vpop.f32.mrf.mxu0
        %1927 = vdwg.mxu0
        %v1928 = vadd.f32 %v1855, %v1915
        %v1929 = vadd.f32 %v1858, %v1918
        %v1930 = vadd.f32 %v1863, %v1923
        %v1931 = vld [vmem:[#allocation15] sm:$0x1]
        %v1933 = vlaneseq
        %v1934 = vshrl.u32 %v1933, 7
        %v1935 = vsub.s32 0, %v1934
        %v1936 = vrot.slane %v1931, %v1935
        %v1938 = vadd.f32 %v1928, %v1936
        %v1939 = vadd.f32 %v1929, %v1936
        %v1940 = vadd.f32 %v1930, %v1936
        %v1941 = vtanh.pop %v1938
        %v1942 = vtanh.pop %v1939
        %v1943 = vtanh.pop %v1940
        %v1944 = vpack.c.bf16 %v1942, %v1941
        %v1945 = vpack.c.bf16 %v1943, %v1943
        %v1946 = vld [vmem:[%s14] sm:$0xf]
        %v1947 = vld [vmem:[%s14 + $0x4] sm:$0xf]
        %v1948 = vld [vmem:[%s15] sm:$0x1]
        %v1950 = vlaneseq
        %v1951 = vshrl.u32 %v1950, 7
        %v1952 = vsub.s32 0, %v1951
        %v1953 = vrot.slane %v1948, %v1952
        %v1957 = vunpack.c.l.b16 %v1946
        %v1958 = vunpack.c.l.b16 %v1947
        %v1959 = vpack.c.b16 %v1958, %v1957
        %v1962 = vsel %vm797, %v1944, 0
        %v1965 = vsel %vm797, %v1945, 0
        %1967 = vmatprep.subr.bf16.mxu0 0
        %1968 = vmatpush1.bf16.msra.mxu0 0
        %1969 = vmatprep.subr.bf16.mxu0 0
        %1970 = vmatpush1.bf16.msra.mxu0 0
        %1971 = vmatprep.subr.bf16.mxu0 0
        %1972 = vmatpush1.bf16.msra.mxu0 0
        %1973 = vmatprep.subr.bf16.mxu0 0
        %1974 = vmatpush1.bf16.msra.mxu0 0
        %1975 = vmatprep.subr.bf16.mxu0 0
        %1976 = vmatpush1.bf16.msra.mxu0 0
        %1977 = vmatprep.subr.bf16.mxu0 0
        %1978 = vmatpush1.bf16.msra.mxu0 0
        %1979 = vmatprep.subr.bf16.mxu0 0
        %1980 = vmatpush1.bf16.msra.mxu0 0
        %1981 = vmatprep.subr.bf16.mxu0 0
        %1982 = vmatpush1.bf16.msra.mxu0 %v1959
        %1983 = vmatprep.subr.bf16.mxu0 0
        %1984 = vmatpush2.bf16.msra.mxu0 0
        %1985 = vmatprep.subr.bf16.mxu0 0
        %1986 = vmatpush2.bf16.msra.mxu0 0
        %1987 = vmatprep.subr.bf16.mxu0 0
        %1988 = vmatpush2.bf16.msra.mxu0 0
        %1989 = vmatprep.subr.bf16.mxu0 0
        %1990 = vmatpush2.bf16.msra.mxu0 0
        %1991 = vmatprep.subr.bf16.mxu0 0
        %1992 = vmatpush2.bf16.msra.mxu0 0
        %1993 = vmatprep.subr.bf16.mxu0 0
        %1994 = vmatpush2.bf16.msra.mxu0 0
        %1995 = vmatprep.subr.bf16.mxu0 0
        %1996 = vmatpush2.bf16.msra.mxu0 0
        %1997 = vmatprep.subr.bf16.mxu0 0
        %1998 = vmatpush2.bf16.msra.mxu0 0
        %1999 = vmatprep.mubr.bf16.mxu0 0
        %2000 = vmatmul.mubr.bf16.gmra.mxu0 %v1962
        %v2001 = vpop.f32.mrf.mxu0
        %v2002 = vadd.f32 %v1953, %v2001
        %v2003 = vpop.f32.mrf.mxu0
        %v2004 = vpop.f32.mrf.mxu0
        %v2005 = vadd.f32 %v1953, %v2004
        %v2006 = vpop.f32.mrf.mxu0
        %2007 = vmatprep.mubr.bf16.mxu0 0
        %2008 = vmatmul.mubr.bf16.gmra.mxu0 %v1965
        %v2009 = vpop.f32.mrf.mxu0
        %v2010 = vadd.f32 %v1953, %v2009
        %v2011 = vpop.f32.mrf.mxu0
        %v2012 = vpop.f32.mrf.mxu0
        %v2013 = vpop.f32.mrf.mxu0
        %2014 = vdwg.mxu0
        %v2015 = vadd.f32 %v2002, 2.0
        %v2016 = vadd.f32 %v2005, 2.0
        %v2017 = vadd.f32 %v2010, 2.0
        %v2018 = vxor.u32 %v2015, 2147483648
        %v2019 = vxor.u32 %v2016, 2147483648
        %v2020 = vxor.u32 %v2017, 2147483648
        %v2021 = vmul.f32 %v2018, 1.442695
        %v2022 = vpow.pop %v2021
        %v2023 = vmul.f32 %v2019, 1.442695
        %v2024 = vpow.pop %v2023
        %v2025 = vmul.f32 %v2020, 1.442695
        %v2026 = vpow.pop %v2025
        %v2027 = vadd.f32 %v2022, 1.0
        %v2028 = vadd.f32 %v2024, 1.0
        %v2029 = vadd.f32 %v2026, 1.0
        %v2030 = vrcp.pop %v2027
        %v2031 = vmul.f32 1.0, %v2030
        %v2032 = vrcp.pop %v2028
        %v2033 = vmul.f32 1.0, %v2032
        %v2034 = vrcp.pop %v2029
        %v2035 = vmul.f32 1.0, %v2034
        %2039 = vrot.lane.b32.xlu0 %v2002, 124
        %v2040 = vpop.permute.xlu0 %2039
        %2041 = vrot.lane.b32.xlu0 %v2005, 124
        %v2042 = vpop.permute.xlu0 %2041
        %2043 = vrot.lane.b32.xlu0 %v2010, 124
        %v2044 = vpop.permute.xlu0 %2043
        %v2048 = vadd.f32 %v1733, %v2040
        %v2049 = vadd.f32 %v1734, %v2042
        %v2050 = vadd.f32 %v1735, %v2044
        %v2051 = vmul.f32 %v2048, %v2031
        %v2052 = vmul.f32 %v2049, %v2033
        %v2053 = vmul.f32 %v2050, %v2035
        %v2054 = vlog2.pop %v2031
        %v2055 = vmul.f32 %v2054, 0.6931472
        %v2056 = vlog2.pop %v2033
        %v2057 = vmul.f32 %v2056, 0.6931472
        %v2058 = vlog2.pop %v2035
        %v2059 = vmul.f32 %v2058, 0.6931472
        %v2060 = vadd.f32 %v2055, 0.0
        %v2061 = vadd.f32 %v2057, 0.0
        %v2062 = vadd.f32 %v2059, 0.0
        %s2063 = scalar_lea.vmem %s12, 24
        %v2064 = vld [vmem:[%s2063] sm:$0xf]
        %v2065 = vld [vmem:[%s2063 + $0x4] sm:$0xf]
        %v2066 = vld [vmem:[%s2063 + $0x8] sm:$0xf]
        %v2067 = vld [vmem:[%s2063 + $0xc] sm:$0xf]
        %v2068 = vld [vmem:[%s2063 + $0x10] sm:$0xf]
        %v2069 = vld [vmem:[%s2063 + $0x14] sm:$0xf]
        %v2072 = vunpack.c.l.b16 %v2066
        %v2073 = vunpack.c.l.b16 %v2067
        %v2074 = vpack.c.b16 %v2073, %v2072
        %2076 = vmatprep.subr.bf16.mxu0 0
        %2077 = vmatpush1.bf16.msra.mxu0 0
        %2078 = vmatprep.subr.bf16.mxu0 0
        %2079 = vmatpush1.bf16.msra.mxu0 0
        %2080 = vmatprep.subr.bf16.mxu0 0
        %2081 = vmatpush1.bf16.msra.mxu0 0
        %2082 = vmatprep.subr.bf16.mxu0 0
        %2083 = vmatpush1.bf16.msra.mxu0 0
        %2084 = vmatprep.subr.bf16.mxu0 0
        %2085 = vmatpush1.bf16.msra.mxu0 0
        %2086 = vmatprep.subr.bf16.mxu0 0
        %2087 = vmatpush1.bf16.msra.mxu0 0
        %2088 = vmatprep.subr.bf16.mxu0 0
        %2089 = vmatpush1.bf16.msra.mxu0 0
        %2090 = vmatprep.subr.bf16.mxu0 0
        %2091 = vmatpush1.bf16.msra.mxu0 %v2074
        %2092 = vmatprep.subr.bf16.mxu0 0
        %2093 = vmatpush2.bf16.msra.mxu0 0
        %2094 = vmatprep.subr.bf16.mxu0 0
        %2095 = vmatpush2.bf16.msra.mxu0 0
        %2096 = vmatprep.subr.bf16.mxu0 0
        %2097 = vmatpush2.bf16.msra.mxu0 0
        %2098 = vmatprep.subr.bf16.mxu0 0
        %2099 = vmatpush2.bf16.msra.mxu0 0
        %2100 = vmatprep.subr.bf16.mxu0 0
        %2101 = vmatpush2.bf16.msra.mxu0 0
        %2102 = vmatprep.subr.bf16.mxu0 0
        %2103 = vmatpush2.bf16.msra.mxu0 0
        %2104 = vmatprep.subr.bf16.mxu0 0
        %2105 = vmatpush2.bf16.msra.mxu0 0
        %2106 = vmatprep.subr.bf16.mxu0 0
        %2107 = vmatpush2.bf16.msra.mxu0 0
        %2108 = vmatprep.mubr.bf16.mxu0 0
        %2109 = vmatmul.mubr.bf16.gmra.mxu0 %v1755
        %v2110 = vpop.f32.mrf.mxu0
        %v2111 = vadd.f32 0.0, %v2110
        %v2112 = vpop.f32.mrf.mxu0
        %v2113 = vpop.f32.mrf.mxu0
        %v2114 = vadd.f32 0.0, %v2113
        %v2115 = vpop.f32.mrf.mxu0
        %2116 = vmatprep.mubr.bf16.mxu0 0
        %2117 = vmatmul.mubr.bf16.gmra.mxu0 %v1758
        %v2118 = vpop.f32.mrf.mxu0
        %v2119 = vadd.f32 0.0, %v2118
        %v2120 = vpop.f32.mrf.mxu0
        %v2121 = vpop.f32.mrf.mxu0
        %v2122 = vpop.f32.mrf.mxu0
        %2123 = vdwg.mxu0
        %v2126 = vunpack.c.l.b16 %v2064
        %v2127 = vunpack.c.l.b16 %v2065
        %v2128 = vpack.c.b16 %v2127, %v2126
        %2130 = vmatprep.subr.bf16.mxu0 0
        %2131 = vmatpush1.bf16.msra.mxu0 0
        %2132 = vmatprep.subr.bf16.mxu0 0
        %2133 = vmatpush1.bf16.msra.mxu0 0
        %2134 = vmatprep.subr.bf16.mxu0 0
        %2135 = vmatpush1.bf16.msra.mxu0 0
        %2136 = vmatprep.subr.bf16.mxu0 0
        %2137 = vmatpush1.bf16.msra.mxu0 0
        %2138 = vmatprep.subr.bf16.mxu0 0
        %2139 = vmatpush1.bf16.msra.mxu0 0
        %2140 = vmatprep.subr.bf16.mxu0 0
        %2141 = vmatpush1.bf16.msra.mxu0 0
        %2142 = vmatprep.subr.bf16.mxu0 0
        %2143 = vmatpush1.bf16.msra.mxu0 0
        %2144 = vmatprep.subr.bf16.mxu0 0
        %2145 = vmatpush1.bf16.msra.mxu0 %v2128
        %2146 = vmatprep.subr.bf16.mxu0 0
        %2147 = vmatpush2.bf16.msra.mxu0 0
        %2148 = vmatprep.subr.bf16.mxu0 0
        %2149 = vmatpush2.bf16.msra.mxu0 0
        %2150 = vmatprep.subr.bf16.mxu0 0
        %2151 = vmatpush2.bf16.msra.mxu0 0
        %2152 = vmatprep.subr.bf16.mxu0 0
        %2153 = vmatpush2.bf16.msra.mxu0 0
        %2154 = vmatprep.subr.bf16.mxu0 0
        %2155 = vmatpush2.bf16.msra.mxu0 0
        %2156 = vmatprep.subr.bf16.mxu0 0
        %2157 = vmatpush2.bf16.msra.mxu0 0
        %2158 = vmatprep.subr.bf16.mxu0 0
        %2159 = vmatpush2.bf16.msra.mxu0 0
        %2160 = vmatprep.subr.bf16.mxu0 0
        %2161 = vmatpush2.bf16.msra.mxu0 0
        %2162 = vmatprep.mubr.bf16.mxu0 0
        %2163 = vmatmul.mubr.bf16.gmra.mxu0 %v1815
        %v2164 = vpop.f32.mrf.mxu0
        %v2165 = vadd.f32 %v2111, %v2164
        %v2166 = vpop.f32.mrf.mxu0
        %v2167 = vpop.f32.mrf.mxu0
        %v2168 = vadd.f32 %v2114, %v2167
        %v2169 = vpop.f32.mrf.mxu0
        %2170 = vmatprep.mubr.bf16.mxu0 0
        %2171 = vmatmul.mubr.bf16.gmra.mxu0 %v1818
        %v2172 = vpop.f32.mrf.mxu0
        %v2173 = vadd.f32 %v2119, %v2172
        %v2174 = vpop.f32.mrf.mxu0
        %v2175 = vpop.f32.mrf.mxu0
        %v2176 = vpop.f32.mrf.mxu0
        %2177 = vdwg.mxu0
        %v2180 = vunpack.c.l.b16 %v2068
        %v2181 = vunpack.c.l.b16 %v2069
        %v2182 = vpack.c.b16 %v2181, %v2180
        %2184 = vmatprep.subr.bf16.mxu0 0
        %2185 = vmatpush1.bf16.msra.mxu0 0
        %2186 = vmatprep.subr.bf16.mxu0 0
        %2187 = vmatpush1.bf16.msra.mxu0 0
        %2188 = vmatprep.subr.bf16.mxu0 0
        %2189 = vmatpush1.bf16.msra.mxu0 0
        %2190 = vmatprep.subr.bf16.mxu0 0
        %2191 = vmatpush1.bf16.msra.mxu0 0
        %2192 = vmatprep.subr.bf16.mxu0 0
        %2193 = vmatpush1.bf16.msra.mxu0 0
        %2194 = vmatprep.subr.bf16.mxu0 0
        %2195 = vmatpush1.bf16.msra.mxu0 0
        %2196 = vmatprep.subr.bf16.mxu0 0
        %2197 = vmatpush1.bf16.msra.mxu0 0
        %2198 = vmatprep.subr.bf16.mxu0 0
        %2199 = vmatpush1.bf16.msra.mxu0 %v2182
        %2200 = vmatprep.subr.bf16.mxu0 0
        %2201 = vmatpush2.bf16.msra.mxu0 0
        %2202 = vmatprep.subr.bf16.mxu0 0
        %2203 = vmatpush2.bf16.msra.mxu0 0
        %2204 = vmatprep.subr.bf16.mxu0 0
        %2205 = vmatpush2.bf16.msra.mxu0 0
        %2206 = vmatprep.subr.bf16.mxu0 0
        %2207 = vmatpush2.bf16.msra.mxu0 0
        %2208 = vmatprep.subr.bf16.mxu0 0
        %2209 = vmatpush2.bf16.msra.mxu0 0
        %2210 = vmatprep.subr.bf16.mxu0 0
        %2211 = vmatpush2.bf16.msra.mxu0 0
        %2212 = vmatprep.subr.bf16.mxu0 0
        %2213 = vmatpush2.bf16.msra.mxu0 0
        %2214 = vmatprep.subr.bf16.mxu0 0
        %2215 = vmatpush2.bf16.msra.mxu0 0
        %2216 = vmatprep.mubr.bf16.mxu0 0
        %2217 = vmatmul.mubr.bf16.gmra.mxu0 %v1875
        %v2218 = vpop.f32.mrf.mxu0
        %v2219 = vadd.f32 0.0, %v2218
        %v2220 = vpop.f32.mrf.mxu0
        %v2221 = vpop.f32.mrf.mxu0
        %v2222 = vadd.f32 0.0, %v2221
        %v2223 = vpop.f32.mrf.mxu0
        %2224 = vmatprep.mubr.bf16.mxu0 0
        %2225 = vmatmul.mubr.bf16.gmra.mxu0 %v1878
        %v2226 = vpop.f32.mrf.mxu0
        %v2227 = vadd.f32 0.0, %v2226
        %v2228 = vpop.f32.mrf.mxu0
        %v2229 = vpop.f32.mrf.mxu0
        %v2230 = vpop.f32.mrf.mxu0
        %2231 = vdwg.mxu0
        %v2232 = vadd.f32 %v2165, %v2219
        %v2233 = vadd.f32 %v2168, %v2222
        %v2234 = vadd.f32 %v2173, %v2227
        %s2235 = scalar_lea.vmem [#allocation15], 1
        %v2236 = vld [vmem:[%s2235] sm:$0x1]
        %v2238 = vlaneseq
        %v2239 = vshrl.u32 %v2238, 7
        %v2240 = vsub.s32 0, %v2239
        %v2241 = vrot.slane %v2236, %v2240
        %v2243 = vadd.f32 %v2232, %v2241
        %v2244 = vadd.f32 %v2233, %v2241
        %v2245 = vadd.f32 %v2234, %v2241
        %v2246 = vtanh.pop %v2243
        %v2247 = vtanh.pop %v2244
        %v2248 = vtanh.pop %v2245
        %v2249 = vpack.c.bf16 %v2247, %v2246
        %v2250 = vpack.c.bf16 %v2248, %v2248
        %s2251 = scalar_lea.vmem %s14, 8
        %v2252 = vld [vmem:[%s2251] sm:$0xf]
        %v2253 = vld [vmem:[%s2251 + $0x4] sm:$0xf]
        %s2254 = scalar_lea.vmem %s15, 1
        %v2255 = vld [vmem:[%s2254] sm:$0x1]
        %v2257 = vlaneseq
        %v2258 = vshrl.u32 %v2257, 7
        %v2259 = vsub.s32 0, %v2258
        %v2260 = vrot.slane %v2255, %v2259
        %v2264 = vunpack.c.l.b16 %v2252
        %v2265 = vunpack.c.l.b16 %v2253
        %v2266 = vpack.c.b16 %v2265, %v2264
        %v2269 = vsel %vm797, %v2249, 0
        %v2272 = vsel %vm797, %v2250, 0
        %2274 = vmatprep.subr.bf16.mxu0 0
        %2275 = vmatpush1.bf16.msra.mxu0 0
        %2276 = vmatprep.subr.bf16.mxu0 0
        %2277 = vmatpush1.bf16.msra.mxu0 0
        %2278 = vmatprep.subr.bf16.mxu0 0
        %2279 = vmatpush1.bf16.msra.mxu0 0
        %2280 = vmatprep.subr.bf16.mxu0 0
        %2281 = vmatpush1.bf16.msra.mxu0 0
        %2282 = vmatprep.subr.bf16.mxu0 0
        %2283 = vmatpush1.bf16.msra.mxu0 0
        %2284 = vmatprep.subr.bf16.mxu0 0
        %2285 = vmatpush1.bf16.msra.mxu0 0
        %2286 = vmatprep.subr.bf16.mxu0 0
        %2287 = vmatpush1.bf16.msra.mxu0 0
        %2288 = vmatprep.subr.bf16.mxu0 0
        %2289 = vmatpush1.bf16.msra.mxu0 %v2266
        %2290 = vmatprep.subr.bf16.mxu0 0
        %2291 = vmatpush2.bf16.msra.mxu0 0
        %2292 = vmatprep.subr.bf16.mxu0 0
        %2293 = vmatpush2.bf16.msra.mxu0 0
        %2294 = vmatprep.subr.bf16.mxu0 0
        %2295 = vmatpush2.bf16.msra.mxu0 0
        %2296 = vmatprep.subr.bf16.mxu0 0
        %2297 = vmatpush2.bf16.msra.mxu0 0
        %2298 = vmatprep.subr.bf16.mxu0 0
        %2299 = vmatpush2.bf16.msra.mxu0 0
        %2300 = vmatprep.subr.bf16.mxu0 0
        %2301 = vmatpush2.bf16.msra.mxu0 0
        %2302 = vmatprep.subr.bf16.mxu0 0
        %2303 = vmatpush2.bf16.msra.mxu0 0
        %2304 = vmatprep.subr.bf16.mxu0 0
        %2305 = vmatpush2.bf16.msra.mxu0 0
        %2306 = vmatprep.mubr.bf16.mxu0 0
        %2307 = vmatmul.mubr.bf16.gmra.mxu0 %v2269
        %v2308 = vpop.f32.mrf.mxu0
        %v2309 = vadd.f32 %v2260, %v2308
        %v2310 = vpop.f32.mrf.mxu0
        %v2311 = vpop.f32.mrf.mxu0
        %v2312 = vadd.f32 %v2260, %v2311
        %v2313 = vpop.f32.mrf.mxu0
        %2314 = vmatprep.mubr.bf16.mxu0 0
        %2315 = vmatmul.mubr.bf16.gmra.mxu0 %v2272
        %v2316 = vpop.f32.mrf.mxu0
        %v2317 = vadd.f32 %v2260, %v2316
        %v2318 = vpop.f32.mrf.mxu0
        %v2319 = vpop.f32.mrf.mxu0
        %v2320 = vpop.f32.mrf.mxu0
        %2321 = vdwg.mxu0
        %v2322 = vadd.f32 %v2309, 2.0
        %v2323 = vadd.f32 %v2312, 2.0
        %v2324 = vadd.f32 %v2317, 2.0
        %v2325 = vxor.u32 %v2322, 2147483648
        %v2326 = vxor.u32 %v2323, 2147483648
        %v2327 = vxor.u32 %v2324, 2147483648
        %v2328 = vmul.f32 %v2325, 1.442695
        %v2329 = vpow.pop %v2328
        %v2330 = vmul.f32 %v2326, 1.442695
        %v2331 = vpow.pop %v2330
        %v2332 = vmul.f32 %v2327, 1.442695
        %v2333 = vpow.pop %v2332
        %v2334 = vadd.f32 %v2329, 1.0
        %v2335 = vadd.f32 %v2331, 1.0
        %v2336 = vadd.f32 %v2333, 1.0
        %v2337 = vrcp.pop %v2334
        %v2338 = vmul.f32 1.0, %v2337
        %v2339 = vrcp.pop %v2335
        %v2340 = vmul.f32 1.0, %v2339
        %v2341 = vrcp.pop %v2336
        %v2342 = vmul.f32 1.0, %v2341
        %2346 = vrot.lane.b32.xlu0 %v2309, 124
        %v2347 = vpop.permute.xlu0 %2346
        %2348 = vrot.lane.b32.xlu0 %v2312, 124
        %v2349 = vpop.permute.xlu0 %2348
        %2350 = vrot.lane.b32.xlu0 %v2317, 124
        %v2351 = vpop.permute.xlu0 %2350
        %v2355 = vadd.f32 %v2051, %v2347
        %v2356 = vadd.f32 %v2052, %v2349
        %v2357 = vadd.f32 %v2053, %v2351
        %v2358 = vmul.f32 %v2355, %v2338
        %v2359 = vmul.f32 %v2356, %v2340
        %v2360 = vmul.f32 %v2357, %v2342
        %v2361 = vlog2.pop %v2338
        %v2362 = vmul.f32 %v2361, 0.6931472
        %v2363 = vlog2.pop %v2340
        %v2364 = vmul.f32 %v2363, 0.6931472
        %v2365 = vlog2.pop %v2342
        %v2366 = vmul.f32 %v2365, 0.6931472
        %v2367 = vadd.f32 %v2060, %v2362
        %v2368 = vadd.f32 %v2061, %v2364
        %v2369 = vadd.f32 %v2062, %v2366
        %2371 = vrot.lane.b32.xlu0 %v1732, 8
        %v2372 = vpop.permute.xlu0 %2371
        %v2374 = vsel %vm740, %v1729, %v2372
        %2375 = vst.msk [vmem:[%s714] sm:$0xff] %vm797, %v2374
        %2379 = vrot.lane.b32.xlu0 %v2367, 4
        %v2380 = vpop.permute.xlu0 %2379
        %2381 = vrot.lane.b32.xlu0 %v2368, 4
        %v2382 = vpop.permute.xlu0 %2381
        %2383 = vrot.lane.b32.xlu0 %v2369, 4
        %v2384 = vpop.permute.xlu0 %2383
        %vm2388 = vcmask 31744
        %v2389 = vsel %vm2388, %v2358, %v2380
        %v2390 = vsel %vm2388, %v2359, %v2382
        %v2391 = vsel %vm2388, %v2360, %v2384
        %2392 = vst.msk [vmem:[%s735] sm:$0xff] %vm740, %v2389
        %2393 = vst.msk [vmem:[%s735 + $0x8] sm:$0xff] %vm740, %v2390
        %vm2394 = vcmask 62464
        %2395 = vst.msk [vmem:[%s735 + $0x10] sm:$0x3f] %vm2394, %v2391
        %s2396 = sand.u32 %s405, 1
        %s2397 = scalar_lea.sflag [#allocation5], %s2396
        %s2398 = sand.u32 %s405, 1
        %s2399 = smul.addr %s2398, 8
        %s2400 = scalar_lea.vmem [#allocation17], %s2399
        %p2401 = scmp.lt.s32.totalorder %s41, 1
        %s2402 = scalar_select %p2401, %s41, 1
        %s2403 = smul.addr %s2402, 3
        %s2404 = smul.addr %s2403, 8
        %s2405 = scalar_lea.vmem %s17, %s2404
        // Predicated region
        $region117: #{tpu_custom_call.1} parent=83 // pred_check
          %p2406 = pneg %p415
        $region118: #{tpu_custom_call.1} parent=83 // pred_check_branch
          %2408 = sbr.rel (%p2406) target = $region120
        $region119: #{tpu_custom_call.1} parent=83 // pred_region
          %s2410 = ssub.s32 128, 128
          %2411 = vsyncadd %s2397, %s2410
          %s2412 = smul.addr %s41, 128
          %s2413 = scalar_lea.hbm %s16, %s2412
          %s2415 = sshll.u32 %s2400, 4
          %s2416 = int_to_ptr.vmem [resolvable:$true] %s2415
          %2418 = dma.vmem_to_hbm [thread:$0]  %s2416, 128, %s2413, %s2397
        $region120: #{tpu_custom_call.1} parent=83 // pred_fallthru
          _
        // Predicated region
        $region121: #{tpu_custom_call.1} parent=83 // pred_check
          %p2419 = pneg %p441
        $region122: #{tpu_custom_call.1} parent=83 // pred_check_branch
          %2421 = sbr.rel (%p2419) target = $region124
        $region123: #{tpu_custom_call.1} parent=83 // pred_region
          _
        $region124: #{tpu_custom_call.1} parent=83 // pred_fallthru
          _
      $region84: #{tpu_custom_call.1} parent=5 // pred_fallthru
        _
      %p2422 = scmp.le.s32.totalorder 2, %s36
      // Predicated region
      $region125: #{tpu_custom_call.1} parent=5 // pred_check
        %p2423 = pneg %p2422
      $region126: #{tpu_custom_call.1} parent=5 // pred_check_branch
        %2425 = sbr.rel (%p2423) target = $region128
      $region127: #{tpu_custom_call.1} parent=5 // pred_region
        %s2426 = ssub.s32 %s36, 2
        // Predicated region
        $region129: #{tpu_custom_call.1} parent=127 // pred_check
          %p2427 = pneg %p421
        $region130: #{tpu_custom_call.1} parent=127 // pred_check_branch
          %2429 = sbr.rel (%p2427) target = $region132
        $region131: #{tpu_custom_call.1} parent=127 // pred_region
          %s2430 = sand.u32 %s406, 1
          %s2431 = scalar_lea.sflag [#allocation5], %s2430
          %s2432 = sand.u32 %s406, 1
          %s2433 = smul.addr %s2432, 8
          %s2434 = scalar_lea.vmem [#allocation17], %s2433
          %2435 = dma.done %s2431, 128
        $region132: #{tpu_custom_call.1} parent=127 // pred_fallthru
          _
        // Predicated region
        $region133: #{tpu_custom_call.1} parent=127 // pred_check
          %p2436 = pneg %p447
        $region134: #{tpu_custom_call.1} parent=127 // pred_check_branch
          %2438 = sbr.rel (%p2436) target = $region136
        $region135: #{tpu_custom_call.1} parent=127 // pred_region
          %p2439 = scmp.lt.s32.totalorder %s42, 1
          %s2440 = scalar_select %p2439, %s42, 1
          %s2441 = smul.addr %s2440, 3
          %s2442 = smul.addr %s2441, 8
          %s2443 = scalar_lea.vmem %s17, %s2442
        $region136: #{tpu_custom_call.1} parent=127 // pred_fallthru
          _
      $region128: #{tpu_custom_call.1} parent=5 // pred_fallthru
        _
    $region6: #{tpu_custom_call.1} parent=1 // loop_footer
      %s40 = sadd.s32 1, %s36
    $region7: #{tpu_custom_call.1} parent=1 // loop_footer_branch
      %35 = sbr.rel target = $region3
    $region8: #{tpu_custom_call.1} parent=1 // loop_exit
      _
    %2444 = vsyncpa [#allocation4], 1
    %s2445 = scalar_lea.sflag [#allocation4], 1
    %2446 = vsyncpa %s2445, 1
    %2447 = vsyncpa [#allocation7], 1
    %s2448 = scalar_lea.sflag [#allocation7], 1
    %2449 = vsyncpa %s2448, 1
    %2450 = vsyncpa [#allocation10], 1
    %2451 = vsyncpa [#allocation13], 1
    %2452 = vsyncpa [#allocation16], 1
    %2453 = vsyncpa [#allocation5], 1
    %s2454 = scalar_lea.sflag [#allocation5], 1
    %2455 = vsyncpa %s2454, 1

</llo_original>
